<compile_context>
chip_gen: v7x
topology: tpu7x:2x2x1
jax: 0.10.0
libtpu: 0.0.40
codegen_flags: <defaults>
</compile_context>

<pallas_src>
import functools
import math

import numpy as np
import jax
import jax.numpy as jnp
from jax import lax
from jax.experimental import pallas as pl
from jax.experimental.pallas import tpu as pltpu


# Row layout of the packed per-layer vector block pvec: [L, 8, D]
PV_BO, PV_B2, PV_G1, PV_BE1, PV_G2, PV_BE2 = range(6)
PV_ROWS = 8  # padded to a sublane multiple


def _layer_norm(x, g, b, eps=1e-5):
    mu = jnp.mean(x, axis=-1, keepdims=True)
    var = jnp.mean((x - mu) ** 2, axis=-1, keepdims=True)
    return (x - mu) * lax.rsqrt(var + eps) * g + b


# ---------------------------------------------------------------------------
# Fused kernel: embedding gather + pos add + all encoder layers + vocab head
# (whole batch processed in one invocation, activations resident in VMEM)
# ---------------------------------------------------------------------------
def fused_forward_kernel(
    tok_ref,     # [BS, 1]    int32 token ids (batch*seq folded)
    emb_ref,     # [V+1, D]   embedding table
    pos_ref,     # [S, D]     positional embedding rows
    hmask_ref,   # [H*BS, D]  head mask (precomputed constant)
    bias_ref,    # [BS, H*BS] block-diag causal additive bias (precomputed)
    wqkv_ref,    # [L, D, 3D]
    bqkv_ref,    # [L, 1, 3D]
    wo_ref,      # [L, D, D]
    w1_ref,      # [L, D, F]
    b1_ref,      # [L, 1, F]
    w2_ref,      # [L, F, D]
    pvec_ref,    # [L, 8, D]  packed: bo, b2, g1, be1, g2, be2
    linw_ref,    # [D, V]
    linb_ref,    # [1, V]
    out_ref,     # [BS, V]
    *, n_layers, n_heads, batch,
):
    S, D = pos_ref.shape
    BS = tok_ref.shape[0]
    VP1 = emb_ref.shape[0]
    H = n_heads
    hd = D // H
    scale = 1.0 / math.sqrt(hd)

    # ---- fused embedding gather (one-hot matmul on the MXU) + pos add ----
    # (this reference model does NOT scale embeddings by sqrt(d_model))
    tok = tok_ref[...]                                            # [BS, 1]
    col = lax.broadcasted_iota(jnp.int32, (BS, VP1), 1)
    onehot = (col == tok).astype(jnp.float32)                     # [BS, V+1]
    pos = jnp.concatenate([pos_ref[...]] * batch, axis=0)         # [BS, D]
    x = jnp.dot(onehot, emb_ref[...],
                preferred_element_type=jnp.float32) + pos         # [BS, D]

    head_mask = hmask_ref[...]                                    # [H*BS, D]
    attn_bias = bias_ref[...]                                     # [BS, H*BS]

    # TODO(synk): static unroll + all-layer-resident f32 weights are fine at
    # L=4/D=32; at production dims switch to a layer grid axis (or
    # pltpu.emit_pipeline over L) with bf16 matmul operands to fit v7x VMEM.
    for l in range(n_layers):                                     # static unroll
        pv = pvec_ref[l]                                          # [8, D]
        bo, b2 = pv[PV_BO:PV_BO + 1, :], pv[PV_B2:PV_B2 + 1, :]
        g1, be1 = pv[PV_G1:PV_G1 + 1, :], pv[PV_BE1:PV_BE1 + 1, :]
        g2, be2 = pv[PV_G2:PV_G2 + 1, :], pv[PV_BE2:PV_BE2 + 1, :]

        # ---- fused QKV projection; ONE bias add on the contiguous slab ----
        qkv = jnp.dot(x, wqkv_ref[l],
                      preferred_element_type=jnp.float32) + bqkv_ref[l]  # [BS,3D]
        q = qkv[:, 0:D] * scale        # scale applied to q (smaller tensor)
        k = qkv[:, D:2 * D]
        v = qkv[:, 2 * D:3 * D]

        # ---- head-batched attention (no per-head loop / concat) ----
        # row block h of k_exp/v_exp carries only head h's feature columns.
        k_exp = jnp.concatenate([k] * H, axis=0) * head_mask      # [H*BS, D]
        v_exp = jnp.concatenate([v] * H, axis=0) * head_mask      # [H*BS, D]

        # scores for all heads (and all batch rows) in one matmul
        s = lax.dot_general(q, k_exp, (((1,), (1,)), ((), ())),
                            preferred_element_type=jnp.float32)   # [BS, H*BS]
        s = s + attn_bias
        m = jnp.max(s, axis=-1, keepdims=True)   # shared per-row stabilizer
        p = jnp.exp(s - m)                                         # [BS, H*BS]

        ctx_un = jnp.dot(p, v_exp, preferred_element_type=jnp.float32)     # [BS, D]
        denom = jnp.dot(p, head_mask, preferred_element_type=jnp.float32)  # [BS, D]
        # clamp guards against a head underflowing under the shared max
        ctx = ctx_un * pl.reciprocal(jnp.maximum(denom, 1e-20), approx=True)

        attn = jnp.dot(ctx, wo_ref[l], preferred_element_type=jnp.float32) + bo

        # ---- residual + LayerNorm1 (post-norm, PyTorch default) ----
        y = _layer_norm(x + attn, g1, be1)

        # ---- feed-forward (ReLU, PyTorch default) ----
        h1 = jnp.maximum(
            jnp.dot(y, w1_ref[l], preferred_element_type=jnp.float32) + b1_ref[l],
            0.0)
        ff = jnp.dot(h1, w2_ref[l], preferred_element_type=jnp.float32) + b2

        # ---- residual + LayerNorm2 ----
        x = _layer_norm(y + ff, g2, be2)

    # ---- final vocab projection: lane-dense [BS, V=128] store ----
    out_ref[...] = (jnp.dot(x, linw_ref[...],
                            preferred_element_type=jnp.float32) + linb_ref[...])


# ---------------------------------------------------------------------------
# Wrapper
# ---------------------------------------------------------------------------
def build_attention_constants(B, S, D, H):
    """Trace-time (numpy) constants: head mask + block-diag causal bias."""
    BS = B * S
    hd = D // H
    row_head = np.arange(H * BS)[:, None] // BS                   # head of row
    col_head = np.arange(D)[None, :] // hd                        # head of col
    head_mask = (row_head == col_head).astype(np.float32)         # [H*BS, D]

    q_idx = np.arange(BS)
    k_idx = np.arange(H * BS) % BS
    same_batch = (q_idx[:, None] // S) == (k_idx[None, :] // S)
    causal = (k_idx[None, :] % S) <= (q_idx[:, None] % S)
    attn_bias = np.where(same_batch & causal, 0.0, -1e9).astype(np.float32)
    return jnp.asarray(head_mask), jnp.asarray(attn_bias)


def transformer_forward(tokens, params, pos_emb, *, n_heads):
    """tokens: [B, S] int32 -> logits [B, S, vocab_size]."""
    B, S = tokens.shape
    D = params["embedding"].shape[1]
    V = params["lin_w"].shape[1]
    L = params["wqkv"].shape[0]
    BS = B * S

    head_mask, attn_bias = build_attention_constants(B, S, D, n_heads)
    tok = tokens.reshape(BS, 1).astype(jnp.int32)
    pos = pos_emb[:S]

    kern = functools.partial(fused_forward_kernel,
                             n_layers=L, n_heads=n_heads, batch=B)
    # Gridless call: a single pipeline step; every input (a few hundred KB at
    # these shapes) is staged once into VMEM and the whole forward runs there.
    # TODO(synk): src_key_padding_mask (mask=None in the reference call) is not modeled.
    out = pl.pallas_call(
        kern,
        out_shape=jax.ShapeDtypeStruct((BS, V), jnp.float32),
    )(tok, params["embedding"], pos, head_mask, attn_bias,
      params["wqkv"], params["bqkv"], params["wo"], params["w1"],
      params["b1"], params["w2"], params["pvec"],
      params["lin_w"], params["lin_b"])
    return out.reshape(B, S, V)


# ---------------------------------------------------------------------------
# Parameter init / positional embedding (glue)
# ---------------------------------------------------------------------------
def sinusoidal_pos_embedding(max_len, d):
    position = jnp.arange(max_len, dtype=jnp.float32)[:, None]
    div_term = jnp.exp(
        jnp.arange(0, d, 2, dtype=jnp.float32) * -(math.log(10000.0) / d))
    pe = jnp.zeros((max_len, d), jnp.float32)
    pe = pe.at[:, 0::2].set(jnp.sin(position * div_term))
    pe = pe.at[:, 1::2].set(jnp.cos(position * div_term))
    return pe


def init_params(key, vocab_size, n_embd, n_layers, dim_feedforward):
    D, F, V, L = n_embd, dim_feedforward, vocab_size, n_layers
    k_emb, k_lin, k_qkv, k_o, k_1, k_2 = jax.random.split(key, 6)

    def nrm(k, shape, scale=0.02):
        return (jax.random.normal(k, shape, jnp.float32) * scale).astype(jnp.float32)

    pvec = jnp.zeros((L, PV_ROWS, D), jnp.float32)
    pvec = pvec.at[:, PV_G1, :].set(1.0)   # LayerNorm1 gamma
    pvec = pvec.at[:, PV_G2, :].set(1.0)   # LayerNorm2 gamma
    # all biases / betas are zero-initialized rows of pvec

    return {
        "embedding": nrm(k_emb, (V + 1, D), 1.0),    # nn.Embedding(vocab+1, D)
        "wqkv": nrm(k_qkv, (L, D, 3 * D)),           # fused QKV weight [in, out]
        "bqkv": jnp.zeros((L, 1, 3 * D), jnp.float32),
        "wo": nrm(k_o, (L, D, D)),
        "w1": nrm(k_1, (L, D, F)),
        "b1": jnp.zeros((L, 1, F), jnp.float32),
        "w2": nrm(k_2, (L, F, D)),
        "pvec": pvec,                                # bo, b2, g1, be1, g2, be2
        "lin_w": nrm(k_lin, (D, V)),                 # final nn.Linear(D, V)
        "lin_b": jnp.zeros((1, V), jnp.float32),
    }


# ---------------------------------------------------------------------------
if __name__ == "__main__":
    # Small, forward-consistent shapes (config.* values chosen in-script).
    vocab_size = 128          # chunks
    n_embd = 32
    dim_feedforward = 64
    n_heads = 8
    n_layers = 4
    max_seq_length = 672
    B, S = 2, 8

    key = jax.random.PRNGKey(0)
    pkey, tkey = jax.random.split(key)

    params = init_params(pkey, vocab_size, n_embd, n_layers, dim_feedforward)
    pos_emb = sinusoidal_pos_embedding(max_seq_length, n_embd)
    tokens = jax.random.randint(tkey, (B, S), 0, vocab_size + 1, dtype=jnp.int32)

    fwd = jax.jit(functools.partial(transformer_forward, n_heads=n_heads))
    logits = fwd(tokens, params, pos_emb)
    jax.block_until_ready(logits)

    assert logits.shape == (B, S, vocab_size), logits.shape
    assert bool(jnp.all(jnp.isfinite(logits)))
    print("KERNEL_OK")
</pallas_src>

<mosaic_0001>
module attributes {stable_mosaic.version = 11 : i64} {
  func.func @fused_forward_kernel(%arg0: memref<16x1xi32, #tpu.memory_space<vmem>>, %arg1: memref<129x32xf32, #tpu.memory_space<vmem>>, %arg2: memref<8x32xf32, #tpu.memory_space<vmem>>, %arg3: memref<128x32xf32, #tpu.memory_space<vmem>>, %arg4: memref<16x128xf32, #tpu.memory_space<vmem>>, %arg5: memref<4x32x96xf32, #tpu.memory_space<vmem>>, %arg6: memref<4x1x96xf32, #tpu.memory_space<vmem>>, %arg7: memref<4x32x32xf32, #tpu.memory_space<vmem>>, %arg8: memref<4x32x64xf32, #tpu.memory_space<vmem>>, %arg9: memref<4x1x64xf32, #tpu.memory_space<vmem>>, %arg10: memref<4x64x32xf32, #tpu.memory_space<vmem>>, %arg11: memref<4x8x32xf32, #tpu.memory_space<vmem>>, %arg12: memref<32x128xf32, #tpu.memory_space<vmem>>, %arg13: memref<1x128xf32, #tpu.memory_space<vmem>>, %arg14: memref<16x128xf32, #tpu.memory_space<vmem>>) attributes {dimension_semantics = [], scalar_prefetch = 0 : i64, scratch_operands = 0 : i64, tpu.core_type = #tpu.core_type<tc>} {
    %c0 = arith.constant 0 : index
    %c0_0 = arith.constant 0 : index
    %0 = vector.load %arg0[%c0, %c0_0] : memref<16x1xi32, #tpu.memory_space<vmem>>, vector<16x1xi32>
    %1 = tpu.iota {dimensions = array<i32: 1>} : vector<16x129xi32>
    %2 = vector.broadcast %0 : vector<16x1xi32> to vector<16x129xi32>
    %3 = arith.cmpi eq, %1, %2 : vector<16x129xi32>
    %4 = arith.extui %3 : vector<16x129xi1> to vector<16x129xi32>
    %5 = arith.sitofp %4 : vector<16x129xi32> to vector<16x129xf32>
    %c0_1 = arith.constant 0 : index
    %c0_2 = arith.constant 0 : index
    %6 = vector.load %arg2[%c0_1, %c0_2] : memref<8x32xf32, #tpu.memory_space<vmem>>, vector<8x32xf32>
    %7 = tpu.concatenate %6, %6 in 0 : vector<8x32xf32>, vector<8x32xf32> -> vector<16x32xf32>
    %c0_3 = arith.constant 0 : index
    %c0_4 = arith.constant 0 : index
    %8 = vector.load %arg1[%c0_3, %c0_4] : memref<129x32xf32, #tpu.memory_space<vmem>>, vector<129x32xf32>
    %cst = arith.constant dense<0.000000e+00> : vector<16x32xf32>
    %9 = tpu.matmul %5, %8, %cst {dimension_numbers = #tpu.dot_dimension_numbers<[1], [0], [0], [1], [0, 0, 1, 1], [], []>} : vector<16x129xf32>, vector<129x32xf32>, vector<16x32xf32> -> vector<16x32xf32>
    %10 = arith.addf %9, %7 : vector<16x32xf32>
    %c0_5 = arith.constant 0 : index
    %c0_6 = arith.constant 0 : index
    %11 = vector.load %arg3[%c0_5, %c0_6] : memref<128x32xf32, #tpu.memory_space<vmem>>, vector<128x32xf32>
    %c0_7 = arith.constant 0 : index
    %c0_8 = arith.constant 0 : index
    %12 = vector.load %arg4[%c0_7, %c0_8] : memref<16x128xf32, #tpu.memory_space<vmem>>, vector<16x128xf32>
    %c0_9 = arith.constant 0 : index
    %c0_10 = arith.constant 0 : index
    %c0_11 = arith.constant 0 : index
    %13 = vector.load %arg11[%c0_9, %c0_10, %c0_11] : memref<4x8x32xf32, #tpu.memory_space<vmem>>, vector<1x8x32xf32>
    %14 = vector.shape_cast %13 : vector<1x8x32xf32> to vector<8x32xf32>
    %15 = vector.extract_strided_slice %14 {offsets = [0, 0], sizes = [1, 32], strides = [1, 1]} : vector<8x32xf32> to vector<1x32xf32>
    %16 = vector.extract_strided_slice %14 {offsets = [1, 0], sizes = [1, 32], strides = [1, 1]} : vector<8x32xf32> to vector<1x32xf32>
    %17 = vector.extract_strided_slice %14 {offsets = [2, 0], sizes = [1, 32], strides = [1, 1]} : vector<8x32xf32> to vector<1x32xf32>
    %18 = vector.extract_strided_slice %14 {offsets = [3, 0], sizes = [1, 32], strides = [1, 1]} : vector<8x32xf32> to vector<1x32xf32>
    %19 = vector.extract_strided_slice %14 {offsets = [4, 0], sizes = [1, 32], strides = [1, 1]} : vector<8x32xf32> to vector<1x32xf32>
    %20 = vector.extract_strided_slice %14 {offsets = [5, 0], sizes = [1, 32], strides = [1, 1]} : vector<8x32xf32> to vector<1x32xf32>
    %c0_12 = arith.constant 0 : index
    %c0_13 = arith.constant 0 : index
    %c0_14 = arith.constant 0 : index
    %21 = vector.load %arg5[%c0_12, %c0_13, %c0_14] : memref<4x32x96xf32, #tpu.memory_space<vmem>>, vector<1x32x96xf32>
    %22 = vector.shape_cast %21 : vector<1x32x96xf32> to vector<32x96xf32>
    %cst_15 = arith.constant dense<0.000000e+00> : vector<16x96xf32>
    %23 = tpu.matmul %10, %22, %cst_15 {dimension_numbers = #tpu.dot_dimension_numbers<[1], [0], [0], [1], [0, 0, 1, 1], [], []>} : vector<16x32xf32>, vector<32x96xf32>, vector<16x96xf32> -> vector<16x96xf32>
    %c0_16 = arith.constant 0 : index
    %c0_17 = arith.constant 0 : index
    %c0_18 = arith.constant 0 : index
    %24 = vector.load %arg6[%c0_16, %c0_17, %c0_18] : memref<4x1x96xf32, #tpu.memory_space<vmem>>, vector<1x1x96xf32>
    %25 = vector.shape_cast %24 : vector<1x1x96xf32> to vector<1x96xf32>
    %26 = vector.broadcast %25 : vector<1x96xf32> to vector<16x96xf32>
    %27 = arith.addf %23, %26 : vector<16x96xf32>
    %28 = vector.extract_strided_slice %27 {offsets = [0, 0], sizes = [16, 32], strides = [1, 1]} : vector<16x96xf32> to vector<16x32xf32>
    %cst_19 = arith.constant 5.000000e-01 : f32
    %29 = vector.broadcast %cst_19 : f32 to vector<16x32xf32>
    %30 = arith.mulf %28, %29 : vector<16x32xf32>
    %31 = vector.extract_strided_slice %27 {offsets = [0, 32], sizes = [16, 32], strides = [1, 1]} : vector<16x96xf32> to vector<16x32xf32>
    %32 = vector.extract_strided_slice %27 {offsets = [0, 64], sizes = [16, 32], strides = [1, 1]} : vector<16x96xf32> to vector<16x32xf32>
    %33 = tpu.concatenate %31, %31, %31, %31, %31, %31, %31, %31 in 0 : vector<16x32xf32>, vector<16x32xf32>, vector<16x32xf32>, vector<16x32xf32>, vector<16x32xf32>, vector<16x32xf32>, vector<16x32xf32>, vector<16x32xf32> -> vector<128x32xf32>
    %34 = arith.mulf %33, %11 : vector<128x32xf32>
    %35 = tpu.concatenate %32, %32, %32, %32, %32, %32, %32, %32 in 0 : vector<16x32xf32>, vector<16x32xf32>, vector<16x32xf32>, vector<16x32xf32>, vector<16x32xf32>, vector<16x32xf32>, vector<16x32xf32>, vector<16x32xf32> -> vector<128x32xf32>
    %36 = arith.mulf %35, %11 : vector<128x32xf32>
    %cst_20 = arith.constant dense<0.000000e+00> : vector<16x128xf32>
    %37 = tpu.matmul %30, %34, %cst_20 {dimension_numbers = #tpu.dot_dimension_numbers<[1], [1], [0], [0], [0, 0, 1, 0], [], []>} : vector<16x32xf32>, vector<128x32xf32>, vector<16x128xf32> -> vector<16x128xf32>
    %38 = arith.addf %37, %12 : vector<16x128xf32>
    %cst_21 = arith.constant dense<0xFF800000> : vector<16xf32>
    %39 = vector.multi_reduction <maximumf>, %38, %cst_21 [1] : vector<16x128xf32> to vector<16xf32>
    %40 = vector.shape_cast %39 : vector<16xf32> to vector<16x1xf32>
    %41 = vector.broadcast %40 : vector<16x1xf32> to vector<16x128xf32>
    %42 = arith.subf %38, %41 : vector<16x128xf32>
    %43 = math.exp %42 : vector<16x128xf32>
    %cst_22 = arith.constant dense<0.000000e+00> : vector<16x32xf32>
    %44 = tpu.matmul %43, %36, %cst_22 {dimension_numbers = #tpu.dot_dimension_numbers<[1], [0], [0], [1], [0, 0, 1, 1], [], []>} : vector<16x128xf32>, vector<128x32xf32>, vector<16x32xf32> -> vector<16x32xf32>
    %cst_23 = arith.constant dense<0.000000e+00> : vector<16x32xf32>
    %45 = tpu.matmul %43, %11, %cst_23 {dimension_numbers = #tpu.dot_dimension_numbers<[1], [0], [0], [1], [0, 0, 1, 1], [], []>} : vector<16x128xf32>, vector<128x32xf32>, vector<16x32xf32> -> vector<16x32xf32>
    %cst_24 = arith.constant 9.99999968E-21 : f32
    %46 = vector.broadcast %cst_24 : f32 to vector<16x32xf32>
    %47 = arith.maximumf %45, %46 : vector<16x32xf32>
    %48 = tpu.reciprocal %47 {approx = true} : vector<16x32xf32> -> vector<16x32xf32>
    %49 = arith.mulf %44, %48 : vector<16x32xf32>
    %c0_25 = arith.constant 0 : index
    %c0_26 = arith.constant 0 : index
    %c0_27 = arith.constant 0 : index
    %50 = vector.load %arg7[%c0_25, %c0_26, %c0_27] : memref<4x32x32xf32, #tpu.memory_space<vmem>>, vector<1x32x32xf32>
    %51 = vector.shape_cast %50 : vector<1x32x32xf32> to vector<32x32xf32>
    %cst_28 = arith.constant dense<0.000000e+00> : vector<16x32xf32>
    %52 = tpu.matmul %49, %51, %cst_28 {dimension_numbers = #tpu.dot_dimension_numbers<[1], [0], [0], [1], [0, 0, 1, 1], [], []>} : vector<16x32xf32>, vector<32x32xf32>, vector<16x32xf32> -> vector<16x32xf32>
    %53 = vector.broadcast %15 : vector<1x32xf32> to vector<16x32xf32>
    %54 = arith.addf %52, %53 : vector<16x32xf32>
    %55 = arith.addf %10, %54 : vector<16x32xf32>
    %cst_29 = arith.constant dense<0.000000e+00> : vector<16xf32>
    %56 = vector.multi_reduction <add>, %55, %cst_29 [1] : vector<16x32xf32> to vector<16xf32>
    %57 = vector.shape_cast %56 : vector<16xf32> to vector<16x1xf32>
    %cst_30 = arith.constant 3.200000e+01 : f32
    %58 = vector.broadcast %cst_30 : f32 to vector<16x1xf32>
    %59 = arith.divf %57, %58 : vector<16x1xf32>
    %60 = vector.broadcast %59 : vector<16x1xf32> to vector<16x32xf32>
    %61 = arith.subf %55, %60 : vector<16x32xf32>
    %62 = arith.mulf %61, %61 : vector<16x32xf32>
    %cst_31 = arith.constant dense<0.000000e+00> : vector<16xf32>
    %63 = vector.multi_reduction <add>, %62, %cst_31 [1] : vector<16x32xf32> to vector<16xf32>
    %64 = vector.shape_cast %63 : vector<16xf32> to vector<16x1xf32>
    %cst_32 = arith.constant 3.200000e+01 : f32
    %65 = vector.broadcast %cst_32 : f32 to vector<16x1xf32>
    %66 = arith.divf %64, %65 : vector<16x1xf32>
    %67 = vector.broadcast %59 : vector<16x1xf32> to vector<16x32xf32>
    %68 = arith.subf %55, %67 : vector<16x32xf32>
    %cst_33 = arith.constant 9.99999974E-6 : f32
    %69 = vector.broadcast %cst_33 : f32 to vector<16x1xf32>
    %70 = arith.addf %66, %69 : vector<16x1xf32>
    %71 = math.rsqrt %70 : vector<16x1xf32>
    %72 = vector.broadcast %71 : vector<16x1xf32> to vector<16x32xf32>
    %73 = arith.mulf %68, %72 : vector<16x32xf32>
    %74 = vector.broadcast %17 : vector<1x32xf32> to vector<16x32xf32>
    %75 = arith.mulf %73, %74 : vector<16x32xf32>
    %76 = vector.broadcast %18 : vector<1x32xf32> to vector<16x32xf32>
    %77 = arith.addf %75, %76 : vector<16x32xf32>
    %c0_34 = arith.constant 0 : index
    %c0_35 = arith.constant 0 : index
    %c0_36 = arith.constant 0 : index
    %78 = vector.load %arg8[%c0_34, %c0_35, %c0_36] : memref<4x32x64xf32, #tpu.memory_space<vmem>>, vector<1x32x64xf32>
    %79 = vector.shape_cast %78 : vector<1x32x64xf32> to vector<32x64xf32>
    %cst_37 = arith.constant dense<0.000000e+00> : vector<16x64xf32>
    %80 = tpu.matmul %77, %79, %cst_37 {dimension_numbers = #tpu.dot_dimension_numbers<[1], [0], [0], [1], [0, 0, 1, 1], [], []>} : vector<16x32xf32>, vector<32x64xf32>, vector<16x64xf32> -> vector<16x64xf32>
    %c0_38 = arith.constant 0 : index
    %c0_39 = arith.constant 0 : index
    %c0_40 = arith.constant 0 : index
    %81 = vector.load %arg9[%c0_38, %c0_39, %c0_40] : memref<4x1x64xf32, #tpu.memory_space<vmem>>, vector<1x1x64xf32>
    %82 = vector.shape_cast %81 : vector<1x1x64xf32> to vector<1x64xf32>
    %83 = vector.broadcast %82 : vector<1x64xf32> to vector<16x64xf32>
    %84 = arith.addf %80, %83 : vector<16x64xf32>
    %cst_41 = arith.constant 0.000000e+00 : f32
    %85 = vector.broadcast %cst_41 : f32 to vector<16x64xf32>
    %86 = arith.maximumf %84, %85 : vector<16x64xf32>
    %c0_42 = arith.constant 0 : index
    %c0_43 = arith.constant 0 : index
    %c0_44 = arith.constant 0 : index
    %87 = vector.load %arg10[%c0_42, %c0_43, %c0_44] : memref<4x64x32xf32, #tpu.memory_space<vmem>>, vector<1x64x32xf32>
    %88 = vector.shape_cast %87 : vector<1x64x32xf32> to vector<64x32xf32>
    %cst_45 = arith.constant dense<0.000000e+00> : vector<16x32xf32>
    %89 = tpu.matmul %86, %88, %cst_45 {dimension_numbers = #tpu.dot_dimension_numbers<[1], [0], [0], [1], [0, 0, 1, 1], [], []>} : vector<16x64xf32>, vector<64x32xf32>, vector<16x32xf32> -> vector<16x32xf32>
    %90 = vector.broadcast %16 : vector<1x32xf32> to vector<16x32xf32>
    %91 = arith.addf %89, %90 : vector<16x32xf32>
    %92 = arith.addf %77, %91 : vector<16x32xf32>
    %cst_46 = arith.constant dense<0.000000e+00> : vector<16xf32>
    %93 = vector.multi_reduction <add>, %92, %cst_46 [1] : vector<16x32xf32> to vector<16xf32>
    %94 = vector.shape_cast %93 : vector<16xf32> to vector<16x1xf32>
    %cst_47 = arith.constant 3.200000e+01 : f32
    %95 = vector.broadcast %cst_47 : f32 to vector<16x1xf32>
    %96 = arith.divf %94, %95 : vector<16x1xf32>
    %97 = vector.broadcast %96 : vector<16x1xf32> to vector<16x32xf32>
    %98 = arith.subf %92, %97 : vector<16x32xf32>
    %99 = arith.mulf %98, %98 : vector<16x32xf32>
    %cst_48 = arith.constant dense<0.000000e+00> : vector<16xf32>
    %100 = vector.multi_reduction <add>, %99, %cst_48 [1] : vector<16x32xf32> to vector<16xf32>
    %101 = vector.shape_cast %100 : vector<16xf32> to vector<16x1xf32>
    %cst_49 = arith.constant 3.200000e+01 : f32
    %102 = vector.broadcast %cst_49 : f32 to vector<16x1xf32>
    %103 = arith.divf %101, %102 : vector<16x1xf32>
    %104 = vector.broadcast %96 : vector<16x1xf32> to vector<16x32xf32>
    %105 = arith.subf %92, %104 : vector<16x32xf32>
    %cst_50 = arith.constant 9.99999974E-6 : f32
    %106 = vector.broadcast %cst_50 : f32 to vector<16x1xf32>
    %107 = arith.addf %103, %106 : vector<16x1xf32>
    %108 = math.rsqrt %107 : vector<16x1xf32>
    %109 = vector.broadcast %108 : vector<16x1xf32> to vector<16x32xf32>
    %110 = arith.mulf %105, %109 : vector<16x32xf32>
    %111 = vector.broadcast %19 : vector<1x32xf32> to vector<16x32xf32>
    %112 = arith.mulf %110, %111 : vector<16x32xf32>
    %113 = vector.broadcast %20 : vector<1x32xf32> to vector<16x32xf32>
    %114 = arith.addf %112, %113 : vector<16x32xf32>
    %c1 = arith.constant 1 : index
    %c0_51 = arith.constant 0 : index
    %c0_52 = arith.constant 0 : index
    %115 = vector.load %arg11[%c1, %c0_51, %c0_52] : memref<4x8x32xf32, #tpu.memory_space<vmem>>, vector<1x8x32xf32>
    %116 = vector.shape_cast %115 : vector<1x8x32xf32> to vector<8x32xf32>
    %117 = vector.extract_strided_slice %116 {offsets = [0, 0], sizes = [1, 32], strides = [1, 1]} : vector<8x32xf32> to vector<1x32xf32>
    %118 = vector.extract_strided_slice %116 {offsets = [1, 0], sizes = [1, 32], strides = [1, 1]} : vector<8x32xf32> to vector<1x32xf32>
    %119 = vector.extract_strided_slice %116 {offsets = [2, 0], sizes = [1, 32], strides = [1, 1]} : vector<8x32xf32> to vector<1x32xf32>
    %120 = vector.extract_strided_slice %116 {offsets = [3, 0], sizes = [1, 32], strides = [1, 1]} : vector<8x32xf32> to vector<1x32xf32>
    %121 = vector.extract_strided_slice %116 {offsets = [4, 0], sizes = [1, 32], strides = [1, 1]} : vector<8x32xf32> to vector<1x32xf32>
    %122 = vector.extract_strided_slice %116 {offsets = [5, 0], sizes = [1, 32], strides = [1, 1]} : vector<8x32xf32> to vector<1x32xf32>
    %c1_53 = arith.constant 1 : index
    %c0_54 = arith.constant 0 : index
    %c0_55 = arith.constant 0 : index
    %123 = vector.load %arg5[%c1_53, %c0_54, %c0_55] : memref<4x32x96xf32, #tpu.memory_space<vmem>>, vector<1x32x96xf32>
    %124 = vector.shape_cast %123 : vector<1x32x96xf32> to vector<32x96xf32>
    %cst_56 = arith.constant dense<0.000000e+00> : vector<16x96xf32>
    %125 = tpu.matmul %114, %124, %cst_56 {dimension_numbers = #tpu.dot_dimension_numbers<[1], [0], [0], [1], [0, 0, 1, 1], [], []>} : vector<16x32xf32>, vector<32x96xf32>, vector<16x96xf32> -> vector<16x96xf32>
    %c1_57 = arith.constant 1 : index
    %c0_58 = arith.constant 0 : index
    %c0_59 = arith.constant 0 : index
    %126 = vector.load %arg6[%c1_57, %c0_58, %c0_59] : memref<4x1x96xf32, #tpu.memory_space<vmem>>, vector<1x1x96xf32>
    %127 = vector.shape_cast %126 : vector<1x1x96xf32> to vector<1x96xf32>
    %128 = vector.broadcast %127 : vector<1x96xf32> to vector<16x96xf32>
    %129 = arith.addf %125, %128 : vector<16x96xf32>
    %130 = vector.extract_strided_slice %129 {offsets = [0, 0], sizes = [16, 32], strides = [1, 1]} : vector<16x96xf32> to vector<16x32xf32>
    %cst_60 = arith.constant 5.000000e-01 : f32
    %131 = vector.broadcast %cst_60 : f32 to vector<16x32xf32>
    %132 = arith.mulf %130, %131 : vector<16x32xf32>
    %133 = vector.extract_strided_slice %129 {offsets = [0, 32], sizes = [16, 32], strides = [1, 1]} : vector<16x96xf32> to vector<16x32xf32>
    %134 = vector.extract_strided_slice %129 {offsets = [0, 64], sizes = [16, 32], strides = [1, 1]} : vector<16x96xf32> to vector<16x32xf32>
    %135 = tpu.concatenate %133, %133, %133, %133, %133, %133, %133, %133 in 0 : vector<16x32xf32>, vector<16x32xf32>, vector<16x32xf32>, vector<16x32xf32>, vector<16x32xf32>, vector<16x32xf32>, vector<16x32xf32>, vector<16x32xf32> -> vector<128x32xf32>
    %136 = arith.mulf %135, %11 : vector<128x32xf32>
    %137 = tpu.concatenate %134, %134, %134, %134, %134, %134, %134, %134 in 0 : vector<16x32xf32>, vector<16x32xf32>, vector<16x32xf32>, vector<16x32xf32>, vector<16x32xf32>, vector<16x32xf32>, vector<16x32xf32>, vector<16x32xf32> -> vector<128x32xf32>
    %138 = arith.mulf %137, %11 : vector<128x32xf32>
    %cst_61 = arith.constant dense<0.000000e+00> : vector<16x128xf32>
    %139 = tpu.matmul %132, %136, %cst_61 {dimension_numbers = #tpu.dot_dimension_numbers<[1], [1], [0], [0], [0, 0, 1, 0], [], []>} : vector<16x32xf32>, vector<128x32xf32>, vector<16x128xf32> -> vector<16x128xf32>
    %140 = arith.addf %139, %12 : vector<16x128xf32>
    %cst_62 = arith.constant dense<0xFF800000> : vector<16xf32>
    %141 = vector.multi_reduction <maximumf>, %140, %cst_62 [1] : vector<16x128xf32> to vector<16xf32>
    %142 = vector.shape_cast %141 : vector<16xf32> to vector<16x1xf32>
    %143 = vector.broadcast %142 : vector<16x1xf32> to vector<16x128xf32>
    %144 = arith.subf %140, %143 : vector<16x128xf32>
    %145 = math.exp %144 : vector<16x128xf32>
    %cst_63 = arith.constant dense<0.000000e+00> : vector<16x32xf32>
    %146 = tpu.matmul %145, %138, %cst_63 {dimension_numbers = #tpu.dot_dimension_numbers<[1], [0], [0], [1], [0, 0, 1, 1], [], []>} : vector<16x128xf32>, vector<128x32xf32>, vector<16x32xf32> -> vector<16x32xf32>
    %cst_64 = arith.constant dense<0.000000e+00> : vector<16x32xf32>
    %147 = tpu.matmul %145, %11, %cst_64 {dimension_numbers = #tpu.dot_dimension_numbers<[1], [0], [0], [1], [0, 0, 1, 1], [], []>} : vector<16x128xf32>, vector<128x32xf32>, vector<16x32xf32> -> vector<16x32xf32>
    %cst_65 = arith.constant 9.99999968E-21 : f32
    %148 = vector.broadcast %cst_65 : f32 to vector<16x32xf32>
    %149 = arith.maximumf %147, %148 : vector<16x32xf32>
    %150 = tpu.reciprocal %149 {approx = true} : vector<16x32xf32> -> vector<16x32xf32>
    %151 = arith.mulf %146, %150 : vector<16x32xf32>
    %c1_66 = arith.constant 1 : index
    %c0_67 = arith.constant 0 : index
    %c0_68 = arith.constant 0 : index
    %152 = vector.load %arg7[%c1_66, %c0_67, %c0_68] : memref<4x32x32xf32, #tpu.memory_space<vmem>>, vector<1x32x32xf32>
    %153 = vector.shape_cast %152 : vector<1x32x32xf32> to vector<32x32xf32>
    %cst_69 = arith.constant dense<0.000000e+00> : vector<16x32xf32>
    %154 = tpu.matmul %151, %153, %cst_69 {dimension_numbers = #tpu.dot_dimension_numbers<[1], [0], [0], [1], [0, 0, 1, 1], [], []>} : vector<16x32xf32>, vector<32x32xf32>, vector<16x32xf32> -> vector<16x32xf32>
    %155 = vector.broadcast %117 : vector<1x32xf32> to vector<16x32xf32>
    %156 = arith.addf %154, %155 : vector<16x32xf32>
    %157 = arith.addf %114, %156 : vector<16x32xf32>
    %cst_70 = arith.constant dense<0.000000e+00> : vector<16xf32>
    %158 = vector.multi_reduction <add>, %157, %cst_70 [1] : vector<16x32xf32> to vector<16xf32>
    %159 = vector.shape_cast %158 : vector<16xf32> to vector<16x1xf32>
    %cst_71 = arith.constant 3.200000e+01 : f32
    %160 = vector.broadcast %cst_71 : f32 to vector<16x1xf32>
    %161 = arith.divf %159, %160 : vector<16x1xf32>
    %162 = vector.broadcast %161 : vector<16x1xf32> to vector<16x32xf32>
    %163 = arith.subf %157, %162 : vector<16x32xf32>
    %164 = arith.mulf %163, %163 : vector<16x32xf32>
    %cst_72 = arith.constant dense<0.000000e+00> : vector<16xf32>
    %165 = vector.multi_reduction <add>, %164, %cst_72 [1] : vector<16x32xf32> to vector<16xf32>
    %166 = vector.shape_cast %165 : vector<16xf32> to vector<16x1xf32>
    %cst_73 = arith.constant 3.200000e+01 : f32
    %167 = vector.broadcast %cst_73 : f32 to vector<16x1xf32>
    %168 = arith.divf %166, %167 : vector<16x1xf32>
    %169 = vector.broadcast %161 : vector<16x1xf32> to vector<16x32xf32>
    %170 = arith.subf %157, %169 : vector<16x32xf32>
    %cst_74 = arith.constant 9.99999974E-6 : f32
    %171 = vector.broadcast %cst_74 : f32 to vector<16x1xf32>
    %172 = arith.addf %168, %171 : vector<16x1xf32>
    %173 = math.rsqrt %172 : vector<16x1xf32>
    %174 = vector.broadcast %173 : vector<16x1xf32> to vector<16x32xf32>
    %175 = arith.mulf %170, %174 : vector<16x32xf32>
    %176 = vector.broadcast %119 : vector<1x32xf32> to vector<16x32xf32>
    %177 = arith.mulf %175, %176 : vector<16x32xf32>
    %178 = vector.broadcast %120 : vector<1x32xf32> to vector<16x32xf32>
    %179 = arith.addf %177, %178 : vector<16x32xf32>
    %c1_75 = arith.constant 1 : index
    %c0_76 = arith.constant 0 : index
    %c0_77 = arith.constant 0 : index
    %180 = vector.load %arg8[%c1_75, %c0_76, %c0_77] : memref<4x32x64xf32, #tpu.memory_space<vmem>>, vector<1x32x64xf32>
    %181 = vector.shape_cast %180 : vector<1x32x64xf32> to vector<32x64xf32>
    %cst_78 = arith.constant dense<0.000000e+00> : vector<16x64xf32>
    %182 = tpu.matmul %179, %181, %cst_78 {dimension_numbers = #tpu.dot_dimension_numbers<[1], [0], [0], [1], [0, 0, 1, 1], [], []>} : vector<16x32xf32>, vector<32x64xf32>, vector<16x64xf32> -> vector<16x64xf32>
    %c1_79 = arith.constant 1 : index
    %c0_80 = arith.constant 0 : index
    %c0_81 = arith.constant 0 : index
    %183 = vector.load %arg9[%c1_79, %c0_80, %c0_81] : memref<4x1x64xf32, #tpu.memory_space<vmem>>, vector<1x1x64xf32>
    %184 = vector.shape_cast %183 : vector<1x1x64xf32> to vector<1x64xf32>
    %185 = vector.broadcast %184 : vector<1x64xf32> to vector<16x64xf32>
    %186 = arith.addf %182, %185 : vector<16x64xf32>
    %cst_82 = arith.constant 0.000000e+00 : f32
    %187 = vector.broadcast %cst_82 : f32 to vector<16x64xf32>
    %188 = arith.maximumf %186, %187 : vector<16x64xf32>
    %c1_83 = arith.constant 1 : index
    %c0_84 = arith.constant 0 : index
    %c0_85 = arith.constant 0 : index
    %189 = vector.load %arg10[%c1_83, %c0_84, %c0_85] : memref<4x64x32xf32, #tpu.memory_space<vmem>>, vector<1x64x32xf32>
    %190 = vector.shape_cast %189 : vector<1x64x32xf32> to vector<64x32xf32>
    %cst_86 = arith.constant dense<0.000000e+00> : vector<16x32xf32>
    %191 = tpu.matmul %188, %190, %cst_86 {dimension_numbers = #tpu.dot_dimension_numbers<[1], [0], [0], [1], [0, 0, 1, 1], [], []>} : vector<16x64xf32>, vector<64x32xf32>, vector<16x32xf32> -> vector<16x32xf32>
    %192 = vector.broadcast %118 : vector<1x32xf32> to vector<16x32xf32>
    %193 = arith.addf %191, %192 : vector<16x32xf32>
    %194 = arith.addf %179, %193 : vector<16x32xf32>
    %cst_87 = arith.constant dense<0.000000e+00> : vector<16xf32>
    %195 = vector.multi_reduction <add>, %194, %cst_87 [1] : vector<16x32xf32> to vector<16xf32>
    %196 = vector.shape_cast %195 : vector<16xf32> to vector<16x1xf32>
    %cst_88 = arith.constant 3.200000e+01 : f32
    %197 = vector.broadcast %cst_88 : f32 to vector<16x1xf32>
    %198 = arith.divf %196, %197 : vector<16x1xf32>
    %199 = vector.broadcast %198 : vector<16x1xf32> to vector<16x32xf32>
    %200 = arith.subf %194, %199 : vector<16x32xf32>
    %201 = arith.mulf %200, %200 : vector<16x32xf32>
    %cst_89 = arith.constant dense<0.000000e+00> : vector<16xf32>
    %202 = vector.multi_reduction <add>, %201, %cst_89 [1] : vector<16x32xf32> to vector<16xf32>
    %203 = vector.shape_cast %202 : vector<16xf32> to vector<16x1xf32>
    %cst_90 = arith.constant 3.200000e+01 : f32
    %204 = vector.broadcast %cst_90 : f32 to vector<16x1xf32>
    %205 = arith.divf %203, %204 : vector<16x1xf32>
    %206 = vector.broadcast %198 : vector<16x1xf32> to vector<16x32xf32>
    %207 = arith.subf %194, %206 : vector<16x32xf32>
    %cst_91 = arith.constant 9.99999974E-6 : f32
    %208 = vector.broadcast %cst_91 : f32 to vector<16x1xf32>
    %209 = arith.addf %205, %208 : vector<16x1xf32>
    %210 = math.rsqrt %209 : vector<16x1xf32>
    %211 = vector.broadcast %210 : vector<16x1xf32> to vector<16x32xf32>
    %212 = arith.mulf %207, %211 : vector<16x32xf32>
    %213 = vector.broadcast %121 : vector<1x32xf32> to vector<16x32xf32>
    %214 = arith.mulf %212, %213 : vector<16x32xf32>
    %215 = vector.broadcast %122 : vector<1x32xf32> to vector<16x32xf32>
    %216 = arith.addf %214, %215 : vector<16x32xf32>
    %c2 = arith.constant 2 : index
    %c0_92 = arith.constant 0 : index
    %c0_93 = arith.constant 0 : index
    %217 = vector.load %arg11[%c2, %c0_92, %c0_93] : memref<4x8x32xf32, #tpu.memory_space<vmem>>, vector<1x8x32xf32>
    %218 = vector.shape_cast %217 : vector<1x8x32xf32> to vector<8x32xf32>
    %219 = vector.extract_strided_slice %218 {offsets = [0, 0], sizes = [1, 32], strides = [1, 1]} : vector<8x32xf32> to vector<1x32xf32>
    %220 = vector.extract_strided_slice %218 {offsets = [1, 0], sizes = [1, 32], strides = [1, 1]} : vector<8x32xf32> to vector<1x32xf32>
    %221 = vector.extract_strided_slice %218 {offsets = [2, 0], sizes = [1, 32], strides = [1, 1]} : vector<8x32xf32> to vector<1x32xf32>
    %222 = vector.extract_strided_slice %218 {offsets = [3, 0], sizes = [1, 32], strides = [1, 1]} : vector<8x32xf32> to vector<1x32xf32>
    %223 = vector.extract_strided_slice %218 {offsets = [4, 0], sizes = [1, 32], strides = [1, 1]} : vector<8x32xf32> to vector<1x32xf32>
    %224 = vector.extract_strided_slice %218 {offsets = [5, 0], sizes = [1, 32], strides = [1, 1]} : vector<8x32xf32> to vector<1x32xf32>
    %c2_94 = arith.constant 2 : index
    %c0_95 = arith.constant 0 : index
    %c0_96 = arith.constant 0 : index
    %225 = vector.load %arg5[%c2_94, %c0_95, %c0_96] : memref<4x32x96xf32, #tpu.memory_space<vmem>>, vector<1x32x96xf32>
    %226 = vector.shape_cast %225 : vector<1x32x96xf32> to vector<32x96xf32>
    %cst_97 = arith.constant dense<0.000000e+00> : vector<16x96xf32>
    %227 = tpu.matmul %216, %226, %cst_97 {dimension_numbers = #tpu.dot_dimension_numbers<[1], [0], [0], [1], [0, 0, 1, 1], [], []>} : vector<16x32xf32>, vector<32x96xf32>, vector<16x96xf32> -> vector<16x96xf32>
    %c2_98 = arith.constant 2 : index
    %c0_99 = arith.constant 0 : index
    %c0_100 = arith.constant 0 : index
    %228 = vector.load %arg6[%c2_98, %c0_99, %c0_100] : memref<4x1x96xf32, #tpu.memory_space<vmem>>, vector<1x1x96xf32>
    %229 = vector.shape_cast %228 : vector<1x1x96xf32> to vector<1x96xf32>
    %230 = vector.broadcast %229 : vector<1x96xf32> to vector<16x96xf32>
    %231 = arith.addf %227, %230 : vector<16x96xf32>
    %232 = vector.extract_strided_slice %231 {offsets = [0, 0], sizes = [16, 32], strides = [1, 1]} : vector<16x96xf32> to vector<16x32xf32>
    %cst_101 = arith.constant 5.000000e-01 : f32
    %233 = vector.broadcast %cst_101 : f32 to vector<16x32xf32>
    %234 = arith.mulf %232, %233 : vector<16x32xf32>
    %235 = vector.extract_strided_slice %231 {offsets = [0, 32], sizes = [16, 32], strides = [1, 1]} : vector<16x96xf32> to vector<16x32xf32>
    %236 = vector.extract_strided_slice %231 {offsets = [0, 64], sizes = [16, 32], strides = [1, 1]} : vector<16x96xf32> to vector<16x32xf32>
    %237 = tpu.concatenate %235, %235, %235, %235, %235, %235, %235, %235 in 0 : vector<16x32xf32>, vector<16x32xf32>, vector<16x32xf32>, vector<16x32xf32>, vector<16x32xf32>, vector<16x32xf32>, vector<16x32xf32>, vector<16x32xf32> -> vector<128x32xf32>
    %238 = arith.mulf %237, %11 : vector<128x32xf32>
    %239 = tpu.concatenate %236, %236, %236, %236, %236, %236, %236, %236 in 0 : vector<16x32xf32>, vector<16x32xf32>, vector<16x32xf32>, vector<16x32xf32>, vector<16x32xf32>, vector<16x32xf32>, vector<16x32xf32>, vector<16x32xf32> -> vector<128x32xf32>
    %240 = arith.mulf %239, %11 : vector<128x32xf32>
    %cst_102 = arith.constant dense<0.000000e+00> : vector<16x128xf32>
    %241 = tpu.matmul %234, %238, %cst_102 {dimension_numbers = #tpu.dot_dimension_numbers<[1], [1], [0], [0], [0, 0, 1, 0], [], []>} : vector<16x32xf32>, vector<128x32xf32>, vector<16x128xf32> -> vector<16x128xf32>
    %242 = arith.addf %241, %12 : vector<16x128xf32>
    %cst_103 = arith.constant dense<0xFF800000> : vector<16xf32>
    %243 = vector.multi_reduction <maximumf>, %242, %cst_103 [1] : vector<16x128xf32> to vector<16xf32>
    %244 = vector.shape_cast %243 : vector<16xf32> to vector<16x1xf32>
    %245 = vector.broadcast %244 : vector<16x1xf32> to vector<16x128xf32>
    %246 = arith.subf %242, %245 : vector<16x128xf32>
    %247 = math.exp %246 : vector<16x128xf32>
    %cst_104 = arith.constant dense<0.000000e+00> : vector<16x32xf32>
    %248 = tpu.matmul %247, %240, %cst_104 {dimension_numbers = #tpu.dot_dimension_numbers<[1], [0], [0], [1], [0, 0, 1, 1], [], []>} : vector<16x128xf32>, vector<128x32xf32>, vector<16x32xf32> -> vector<16x32xf32>
    %cst_105 = arith.constant dense<0.000000e+00> : vector<16x32xf32>
    %249 = tpu.matmul %247, %11, %cst_105 {dimension_numbers = #tpu.dot_dimension_numbers<[1], [0], [0], [1], [0, 0, 1, 1], [], []>} : vector<16x128xf32>, vector<128x32xf32>, vector<16x32xf32> -> vector<16x32xf32>
    %cst_106 = arith.constant 9.99999968E-21 : f32
    %250 = vector.broadcast %cst_106 : f32 to vector<16x32xf32>
    %251 = arith.maximumf %249, %250 : vector<16x32xf32>
    %252 = tpu.reciprocal %251 {approx = true} : vector<16x32xf32> -> vector<16x32xf32>
    %253 = arith.mulf %248, %252 : vector<16x32xf32>
    %c2_107 = arith.constant 2 : index
    %c0_108 = arith.constant 0 : index
    %c0_109 = arith.constant 0 : index
    %254 = vector.load %arg7[%c2_107, %c0_108, %c0_109] : memref<4x32x32xf32, #tpu.memory_space<vmem>>, vector<1x32x32xf32>
    %255 = vector.shape_cast %254 : vector<1x32x32xf32> to vector<32x32xf32>
    %cst_110 = arith.constant dense<0.000000e+00> : vector<16x32xf32>
    %256 = tpu.matmul %253, %255, %cst_110 {dimension_numbers = #tpu.dot_dimension_numbers<[1], [0], [0], [1], [0, 0, 1, 1], [], []>} : vector<16x32xf32>, vector<32x32xf32>, vector<16x32xf32> -> vector<16x32xf32>
    %257 = vector.broadcast %219 : vector<1x32xf32> to vector<16x32xf32>
    %258 = arith.addf %256, %257 : vector<16x32xf32>
    %259 = arith.addf %216, %258 : vector<16x32xf32>
    %cst_111 = arith.constant dense<0.000000e+00> : vector<16xf32>
    %260 = vector.multi_reduction <add>, %259, %cst_111 [1] : vector<16x32xf32> to vector<16xf32>
    %261 = vector.shape_cast %260 : vector<16xf32> to vector<16x1xf32>
    %cst_112 = arith.constant 3.200000e+01 : f32
    %262 = vector.broadcast %cst_112 : f32 to vector<16x1xf32>
    %263 = arith.divf %261, %262 : vector<16x1xf32>
    %264 = vector.broadcast %263 : vector<16x1xf32> to vector<16x32xf32>
    %265 = arith.subf %259, %264 : vector<16x32xf32>
    %266 = arith.mulf %265, %265 : vector<16x32xf32>
    %cst_113 = arith.constant dense<0.000000e+00> : vector<16xf32>
    %267 = vector.multi_reduction <add>, %266, %cst_113 [1] : vector<16x32xf32> to vector<16xf32>
    %268 = vector.shape_cast %267 : vector<16xf32> to vector<16x1xf32>
    %cst_114 = arith.constant 3.200000e+01 : f32
    %269 = vector.broadcast %cst_114 : f32 to vector<16x1xf32>
    %270 = arith.divf %268, %269 : vector<16x1xf32>
    %271 = vector.broadcast %263 : vector<16x1xf32> to vector<16x32xf32>
    %272 = arith.subf %259, %271 : vector<16x32xf32>
    %cst_115 = arith.constant 9.99999974E-6 : f32
    %273 = vector.broadcast %cst_115 : f32 to vector<16x1xf32>
    %274 = arith.addf %270, %273 : vector<16x1xf32>
    %275 = math.rsqrt %274 : vector<16x1xf32>
    %276 = vector.broadcast %275 : vector<16x1xf32> to vector<16x32xf32>
    %277 = arith.mulf %272, %276 : vector<16x32xf32>
    %278 = vector.broadcast %221 : vector<1x32xf32> to vector<16x32xf32>
    %279 = arith.mulf %277, %278 : vector<16x32xf32>
    %280 = vector.broadcast %222 : vector<1x32xf32> to vector<16x32xf32>
    %281 = arith.addf %279, %280 : vector<16x32xf32>
    %c2_116 = arith.constant 2 : index
    %c0_117 = arith.constant 0 : index
    %c0_118 = arith.constant 0 : index
    %282 = vector.load %arg8[%c2_116, %c0_117, %c0_118] : memref<4x32x64xf32, #tpu.memory_space<vmem>>, vector<1x32x64xf32>
    %283 = vector.shape_cast %282 : vector<1x32x64xf32> to vector<32x64xf32>
    %cst_119 = arith.constant dense<0.000000e+00> : vector<16x64xf32>
    %284 = tpu.matmul %281, %283, %cst_119 {dimension_numbers = #tpu.dot_dimension_numbers<[1], [0], [0], [1], [0, 0, 1, 1], [], []>} : vector<16x32xf32>, vector<32x64xf32>, vector<16x64xf32> -> vector<16x64xf32>
    %c2_120 = arith.constant 2 : index
    %c0_121 = arith.constant 0 : index
    %c0_122 = arith.constant 0 : index
    %285 = vector.load %arg9[%c2_120, %c0_121, %c0_122] : memref<4x1x64xf32, #tpu.memory_space<vmem>>, vector<1x1x64xf32>
    %286 = vector.shape_cast %285 : vector<1x1x64xf32> to vector<1x64xf32>
    %287 = vector.broadcast %286 : vector<1x64xf32> to vector<16x64xf32>
    %288 = arith.addf %284, %287 : vector<16x64xf32>
    %cst_123 = arith.constant 0.000000e+00 : f32
    %289 = vector.broadcast %cst_123 : f32 to vector<16x64xf32>
    %290 = arith.maximumf %288, %289 : vector<16x64xf32>
    %c2_124 = arith.constant 2 : index
    %c0_125 = arith.constant 0 : index
    %c0_126 = arith.constant 0 : index
    %291 = vector.load %arg10[%c2_124, %c0_125, %c0_126] : memref<4x64x32xf32, #tpu.memory_space<vmem>>, vector<1x64x32xf32>
    %292 = vector.shape_cast %291 : vector<1x64x32xf32> to vector<64x32xf32>
    %cst_127 = arith.constant dense<0.000000e+00> : vector<16x32xf32>
    %293 = tpu.matmul %290, %292, %cst_127 {dimension_numbers = #tpu.dot_dimension_numbers<[1], [0], [0], [1], [0, 0, 1, 1], [], []>} : vector<16x64xf32>, vector<64x32xf32>, vector<16x32xf32> -> vector<16x32xf32>
    %294 = vector.broadcast %220 : vector<1x32xf32> to vector<16x32xf32>
    %295 = arith.addf %293, %294 : vector<16x32xf32>
    %296 = arith.addf %281, %295 : vector<16x32xf32>
    %cst_128 = arith.constant dense<0.000000e+00> : vector<16xf32>
    %297 = vector.multi_reduction <add>, %296, %cst_128 [1] : vector<16x32xf32> to vector<16xf32>
    %298 = vector.shape_cast %297 : vector<16xf32> to vector<16x1xf32>
    %cst_129 = arith.constant 3.200000e+01 : f32
    %299 = vector.broadcast %cst_129 : f32 to vector<16x1xf32>
    %300 = arith.divf %298, %299 : vector<16x1xf32>
    %301 = vector.broadcast %300 : vector<16x1xf32> to vector<16x32xf32>
    %302 = arith.subf %296, %301 : vector<16x32xf32>
    %303 = arith.mulf %302, %302 : vector<16x32xf32>
    %cst_130 = arith.constant dense<0.000000e+00> : vector<16xf32>
    %304 = vector.multi_reduction <add>, %303, %cst_130 [1] : vector<16x32xf32> to vector<16xf32>
    %305 = vector.shape_cast %304 : vector<16xf32> to vector<16x1xf32>
    %cst_131 = arith.constant 3.200000e+01 : f32
    %306 = vector.broadcast %cst_131 : f32 to vector<16x1xf32>
    %307 = arith.divf %305, %306 : vector<16x1xf32>
    %308 = vector.broadcast %300 : vector<16x1xf32> to vector<16x32xf32>
    %309 = arith.subf %296, %308 : vector<16x32xf32>
    %cst_132 = arith.constant 9.99999974E-6 : f32
    %310 = vector.broadcast %cst_132 : f32 to vector<16x1xf32>
    %311 = arith.addf %307, %310 : vector<16x1xf32>
    %312 = math.rsqrt %311 : vector<16x1xf32>
    %313 = vector.broadcast %312 : vector<16x1xf32> to vector<16x32xf32>
    %314 = arith.mulf %309, %313 : vector<16x32xf32>
    %315 = vector.broadcast %223 : vector<1x32xf32> to vector<16x32xf32>
    %316 = arith.mulf %314, %315 : vector<16x32xf32>
    %317 = vector.broadcast %224 : vector<1x32xf32> to vector<16x32xf32>
    %318 = arith.addf %316, %317 : vector<16x32xf32>
    %c3 = arith.constant 3 : index
    %c0_133 = arith.constant 0 : index
    %c0_134 = arith.constant 0 : index
    %319 = vector.load %arg11[%c3, %c0_133, %c0_134] : memref<4x8x32xf32, #tpu.memory_space<vmem>>, vector<1x8x32xf32>
    %320 = vector.shape_cast %319 : vector<1x8x32xf32> to vector<8x32xf32>
    %321 = vector.extract_strided_slice %320 {offsets = [0, 0], sizes = [1, 32], strides = [1, 1]} : vector<8x32xf32> to vector<1x32xf32>
    %322 = vector.extract_strided_slice %320 {offsets = [1, 0], sizes = [1, 32], strides = [1, 1]} : vector<8x32xf32> to vector<1x32xf32>
    %323 = vector.extract_strided_slice %320 {offsets = [2, 0], sizes = [1, 32], strides = [1, 1]} : vector<8x32xf32> to vector<1x32xf32>
    %324 = vector.extract_strided_slice %320 {offsets = [3, 0], sizes = [1, 32], strides = [1, 1]} : vector<8x32xf32> to vector<1x32xf32>
    %325 = vector.extract_strided_slice %320 {offsets = [4, 0], sizes = [1, 32], strides = [1, 1]} : vector<8x32xf32> to vector<1x32xf32>
    %326 = vector.extract_strided_slice %320 {offsets = [5, 0], sizes = [1, 32], strides = [1, 1]} : vector<8x32xf32> to vector<1x32xf32>
    %c3_135 = arith.constant 3 : index
    %c0_136 = arith.constant 0 : index
    %c0_137 = arith.constant 0 : index
    %327 = vector.load %arg5[%c3_135, %c0_136, %c0_137] : memref<4x32x96xf32, #tpu.memory_space<vmem>>, vector<1x32x96xf32>
    %328 = vector.shape_cast %327 : vector<1x32x96xf32> to vector<32x96xf32>
    %cst_138 = arith.constant dense<0.000000e+00> : vector<16x96xf32>
    %329 = tpu.matmul %318, %328, %cst_138 {dimension_numbers = #tpu.dot_dimension_numbers<[1], [0], [0], [1], [0, 0, 1, 1], [], []>} : vector<16x32xf32>, vector<32x96xf32>, vector<16x96xf32> -> vector<16x96xf32>
    %c3_139 = arith.constant 3 : index
    %c0_140 = arith.constant 0 : index
    %c0_141 = arith.constant 0 : index
    %330 = vector.load %arg6[%c3_139, %c0_140, %c0_141] : memref<4x1x96xf32, #tpu.memory_space<vmem>>, vector<1x1x96xf32>
    %331 = vector.shape_cast %330 : vector<1x1x96xf32> to vector<1x96xf32>
    %332 = vector.broadcast %331 : vector<1x96xf32> to vector<16x96xf32>
    %333 = arith.addf %329, %332 : vector<16x96xf32>
    %334 = vector.extract_strided_slice %333 {offsets = [0, 0], sizes = [16, 32], strides = [1, 1]} : vector<16x96xf32> to vector<16x32xf32>
    %cst_142 = arith.constant 5.000000e-01 : f32
    %335 = vector.broadcast %cst_142 : f32 to vector<16x32xf32>
    %336 = arith.mulf %334, %335 : vector<16x32xf32>
    %337 = vector.extract_strided_slice %333 {offsets = [0, 32], sizes = [16, 32], strides = [1, 1]} : vector<16x96xf32> to vector<16x32xf32>
    %338 = vector.extract_strided_slice %333 {offsets = [0, 64], sizes = [16, 32], strides = [1, 1]} : vector<16x96xf32> to vector<16x32xf32>
    %339 = tpu.concatenate %337, %337, %337, %337, %337, %337, %337, %337 in 0 : vector<16x32xf32>, vector<16x32xf32>, vector<16x32xf32>, vector<16x32xf32>, vector<16x32xf32>, vector<16x32xf32>, vector<16x32xf32>, vector<16x32xf32> -> vector<128x32xf32>
    %340 = arith.mulf %339, %11 : vector<128x32xf32>
    %341 = tpu.concatenate %338, %338, %338, %338, %338, %338, %338, %338 in 0 : vector<16x32xf32>, vector<16x32xf32>, vector<16x32xf32>, vector<16x32xf32>, vector<16x32xf32>, vector<16x32xf32>, vector<16x32xf32>, vector<16x32xf32> -> vector<128x32xf32>
    %342 = arith.mulf %341, %11 : vector<128x32xf32>
    %cst_143 = arith.constant dense<0.000000e+00> : vector<16x128xf32>
    %343 = tpu.matmul %336, %340, %cst_143 {dimension_numbers = #tpu.dot_dimension_numbers<[1], [1], [0], [0], [0, 0, 1, 0], [], []>} : vector<16x32xf32>, vector<128x32xf32>, vector<16x128xf32> -> vector<16x128xf32>
    %344 = arith.addf %343, %12 : vector<16x128xf32>
    %cst_144 = arith.constant dense<0xFF800000> : vector<16xf32>
    %345 = vector.multi_reduction <maximumf>, %344, %cst_144 [1] : vector<16x128xf32> to vector<16xf32>
    %346 = vector.shape_cast %345 : vector<16xf32> to vector<16x1xf32>
    %347 = vector.broadcast %346 : vector<16x1xf32> to vector<16x128xf32>
    %348 = arith.subf %344, %347 : vector<16x128xf32>
    %349 = math.exp %348 : vector<16x128xf32>
    %cst_145 = arith.constant dense<0.000000e+00> : vector<16x32xf32>
    %350 = tpu.matmul %349, %342, %cst_145 {dimension_numbers = #tpu.dot_dimension_numbers<[1], [0], [0], [1], [0, 0, 1, 1], [], []>} : vector<16x128xf32>, vector<128x32xf32>, vector<16x32xf32> -> vector<16x32xf32>
    %cst_146 = arith.constant dense<0.000000e+00> : vector<16x32xf32>
    %351 = tpu.matmul %349, %11, %cst_146 {dimension_numbers = #tpu.dot_dimension_numbers<[1], [0], [0], [1], [0, 0, 1, 1], [], []>} : vector<16x128xf32>, vector<128x32xf32>, vector<16x32xf32> -> vector<16x32xf32>
    %cst_147 = arith.constant 9.99999968E-21 : f32
    %352 = vector.broadcast %cst_147 : f32 to vector<16x32xf32>
    %353 = arith.maximumf %351, %352 : vector<16x32xf32>
    %354 = tpu.reciprocal %353 {approx = true} : vector<16x32xf32> -> vector<16x32xf32>
    %355 = arith.mulf %350, %354 : vector<16x32xf32>
    %c3_148 = arith.constant 3 : index
    %c0_149 = arith.constant 0 : index
    %c0_150 = arith.constant 0 : index
    %356 = vector.load %arg7[%c3_148, %c0_149, %c0_150] : memref<4x32x32xf32, #tpu.memory_space<vmem>>, vector<1x32x32xf32>
    %357 = vector.shape_cast %356 : vector<1x32x32xf32> to vector<32x32xf32>
    %cst_151 = arith.constant dense<0.000000e+00> : vector<16x32xf32>
    %358 = tpu.matmul %355, %357, %cst_151 {dimension_numbers = #tpu.dot_dimension_numbers<[1], [0], [0], [1], [0, 0, 1, 1], [], []>} : vector<16x32xf32>, vector<32x32xf32>, vector<16x32xf32> -> vector<16x32xf32>
    %359 = vector.broadcast %321 : vector<1x32xf32> to vector<16x32xf32>
    %360 = arith.addf %358, %359 : vector<16x32xf32>
    %361 = arith.addf %318, %360 : vector<16x32xf32>
    %cst_152 = arith.constant dense<0.000000e+00> : vector<16xf32>
    %362 = vector.multi_reduction <add>, %361, %cst_152 [1] : vector<16x32xf32> to vector<16xf32>
    %363 = vector.shape_cast %362 : vector<16xf32> to vector<16x1xf32>
    %cst_153 = arith.constant 3.200000e+01 : f32
    %364 = vector.broadcast %cst_153 : f32 to vector<16x1xf32>
    %365 = arith.divf %363, %364 : vector<16x1xf32>
    %366 = vector.broadcast %365 : vector<16x1xf32> to vector<16x32xf32>
    %367 = arith.subf %361, %366 : vector<16x32xf32>
    %368 = arith.mulf %367, %367 : vector<16x32xf32>
    %cst_154 = arith.constant dense<0.000000e+00> : vector<16xf32>
    %369 = vector.multi_reduction <add>, %368, %cst_154 [1] : vector<16x32xf32> to vector<16xf32>
    %370 = vector.shape_cast %369 : vector<16xf32> to vector<16x1xf32>
    %cst_155 = arith.constant 3.200000e+01 : f32
    %371 = vector.broadcast %cst_155 : f32 to vector<16x1xf32>
    %372 = arith.divf %370, %371 : vector<16x1xf32>
    %373 = vector.broadcast %365 : vector<16x1xf32> to vector<16x32xf32>
    %374 = arith.subf %361, %373 : vector<16x32xf32>
    %cst_156 = arith.constant 9.99999974E-6 : f32
    %375 = vector.broadcast %cst_156 : f32 to vector<16x1xf32>
    %376 = arith.addf %372, %375 : vector<16x1xf32>
    %377 = math.rsqrt %376 : vector<16x1xf32>
    %378 = vector.broadcast %377 : vector<16x1xf32> to vector<16x32xf32>
    %379 = arith.mulf %374, %378 : vector<16x32xf32>
    %380 = vector.broadcast %323 : vector<1x32xf32> to vector<16x32xf32>
    %381 = arith.mulf %379, %380 : vector<16x32xf32>
    %382 = vector.broadcast %324 : vector<1x32xf32> to vector<16x32xf32>
    %383 = arith.addf %381, %382 : vector<16x32xf32>
    %c3_157 = arith.constant 3 : index
    %c0_158 = arith.constant 0 : index
    %c0_159 = arith.constant 0 : index
    %384 = vector.load %arg8[%c3_157, %c0_158, %c0_159] : memref<4x32x64xf32, #tpu.memory_space<vmem>>, vector<1x32x64xf32>
    %385 = vector.shape_cast %384 : vector<1x32x64xf32> to vector<32x64xf32>
    %cst_160 = arith.constant dense<0.000000e+00> : vector<16x64xf32>
    %386 = tpu.matmul %383, %385, %cst_160 {dimension_numbers = #tpu.dot_dimension_numbers<[1], [0], [0], [1], [0, 0, 1, 1], [], []>} : vector<16x32xf32>, vector<32x64xf32>, vector<16x64xf32> -> vector<16x64xf32>
    %c3_161 = arith.constant 3 : index
    %c0_162 = arith.constant 0 : index
    %c0_163 = arith.constant 0 : index
    %387 = vector.load %arg9[%c3_161, %c0_162, %c0_163] : memref<4x1x64xf32, #tpu.memory_space<vmem>>, vector<1x1x64xf32>
    %388 = vector.shape_cast %387 : vector<1x1x64xf32> to vector<1x64xf32>
    %389 = vector.broadcast %388 : vector<1x64xf32> to vector<16x64xf32>
    %390 = arith.addf %386, %389 : vector<16x64xf32>
    %cst_164 = arith.constant 0.000000e+00 : f32
    %391 = vector.broadcast %cst_164 : f32 to vector<16x64xf32>
    %392 = arith.maximumf %390, %391 : vector<16x64xf32>
    %c3_165 = arith.constant 3 : index
    %c0_166 = arith.constant 0 : index
    %c0_167 = arith.constant 0 : index
    %393 = vector.load %arg10[%c3_165, %c0_166, %c0_167] : memref<4x64x32xf32, #tpu.memory_space<vmem>>, vector<1x64x32xf32>
    %394 = vector.shape_cast %393 : vector<1x64x32xf32> to vector<64x32xf32>
    %cst_168 = arith.constant dense<0.000000e+00> : vector<16x32xf32>
    %395 = tpu.matmul %392, %394, %cst_168 {dimension_numbers = #tpu.dot_dimension_numbers<[1], [0], [0], [1], [0, 0, 1, 1], [], []>} : vector<16x64xf32>, vector<64x32xf32>, vector<16x32xf32> -> vector<16x32xf32>
    %396 = vector.broadcast %322 : vector<1x32xf32> to vector<16x32xf32>
    %397 = arith.addf %395, %396 : vector<16x32xf32>
    %398 = arith.addf %383, %397 : vector<16x32xf32>
    %cst_169 = arith.constant dense<0.000000e+00> : vector<16xf32>
    %399 = vector.multi_reduction <add>, %398, %cst_169 [1] : vector<16x32xf32> to vector<16xf32>
    %400 = vector.shape_cast %399 : vector<16xf32> to vector<16x1xf32>
    %cst_170 = arith.constant 3.200000e+01 : f32
    %401 = vector.broadcast %cst_170 : f32 to vector<16x1xf32>
    %402 = arith.divf %400, %401 : vector<16x1xf32>
    %403 = vector.broadcast %402 : vector<16x1xf32> to vector<16x32xf32>
    %404 = arith.subf %398, %403 : vector<16x32xf32>
    %405 = arith.mulf %404, %404 : vector<16x32xf32>
    %cst_171 = arith.constant dense<0.000000e+00> : vector<16xf32>
    %406 = vector.multi_reduction <add>, %405, %cst_171 [1] : vector<16x32xf32> to vector<16xf32>
    %407 = vector.shape_cast %406 : vector<16xf32> to vector<16x1xf32>
    %cst_172 = arith.constant 3.200000e+01 : f32
    %408 = vector.broadcast %cst_172 : f32 to vector<16x1xf32>
    %409 = arith.divf %407, %408 : vector<16x1xf32>
    %410 = vector.broadcast %402 : vector<16x1xf32> to vector<16x32xf32>
    %411 = arith.subf %398, %410 : vector<16x32xf32>
    %cst_173 = arith.constant 9.99999974E-6 : f32
    %412 = vector.broadcast %cst_173 : f32 to vector<16x1xf32>
    %413 = arith.addf %409, %412 : vector<16x1xf32>
    %414 = math.rsqrt %413 : vector<16x1xf32>
    %415 = vector.broadcast %414 : vector<16x1xf32> to vector<16x32xf32>
    %416 = arith.mulf %411, %415 : vector<16x32xf32>
    %417 = vector.broadcast %325 : vector<1x32xf32> to vector<16x32xf32>
    %418 = arith.mulf %416, %417 : vector<16x32xf32>
    %419 = vector.broadcast %326 : vector<1x32xf32> to vector<16x32xf32>
    %420 = arith.addf %418, %419 : vector<16x32xf32>
    %c0_174 = arith.constant 0 : index
    %c0_175 = arith.constant 0 : index
    %421 = vector.load %arg12[%c0_174, %c0_175] : memref<32x128xf32, #tpu.memory_space<vmem>>, vector<32x128xf32>
    %cst_176 = arith.constant dense<0.000000e+00> : vector<16x128xf32>
    %422 = tpu.matmul %420, %421, %cst_176 {dimension_numbers = #tpu.dot_dimension_numbers<[1], [0], [0], [1], [0, 0, 1, 1], [], []>} : vector<16x32xf32>, vector<32x128xf32>, vector<16x128xf32> -> vector<16x128xf32>
    %c0_177 = arith.constant 0 : index
    %c0_178 = arith.constant 0 : index
    %423 = vector.load %arg13[%c0_177, %c0_178] : memref<1x128xf32, #tpu.memory_space<vmem>>, vector<1x128xf32>
    %424 = vector.broadcast %423 : vector<1x128xf32> to vector<16x128xf32>
    %425 = arith.addf %422, %424 : vector<16x128xf32>
    %c0_179 = arith.constant 0 : index
    %c0_180 = arith.constant 0 : index
    %426 = vector.load %arg14[%c0_179, %c0_180] : memref<16x128xf32, #tpu.memory_space<vmem>>, vector<16x128xf32>
    tpu.vector_store %arg14[%c0_179, %c0_180], %425 {strides = array<i32>} : memref<16x128xf32, #tpu.memory_space<vmem>>, vector<16x128xf32>,
    return
  }
}

</mosaic_0001>

<llo_original>
// kernel: transformer_forward.1
$region0: #{transformer_forward.1}
  #allocation0 [shape = 'u32[]', space=smem, size = 0x4, offset = 0x4, fixed_abs, tag = 'smem constant byte address 0x4 - core index']
  #allocation1 [shape = 'u32[144,128]{1,0:T(1,128)}', space=vmem, size = 0x12000, scoped, tag = 'internal scratch']
  %s0 = inlined_call_operand.vmem [shape: s32[16,1], index: 0, kind: input, shape index: {}]
  %s1 = inlined_call_operand.vmem [shape: f32[129,32], index: 1, kind: input, shape index: {}]
  %s2 = inlined_call_operand.vmem [shape: f32[8,32], index: 2, kind: input, shape index: {}]
  %s3 = inlined_call_operand.vmem [shape: f32[128,32], index: 3, kind: input, shape index: {}]
  %s4 = inlined_call_operand.vmem [shape: f32[16,128], index: 4, kind: input, shape index: {}]
  %s5 = inlined_call_operand.vmem [shape: f32[4,32,96], index: 5, kind: input, shape index: {}]
  %s6 = inlined_call_operand.hbm [shape: f32[4,1,96], index: 6, kind: input, shape index: {}]
  %s7 = inlined_call_operand.vmem [shape: f32[4,32,32], index: 7, kind: input, shape index: {}]
  %s8 = inlined_call_operand.vmem [shape: f32[4,32,64], index: 8, kind: input, shape index: {}]
  %s9 = inlined_call_operand.hbm [shape: f32[4,1,64], index: 9, kind: input, shape index: {}]
  %s10 = inlined_call_operand.vmem [shape: f32[4,64,32], index: 10, kind: input, shape index: {}]
  %s11 = inlined_call_operand.vmem [shape: f32[4,8,32], index: 11, kind: input, shape index: {}]
  %s12 = inlined_call_operand.hbm [shape: f32[32,128], index: 12, kind: input, shape index: {}]
  %s13 = inlined_call_operand.vmem [shape: f32[1,128], index: 13, kind: input, shape index: {}]
  %s14 = inlined_call_operand.hbm [shape: f32[16,128], index: 14, kind: output, shape index: {}]
  %s15 = sld [smem:[#allocation0]]
  $region78: #{transformer_forward.1} parent=0
    _
  %s17 = ssub.s32 1, %s15
  %s18 = scalar_select 0, %s17, %s15
  $region1: #{transformer_forward.1} parent=0
    #allocation2 [shape = 'u8[2048]{0}', space=vmem, size = 0x800, scoped, tag = 'input window, operand 6, single buffered']
    #allocation3 [shape = 's32[1]{0}', space=sflag, size = 0x4, scoped, tag = 'scoped memory for transformer_forward.1']
    #allocation4 [shape = 's32[1]{0}', space=sflag, size = 0x4, scoped, tag = 'scoped memory for transformer_forward.1']
    #allocation5 [shape = 'u8[2048]{0}', space=vmem, size = 0x800, scoped, tag = 'input window, operand 9, single buffered']
    #allocation6 [shape = 's32[1]{0}', space=sflag, size = 0x4, scoped, tag = 'scoped memory for transformer_forward.1']
    #allocation7 [shape = 'u8[16384]{0}', space=vmem, size = 0x4000, scoped, tag = 'input window, operand 12, single buffered']
    #allocation8 [shape = 'u8[8192]{0}', space=vmem, size = 0x2000, scoped, tag = 'output window, operand 0, single buffered']
    %19 = vsyncpa [#allocation3], 0
    %20 = vsyncpa [#allocation6], 0
    %21 = vsyncpa [#allocation4], 0
    // Predicated region
    $region2: #{transformer_forward.1} parent=1 // pred_check
      _
    $region3: #{transformer_forward.1} parent=1 // pred_check_branch
      %23 = sbr.rel (0) target = $region5
    $region4: #{transformer_forward.1} parent=1 // pred_region
      _
    $region5: #{transformer_forward.1} parent=1 // pred_fallthru
      _
    // Predicated region
    $region6: #{transformer_forward.1} parent=1 // pred_check
      _
    $region7: #{transformer_forward.1} parent=1 // pred_check_branch
      %25 = sbr.rel (0) target = $region9
    $region8: #{transformer_forward.1} parent=1 // pred_region
      _
    $region9: #{transformer_forward.1} parent=1 // pred_fallthru
      _
    // Predicated region
    $region10: #{transformer_forward.1} parent=1 // pred_check
      _
    $region11: #{transformer_forward.1} parent=1 // pred_check_branch
      %27 = sbr.rel (0) target = $region13
    $region12: #{transformer_forward.1} parent=1 // pred_region
      _
    $region13: #{transformer_forward.1} parent=1 // pred_fallthru
      _
    // Predicated region
    $region14: #{transformer_forward.1} parent=1 // pred_check
      _
    $region15: #{transformer_forward.1} parent=1 // pred_check_branch
      %29 = sbr.rel (0) target = $region17
    $region16: #{transformer_forward.1} parent=1 // pred_region
      _
    $region17: #{transformer_forward.1} parent=1 // pred_fallthru
      _
    // Predicated region
    $region18: #{transformer_forward.1} parent=1 // pred_check
      _
    $region19: #{transformer_forward.1} parent=1 // pred_check_branch
      %31 = sbr.rel (0) target = $region21
    $region20: #{transformer_forward.1} parent=1 // pred_region
      _
    $region21: #{transformer_forward.1} parent=1 // pred_fallthru
      _
    // Predicated region
    $region22: #{transformer_forward.1} parent=1 // pred_check
      _
    $region23: #{transformer_forward.1} parent=1 // pred_check_branch
      %33 = sbr.rel (0) target = $region25
    $region24: #{transformer_forward.1} parent=1 // pred_region
      _
    $region25: #{transformer_forward.1} parent=1 // pred_fallthru
      _
    // Predicated region
    $region26: #{transformer_forward.1} parent=1 // pred_check
      _
    $region27: #{transformer_forward.1} parent=1 // pred_check_branch
      %35 = sbr.rel (0) target = $region29
    $region28: #{transformer_forward.1} parent=1 // pred_region
      %s37 = ssub.s32 64, 64
      %38 = vsyncadd [#allocation3], %s37
      %s39 = sshll.u32 [#allocation2], 4
      %s40 = int_to_ptr.vmem [resolvable:$true] %s39
      %45 = dma.hbm_to_vmem [thread:$0]  %s6, 64, %s40, [#allocation3], 16, 16, 1
    $region29: #{transformer_forward.1} parent=1 // pred_fallthru
      _
    // Predicated region
    $region30: #{transformer_forward.1} parent=1 // pred_check
      _
    $region31: #{transformer_forward.1} parent=1 // pred_check_branch
      %47 = sbr.rel (0) target = $region33
    $region32: #{transformer_forward.1} parent=1 // pred_region
      _
    $region33: #{transformer_forward.1} parent=1 // pred_fallthru
      _
    // Predicated region
    $region34: #{transformer_forward.1} parent=1 // pred_check
      _
    $region35: #{transformer_forward.1} parent=1 // pred_check_branch
      %49 = sbr.rel (0) target = $region37
    $region36: #{transformer_forward.1} parent=1 // pred_region
      _
    $region37: #{transformer_forward.1} parent=1 // pred_fallthru
      _
    // Predicated region
    $region38: #{transformer_forward.1} parent=1 // pred_check
      _
    $region39: #{transformer_forward.1} parent=1 // pred_check_branch
      %51 = sbr.rel (0) target = $region41
    $region40: #{transformer_forward.1} parent=1 // pred_region
      %s53 = ssub.s32 64, 64
      %54 = vsyncadd [#allocation6], %s53
      %s55 = sshll.u32 [#allocation5], 4
      %s56 = int_to_ptr.vmem [resolvable:$true] %s55
      %61 = dma.hbm_to_vmem [thread:$0]  %s9, 64, %s56, [#allocation6], 16, 16, 1
    $region41: #{transformer_forward.1} parent=1 // pred_fallthru
      _
    // Predicated region
    $region42: #{transformer_forward.1} parent=1 // pred_check
      _
    $region43: #{transformer_forward.1} parent=1 // pred_check_branch
      %63 = sbr.rel (0) target = $region45
    $region44: #{transformer_forward.1} parent=1 // pred_region
      _
    $region45: #{transformer_forward.1} parent=1 // pred_fallthru
      _
    // Predicated region
    $region46: #{transformer_forward.1} parent=1 // pred_check
      _
    $region47: #{transformer_forward.1} parent=1 // pred_check_branch
      %65 = sbr.rel (0) target = $region49
    $region48: #{transformer_forward.1} parent=1 // pred_region
      _
    $region49: #{transformer_forward.1} parent=1 // pred_fallthru
      _
    // Predicated region
    $region50: #{transformer_forward.1} parent=1 // pred_check
      _
    $region51: #{transformer_forward.1} parent=1 // pred_check_branch
      %67 = sbr.rel (0) target = $region53
    $region52: #{transformer_forward.1} parent=1 // pred_region
      %s69 = ssub.s32 512, 512
      %70 = vsyncadd [#allocation6], %s69
      %s71 = sshll.u32 [#allocation7], 4
      %s72 = int_to_ptr.vmem [resolvable:$true] %s71
      %77 = dma.hbm_to_vmem [thread:$0]  %s12, 512, %s72, [#allocation6], 128, 128, 8
    $region53: #{transformer_forward.1} parent=1 // pred_fallthru
      _
    // Predicated region
    $region54: #{transformer_forward.1} parent=1 // pred_check
      _
    $region55: #{transformer_forward.1} parent=1 // pred_check_branch
      %79 = sbr.rel (0) target = $region57
    $region56: #{transformer_forward.1} parent=1 // pred_region
      _
    $region57: #{transformer_forward.1} parent=1 // pred_fallthru
      _
    // Predicated region
    $region58: #{transformer_forward.1} parent=1 // pred_check
      _
    $region59: #{transformer_forward.1} parent=1 // pred_check_branch
      %81 = sbr.rel (0) target = $region61
    $region60: #{transformer_forward.1} parent=1 // pred_region
      %82 = dma.done [#allocation3], 64
    $region61: #{transformer_forward.1} parent=1 // pred_fallthru
      _
    // Predicated region
    $region62: #{transformer_forward.1} parent=1 // pred_check
      _
    $region63: #{transformer_forward.1} parent=1 // pred_check_branch
      %84 = sbr.rel (0) target = $region65
    $region64: #{transformer_forward.1} parent=1 // pred_region
      %85 = dma.done [#allocation6], 64
    $region65: #{transformer_forward.1} parent=1 // pred_fallthru
      _
    // Predicated region
    $region66: #{transformer_forward.1} parent=1 // pred_check
      _
    $region67: #{transformer_forward.1} parent=1 // pred_check_branch
      %87 = sbr.rel (0) target = $region69
    $region68: #{transformer_forward.1} parent=1 // pred_region
      %88 = dma.done [#allocation6], 512
    $region69: #{transformer_forward.1} parent=1 // pred_fallthru
      _
    %v89 = vld [vmem:[%s0] sm:$0xff]
    %v90 = vld [vmem:[%s0 + $0x8] sm:$0xff]
    %v91 = vlaneseq
    %v92 = vand.u32 %v91, 127
    %v93 = vadd.s32 %v92, 128
    %94 = vset.pattern.permute.xlu0 0
    %95 = vperm.xlu0 %94, %v89
    %v96 = vpop.permute.xlu0 %95
    %97 = vset.pattern.permute.xlu0 0
    %98 = vperm.xlu0 %97, %v90
    %v99 = vpop.permute.xlu0 %98
    %vm100 = vcmp.eq.s32.totalorder %v92, %v96
    %vm101 = vcmp.eq.s32.totalorder %v93, %v96
    %vm102 = vcmp.eq.s32.totalorder %v92, %v99
    %vm103 = vcmp.eq.s32.totalorder %v93, %v99
    %v104 = vsel %vm100, 1, 0
    %v105 = vsel %vm101, 1, 0
    %v106 = vsel %vm102, 1, 0
    %v107 = vsel %vm103, 1, 0
    %v108 = vcvt.s32.f32 %v104
    %v109 = vcvt.s32.f32 %v105
    %v110 = vcvt.s32.f32 %v106
    %v111 = vcvt.s32.f32 %v107
    %v112 = vld [vmem:[%s2] sm:$0xff]
    %v113 = vld [vmem:[%s1] sm:$0xff]
    %v114 = vld [vmem:[%s1 + $0x8] sm:$0xff]
    %v115 = vld [vmem:[%s1 + $0x10] sm:$0xff]
    %v116 = vld [vmem:[%s1 + $0x18] sm:$0xff]
    %v117 = vld [vmem:[%s1 + $0x20] sm:$0xff]
    %v118 = vld [vmem:[%s1 + $0x28] sm:$0xff]
    %v119 = vld [vmem:[%s1 + $0x30] sm:$0xff]
    %v120 = vld [vmem:[%s1 + $0x38] sm:$0xff]
    %v121 = vld [vmem:[%s1 + $0x40] sm:$0xff]
    %v122 = vld [vmem:[%s1 + $0x48] sm:$0xff]
    %v123 = vld [vmem:[%s1 + $0x50] sm:$0xff]
    %v124 = vld [vmem:[%s1 + $0x58] sm:$0xff]
    %v125 = vld [vmem:[%s1 + $0x60] sm:$0xff]
    %v126 = vld [vmem:[%s1 + $0x68] sm:$0xff]
    %v127 = vld [vmem:[%s1 + $0x70] sm:$0xff]
    %v128 = vld [vmem:[%s1 + $0x78] sm:$0xff]
    %v129 = vld [vmem:[%s1 + $0x80] sm:$0x1]
    %vm130 = vcmask 7168
    %v132 = vsel %vm130, %v109, 0
    %v135 = vsel %vm130, %v111, 0
    %vm137 = vcmask 1040384
    %v139 = vsel %vm137, %v129, 0
    %141 = vmatprep.subr.mxu0 0.0
    %142 = vmatpush1.msra.mxu0 %v113
    %143 = vmatprep.subr.mxu0 0.0
    %144 = vmatpush1.msra.mxu0 %v114
    %145 = vmatprep.subr.mxu0 0.0
    %146 = vmatpush1.msra.mxu0 %v115
    %147 = vmatprep.subr.mxu0 0.0
    %148 = vmatpush1.msra.mxu0 %v116
    %149 = vmatprep.subr.mxu0 0.0
    %150 = vmatpush1.msra.mxu0 %v117
    %151 = vmatprep.subr.mxu0 0.0
    %152 = vmatpush1.msra.mxu0 %v118
    %153 = vmatprep.subr.mxu0 0.0
    %154 = vmatpush1.msra.mxu0 %v119
    %155 = vmatprep.subr.mxu0 0.0
    %156 = vmatpush1.msra.mxu0 %v120
    %157 = vmatprep.subr.mxu0 0.0
    %158 = vmatpush1.msra.mxu0 %v121
    %159 = vmatprep.subr.mxu0 0.0
    %160 = vmatpush1.msra.mxu0 %v122
    %161 = vmatprep.subr.mxu0 0.0
    %162 = vmatpush1.msra.mxu0 %v123
    %163 = vmatprep.subr.mxu0 0.0
    %164 = vmatpush1.msra.mxu0 %v124
    %165 = vmatprep.subr.mxu0 0.0
    %166 = vmatpush1.msra.mxu0 %v125
    %167 = vmatprep.subr.mxu0 0.0
    %168 = vmatpush1.msra.mxu0 %v126
    %169 = vmatprep.subr.mxu0 0.0
    %170 = vmatpush1.msra.mxu0 %v127
    %171 = vmatprep.subr.mxu0 0.0
    %172 = vmatpush1.msra.mxu0 %v128
    %173 = vmatprep.subr.mxu0 0.0
    %174 = vmatpush1.msra.mxu0 %v139
    %175 = vmatprep.subr.mxu0 0.0
    %176 = vmatpush1.msra.mxu0 0.0
    %177 = vmatprep.subr.mxu0 0.0
    %178 = vmatpush1.msra.mxu0 0.0
    %179 = vmatprep.subr.mxu0 0.0
    %180 = vmatpush1.msra.mxu0 0.0
    %181 = vmatprep.subr.mxu0 0.0
    %182 = vmatpush1.msra.mxu0 0.0
    %183 = vmatprep.subr.mxu0 0.0
    %184 = vmatpush1.msra.mxu0 0.0
    %185 = vmatprep.subr.mxu0 0.0
    %186 = vmatpush1.msra.mxu0 0.0
    %187 = vmatprep.subr.mxu0 0.0
    %188 = vmatpush1.msra.mxu0 0.0
    %189 = vmatprep.subr.mxu0 0.0
    %190 = vmatpush1.msra.mxu0 0.0
    %191 = vmatprep.subr.mxu0 0.0
    %192 = vmatpush1.msra.mxu0 0.0
    %193 = vmatprep.subr.mxu0 0.0
    %194 = vmatpush1.msra.mxu0 0.0
    %195 = vmatprep.subr.mxu0 0.0
    %196 = vmatpush1.msra.mxu0 0.0
    %197 = vmatprep.subr.mxu0 0.0
    %198 = vmatpush1.msra.mxu0 0.0
    %199 = vmatprep.subr.mxu0 0.0
    %200 = vmatpush1.msra.mxu0 0.0
    %201 = vmatprep.subr.mxu0 0.0
    %202 = vmatpush1.msra.mxu0 0.0
    %203 = vmatprep.subr.mxu0 0.0
    %204 = vmatpush1.msra.mxu0 0.0
    %205 = vmatprep.mubr.f32.mxu0 %v132
    %206 = vmatmul.mubr.f32.gmra.mrb[0].mxu0 %v108
    %v207 = vpop.f32.mrb[0].mxu0
    %v208 = vadd.f32 %v112, %v207
    %v209 = vpop.f32.mrb[0].mxu0
    %210 = vmatprep.mubr.f32.mxu0 %v135
    %211 = vmatmul.mubr.f32.gmra.mrb[0].mxu0 %v110
    %v212 = vpop.f32.mrb[0].mxu0
    %v213 = vadd.f32 %v112, %v212
    %v214 = vpop.f32.mrb[0].mxu0
    %215 = vdwg.mxu0
    %v216 = vld [vmem:[%s3] sm:$0xff]
    %v217 = vld [vmem:[%s3 + $0x8] sm:$0xff]
    %v218 = vld [vmem:[%s3 + $0x10] sm:$0xff]
    %v219 = vld [vmem:[%s3 + $0x18] sm:$0xff]
    %v220 = vld [vmem:[%s3 + $0x20] sm:$0xff]
    %v221 = vld [vmem:[%s3 + $0x28] sm:$0xff]
    %v222 = vld [vmem:[%s3 + $0x30] sm:$0xff]
    %v223 = vld [vmem:[%s3 + $0x38] sm:$0xff]
    %v224 = vld [vmem:[%s3 + $0x40] sm:$0xff]
    %v225 = vld [vmem:[%s3 + $0x48] sm:$0xff]
    %v226 = vld [vmem:[%s3 + $0x50] sm:$0xff]
    %v227 = vld [vmem:[%s3 + $0x58] sm:$0xff]
    %v228 = vld [vmem:[%s3 + $0x60] sm:$0xff]
    %v229 = vld [vmem:[%s3 + $0x68] sm:$0xff]
    %v230 = vld [vmem:[%s3 + $0x70] sm:$0xff]
    %v231 = vld [vmem:[%s3 + $0x78] sm:$0xff]
    %v232 = vld [vmem:[%s4] sm:$0xff]
    %v233 = vld [vmem:[%s4 + $0x8] sm:$0xff]
    %v234 = vld [vmem:[%s11] sm:$0xff]
    %v235 = vld [vmem:[%s5] sm:$0xff]
    %v236 = vld [vmem:[%s5 + $0x8] sm:$0xff]
    %v237 = vld [vmem:[%s5 + $0x10] sm:$0xff]
    %v238 = vld [vmem:[%s5 + $0x18] sm:$0xff]
    %v239 = vld [vmem:[#allocation2] sm:$0x1]
    %v241 = vlaneseq
    %v242 = vshrl.u32 %v241, 7
    %v243 = vsub.s32 0, %v242
    %v244 = vrot.slane %v239, %v243
    %vm246 = vcmask 261120
    %v248 = vsel %vm246, %v208, 0
    %v251 = vsel %vm246, %v213, 0
    %253 = vmatprep.subr.mxu0 0.0
    %254 = vmatpush1.msra.mxu0 %v235
    %255 = vmatprep.subr.mxu0 0.0
    %256 = vmatpush1.msra.mxu0 %v236
    %257 = vmatprep.subr.mxu0 0.0
    %258 = vmatpush1.msra.mxu0 %v237
    %259 = vmatprep.subr.mxu0 0.0
    %260 = vmatpush1.msra.mxu0 %v238
    %261 = vmatprep.subr.mxu0 0.0
    %262 = vmatpush1.msra.mxu0 0.0
    %263 = vmatprep.subr.mxu0 0.0
    %264 = vmatpush1.msra.mxu0 0.0
    %265 = vmatprep.subr.mxu0 0.0
    %266 = vmatpush1.msra.mxu0 0.0
    %267 = vmatprep.subr.mxu0 0.0
    %268 = vmatpush1.msra.mxu0 0.0
    %269 = vmatprep.subr.mxu0 0.0
    %270 = vmatpush1.msra.mxu0 0.0
    %271 = vmatprep.subr.mxu0 0.0
    %272 = vmatpush1.msra.mxu0 0.0
    %273 = vmatprep.subr.mxu0 0.0
    %274 = vmatpush1.msra.mxu0 0.0
    %275 = vmatprep.subr.mxu0 0.0
    %276 = vmatpush1.msra.mxu0 0.0
    %277 = vmatprep.subr.mxu0 0.0
    %278 = vmatpush1.msra.mxu0 0.0
    %279 = vmatprep.subr.mxu0 0.0
    %280 = vmatpush1.msra.mxu0 0.0
    %281 = vmatprep.subr.mxu0 0.0
    %282 = vmatpush1.msra.mxu0 0.0
    %283 = vmatprep.subr.mxu0 0.0
    %284 = vmatpush1.msra.mxu0 0.0
    %285 = vmatprep.subr.mxu0 0.0
    %286 = vmatpush1.msra.mxu0 0.0
    %287 = vmatprep.subr.mxu0 0.0
    %288 = vmatpush1.msra.mxu0 0.0
    %289 = vmatprep.subr.mxu0 0.0
    %290 = vmatpush1.msra.mxu0 0.0
    %291 = vmatprep.subr.mxu0 0.0
    %292 = vmatpush1.msra.mxu0 0.0
    %293 = vmatprep.subr.mxu0 0.0
    %294 = vmatpush1.msra.mxu0 0.0
    %295 = vmatprep.subr.mxu0 0.0
    %296 = vmatpush1.msra.mxu0 0.0
    %297 = vmatprep.subr.mxu0 0.0
    %298 = vmatpush1.msra.mxu0 0.0
    %299 = vmatprep.subr.mxu0 0.0
    %300 = vmatpush1.msra.mxu0 0.0
    %301 = vmatprep.subr.mxu0 0.0
    %302 = vmatpush1.msra.mxu0 0.0
    %303 = vmatprep.subr.mxu0 0.0
    %304 = vmatpush1.msra.mxu0 0.0
    %305 = vmatprep.subr.mxu0 0.0
    %306 = vmatpush1.msra.mxu0 0.0
    %307 = vmatprep.subr.mxu0 0.0
    %308 = vmatpush1.msra.mxu0 0.0
    %309 = vmatprep.subr.mxu0 0.0
    %310 = vmatpush1.msra.mxu0 0.0
    %311 = vmatprep.subr.mxu0 0.0
    %312 = vmatpush1.msra.mxu0 0.0
    %313 = vmatprep.subr.mxu0 0.0
    %314 = vmatpush1.msra.mxu0 0.0
    %315 = vmatprep.subr.mxu0 0.0
    %316 = vmatpush1.msra.mxu0 0.0
    %317 = vmatprep.mubr.f32.mxu0 0.0
    %318 = vmatmul.mubr.f32.gmra.mrb[0].mxu0 %v248
    %v319 = vpop.f32.mrb[0].mxu0
    %v320 = vadd.f32 %v244, %v319
    %v321 = vpop.f32.mrb[0].mxu0
    %322 = vmatprep.mubr.f32.mxu0 0.0
    %323 = vmatmul.mubr.f32.gmra.mrb[0].mxu0 %v251
    %v324 = vpop.f32.mrb[0].mxu0
    %v325 = vadd.f32 %v244, %v324
    %v326 = vpop.f32.mrb[0].mxu0
    %327 = vdwg.mxu0
    %v328 = vmul.f32 %v320, 0.5
    %v329 = vmul.f32 %v325, 0.5
    %346 = vrot.lane.b32.xlu0 %v216, 32
    %v347 = vpop.permute.xlu0 %346
    %348 = vrot.lane.b32.xlu0 %v217, 32
    %v349 = vpop.permute.xlu0 %348
    %350 = vrot.lane.b32.xlu0 %v218, 32
    %v351 = vpop.permute.xlu0 %350
    %352 = vrot.lane.b32.xlu0 %v219, 32
    %v353 = vpop.permute.xlu0 %352
    %354 = vrot.lane.b32.xlu0 %v220, 32
    %v355 = vpop.permute.xlu0 %354
    %356 = vrot.lane.b32.xlu0 %v221, 32
    %v357 = vpop.permute.xlu0 %356
    %358 = vrot.lane.b32.xlu0 %v222, 32
    %v359 = vpop.permute.xlu0 %358
    %360 = vrot.lane.b32.xlu0 %v223, 32
    %v361 = vpop.permute.xlu0 %360
    %362 = vrot.lane.b32.xlu0 %v224, 32
    %v363 = vpop.permute.xlu0 %362
    %364 = vrot.lane.b32.xlu0 %v225, 32
    %v365 = vpop.permute.xlu0 %364
    %366 = vrot.lane.b32.xlu0 %v226, 32
    %v367 = vpop.permute.xlu0 %366
    %368 = vrot.lane.b32.xlu0 %v227, 32
    %v369 = vpop.permute.xlu0 %368
    %370 = vrot.lane.b32.xlu0 %v228, 32
    %v371 = vpop.permute.xlu0 %370
    %372 = vrot.lane.b32.xlu0 %v229, 32
    %v373 = vpop.permute.xlu0 %372
    %374 = vrot.lane.b32.xlu0 %v230, 32
    %v375 = vpop.permute.xlu0 %374
    %376 = vrot.lane.b32.xlu0 %v231, 32
    %v377 = vpop.permute.xlu0 %376
    %v394 = vmul.f32 %v320, %v347
    %v395 = vmul.f32 %v325, %v349
    %v396 = vmul.f32 %v320, %v351
    %v397 = vmul.f32 %v325, %v353
    %v398 = vmul.f32 %v320, %v355
    %v399 = vmul.f32 %v325, %v357
    %v400 = vmul.f32 %v320, %v359
    %v401 = vmul.f32 %v325, %v361
    %v402 = vmul.f32 %v320, %v363
    %v403 = vmul.f32 %v325, %v365
    %v404 = vmul.f32 %v320, %v367
    %v405 = vmul.f32 %v325, %v369
    %v406 = vmul.f32 %v320, %v371
    %v407 = vmul.f32 %v325, %v373
    %v408 = vmul.f32 %v320, %v375
    %v409 = vmul.f32 %v325, %v377
    %410 = vrot.lane.b32.xlu0 %v216, 64
    %v411 = vpop.permute.xlu0 %410
    %412 = vrot.lane.b32.xlu0 %v217, 64
    %v413 = vpop.permute.xlu0 %412
    %414 = vrot.lane.b32.xlu0 %v218, 64
    %v415 = vpop.permute.xlu0 %414
    %416 = vrot.lane.b32.xlu0 %v219, 64
    %v417 = vpop.permute.xlu0 %416
    %418 = vrot.lane.b32.xlu0 %v220, 64
    %v419 = vpop.permute.xlu0 %418
    %420 = vrot.lane.b32.xlu0 %v221, 64
    %v421 = vpop.permute.xlu0 %420
    %422 = vrot.lane.b32.xlu0 %v222, 64
    %v423 = vpop.permute.xlu0 %422
    %424 = vrot.lane.b32.xlu0 %v223, 64
    %v425 = vpop.permute.xlu0 %424
    %426 = vrot.lane.b32.xlu0 %v224, 64
    %v427 = vpop.permute.xlu0 %426
    %428 = vrot.lane.b32.xlu0 %v225, 64
    %v429 = vpop.permute.xlu0 %428
    %430 = vrot.lane.b32.xlu0 %v226, 64
    %v431 = vpop.permute.xlu0 %430
    %432 = vrot.lane.b32.xlu0 %v227, 64
    %v433 = vpop.permute.xlu0 %432
    %434 = vrot.lane.b32.xlu0 %v228, 64
    %v435 = vpop.permute.xlu0 %434
    %436 = vrot.lane.b32.xlu0 %v229, 64
    %v437 = vpop.permute.xlu0 %436
    %438 = vrot.lane.b32.xlu0 %v230, 64
    %v439 = vpop.permute.xlu0 %438
    %440 = vrot.lane.b32.xlu0 %v231, 64
    %v441 = vpop.permute.xlu0 %440
    %v458 = vmul.f32 %v320, %v411
    %v459 = vmul.f32 %v325, %v413
    %v460 = vmul.f32 %v320, %v415
    %v461 = vmul.f32 %v325, %v417
    %v462 = vmul.f32 %v320, %v419
    %v463 = vmul.f32 %v325, %v421
    %v464 = vmul.f32 %v320, %v423
    %v465 = vmul.f32 %v325, %v425
    %v466 = vmul.f32 %v320, %v427
    %v467 = vmul.f32 %v325, %v429
    %v468 = vmul.f32 %v320, %v431
    %v469 = vmul.f32 %v325, %v433
    %v470 = vmul.f32 %v320, %v435
    %v471 = vmul.f32 %v325, %v437
    %v472 = vmul.f32 %v320, %v439
    %v473 = vmul.f32 %v325, %v441
    %490 = vrot.lane.b32.xlu0 %v394, 96
    %v491 = vpop.permute.xlu0 %490
    %492 = vrot.lane.b32.xlu0 %v395, 96
    %v493 = vpop.permute.xlu0 %492
    %494 = vrot.lane.b32.xlu0 %v396, 96
    %v495 = vpop.permute.xlu0 %494
    %496 = vrot.lane.b32.xlu0 %v397, 96
    %v497 = vpop.permute.xlu0 %496
    %498 = vrot.lane.b32.xlu0 %v398, 96
    %v499 = vpop.permute.xlu0 %498
    %500 = vrot.lane.b32.xlu0 %v399, 96
    %v501 = vpop.permute.xlu0 %500
    %502 = vrot.lane.b32.xlu0 %v400, 96
    %v503 = vpop.permute.xlu0 %502
    %504 = vrot.lane.b32.xlu0 %v401, 96
    %v505 = vpop.permute.xlu0 %504
    %506 = vrot.lane.b32.xlu0 %v402, 96
    %v507 = vpop.permute.xlu0 %506
    %508 = vrot.lane.b32.xlu0 %v403, 96
    %v509 = vpop.permute.xlu0 %508
    %510 = vrot.lane.b32.xlu0 %v404, 96
    %v511 = vpop.permute.xlu0 %510
    %512 = vrot.lane.b32.xlu0 %v405, 96
    %v513 = vpop.permute.xlu0 %512
    %514 = vrot.lane.b32.xlu0 %v406, 96
    %v515 = vpop.permute.xlu0 %514
    %516 = vrot.lane.b32.xlu0 %v407, 96
    %v517 = vpop.permute.xlu0 %516
    %518 = vrot.lane.b32.xlu0 %v408, 96
    %v519 = vpop.permute.xlu0 %518
    %520 = vrot.lane.b32.xlu0 %v409, 96
    %v521 = vpop.permute.xlu0 %520
    %v523 = vsel %vm246, %v328, 0
    %v526 = vsel %vm246, %v329, 0
    %v528 = vsel %vm246, %v491, 0
    %v530 = vsel %vm246, %v493, 0
    %v532 = vsel %vm246, %v495, 0
    %v534 = vsel %vm246, %v497, 0
    %v536 = vsel %vm246, %v499, 0
    %v538 = vsel %vm246, %v501, 0
    %v540 = vsel %vm246, %v503, 0
    %v542 = vsel %vm246, %v505, 0
    %v544 = vsel %vm246, %v507, 0
    %v546 = vsel %vm246, %v509, 0
    %v548 = vsel %vm246, %v511, 0
    %v550 = vsel %vm246, %v513, 0
    %v552 = vsel %vm246, %v515, 0
    %v554 = vsel %vm246, %v517, 0
    %v556 = vsel %vm246, %v519, 0
    %v558 = vsel %vm246, %v521, 0
    %560 = vmatprep.subr.mxu0 0.0
    %561 = vmatpush1.xpose.msra.mxu0 %v528
    %562 = vmatprep.subr.mxu0 0.0
    %563 = vmatpush1.xpose.msra.mxu0 %v530
    %564 = vmatprep.subr.mxu0 0.0
    %565 = vmatpush1.xpose.msra.mxu0 %v532
    %566 = vmatprep.subr.mxu0 0.0
    %567 = vmatpush1.xpose.msra.mxu0 %v534
    %568 = vmatprep.subr.mxu0 0.0
    %569 = vmatpush1.xpose.msra.mxu0 %v536
    %570 = vmatprep.subr.mxu0 0.0
    %571 = vmatpush1.xpose.msra.mxu0 %v538
    %572 = vmatprep.subr.mxu0 0.0
    %573 = vmatpush1.xpose.msra.mxu0 %v540
    %574 = vmatprep.subr.mxu0 0.0
    %575 = vmatpush1.xpose.msra.mxu0 %v542
    %576 = vmatprep.subr.mxu0 0.0
    %577 = vmatpush1.xpose.msra.mxu0 %v544
    %578 = vmatprep.subr.mxu0 0.0
    %579 = vmatpush1.xpose.msra.mxu0 %v546
    %580 = vmatprep.subr.mxu0 0.0
    %581 = vmatpush1.xpose.msra.mxu0 %v548
    %582 = vmatprep.subr.mxu0 0.0
    %583 = vmatpush1.xpose.msra.mxu0 %v550
    %584 = vmatprep.subr.mxu0 0.0
    %585 = vmatpush1.xpose.msra.mxu0 %v552
    %586 = vmatprep.subr.mxu0 0.0
    %587 = vmatpush1.xpose.msra.mxu0 %v554
    %588 = vmatprep.subr.mxu0 0.0
    %589 = vmatpush1.xpose.msra.mxu0 %v556
    %590 = vmatprep.subr.mxu0 0.0
    %591 = vmatpush1.xpose.msra.mxu0 %v558
    %592 = vmatprep.subr.mxu0 0.0
    %593 = vmatpush1.xpose.msra.mxu0 0.0
    %594 = vmatprep.subr.mxu0 0.0
    %595 = vmatpush1.xpose.msra.mxu0 0.0
    %596 = vmatprep.subr.mxu0 0.0
    %597 = vmatpush1.xpose.msra.mxu0 0.0
    %598 = vmatprep.subr.mxu0 0.0
    %599 = vmatpush1.xpose.msra.mxu0 0.0
    %600 = vmatprep.subr.mxu0 0.0
    %601 = vmatpush1.xpose.msra.mxu0 0.0
    %602 = vmatprep.subr.mxu0 0.0
    %603 = vmatpush1.xpose.msra.mxu0 0.0
    %604 = vmatprep.subr.mxu0 0.0
    %605 = vmatpush1.xpose.msra.mxu0 0.0
    %606 = vmatprep.subr.mxu0 0.0
    %607 = vmatpush1.xpose.msra.mxu0 0.0
    %608 = vmatprep.subr.mxu0 0.0
    %609 = vmatpush1.xpose.msra.mxu0 0.0
    %610 = vmatprep.subr.mxu0 0.0
    %611 = vmatpush1.xpose.msra.mxu0 0.0
    %612 = vmatprep.subr.mxu0 0.0
    %613 = vmatpush1.xpose.msra.mxu0 0.0
    %614 = vmatprep.subr.mxu0 0.0
    %615 = vmatpush1.xpose.msra.mxu0 0.0
    %616 = vmatprep.subr.mxu0 0.0
    %617 = vmatpush1.xpose.msra.mxu0 0.0
    %618 = vmatprep.subr.mxu0 0.0
    %619 = vmatpush1.xpose.msra.mxu0 0.0
    %620 = vmatprep.subr.mxu0 0.0
    %621 = vmatpush1.xpose.msra.mxu0 0.0
    %622 = vmatprep.subr.mxu0 0.0
    %623 = vmatpush1.xpose.msra.mxu0 0.0
    %624 = vmatprep.mubr.f32.mxu0 0.0
    %625 = vmatmul.mubr.f32.gmra.mrb[0].mxu0 %v523
    %v626 = vpop.f32.mrb[0].mxu0
    %v627 = vadd.f32 %v232, %v626
    %v628 = vpop.f32.mrb[0].mxu0
    %629 = vmatprep.mubr.f32.mxu0 0.0
    %630 = vmatmul.mubr.f32.gmra.mrb[0].mxu0 %v526
    %v631 = vpop.f32.mrb[0].mxu0
    %v632 = vadd.f32 %v233, %v631
    %v633 = vpop.f32.mrb[0].mxu0
    %634 = vdwg.mxu0
    %635 = vmax.xlane.f32.xlu0 %v627
    %v636 = vpop.xlane.xlu0 %635
    %637 = vmax.xlane.f32.xlu0 %v632
    %v638 = vpop.xlane.xlu0 %637
    %v639 = vsub.f32 %v627, %v636
    %v640 = vsub.f32 %v632, %v638
    %v641 = vmul.f32 %v639, 1.442695
    %v642 = vpow.pop %v641
    %v643 = vmul.f32 %v640, 1.442695
    %v644 = vpow.pop %v643
    %661 = vrot.lane.b32.xlu0 %v458, 64
    %v662 = vpop.permute.xlu0 %661
    %663 = vrot.lane.b32.xlu0 %v459, 64
    %v664 = vpop.permute.xlu0 %663
    %665 = vrot.lane.b32.xlu0 %v460, 64
    %v666 = vpop.permute.xlu0 %665
    %667 = vrot.lane.b32.xlu0 %v461, 64
    %v668 = vpop.permute.xlu0 %667
    %669 = vrot.lane.b32.xlu0 %v462, 64
    %v670 = vpop.permute.xlu0 %669
    %671 = vrot.lane.b32.xlu0 %v463, 64
    %v672 = vpop.permute.xlu0 %671
    %673 = vrot.lane.b32.xlu0 %v464, 64
    %v674 = vpop.permute.xlu0 %673
    %675 = vrot.lane.b32.xlu0 %v465, 64
    %v676 = vpop.permute.xlu0 %675
    %677 = vrot.lane.b32.xlu0 %v466, 64
    %v678 = vpop.permute.xlu0 %677
    %679 = vrot.lane.b32.xlu0 %v467, 64
    %v680 = vpop.permute.xlu0 %679
    %681 = vrot.lane.b32.xlu0 %v468, 64
    %v682 = vpop.permute.xlu0 %681
    %683 = vrot.lane.b32.xlu0 %v469, 64
    %v684 = vpop.permute.xlu0 %683
    %685 = vrot.lane.b32.xlu0 %v470, 64
    %v686 = vpop.permute.xlu0 %685
    %687 = vrot.lane.b32.xlu0 %v471, 64
    %v688 = vpop.permute.xlu0 %687
    %689 = vrot.lane.b32.xlu0 %v472, 64
    %v690 = vpop.permute.xlu0 %689
    %691 = vrot.lane.b32.xlu0 %v473, 64
    %v692 = vpop.permute.xlu0 %691
    %709 = vmatprep.subr.mxu0 0.0
    %710 = vmatpush1.msra.mxu0 %v662
    %711 = vmatprep.subr.mxu0 0.0
    %712 = vmatpush1.msra.mxu0 %v664
    %713 = vmatprep.subr.mxu0 0.0
    %714 = vmatpush1.msra.mxu0 %v666
    %715 = vmatprep.subr.mxu0 0.0
    %716 = vmatpush1.msra.mxu0 %v668
    %717 = vmatprep.subr.mxu0 0.0
    %718 = vmatpush1.msra.mxu0 %v670
    %719 = vmatprep.subr.mxu0 0.0
    %720 = vmatpush1.msra.mxu0 %v672
    %721 = vmatprep.subr.mxu0 0.0
    %722 = vmatpush1.msra.mxu0 %v674
    %723 = vmatprep.subr.mxu0 0.0
    %724 = vmatpush1.msra.mxu0 %v676
    %725 = vmatprep.subr.mxu0 0.0
    %726 = vmatpush1.msra.mxu0 %v678
    %727 = vmatprep.subr.mxu0 0.0
    %728 = vmatpush1.msra.mxu0 %v680
    %729 = vmatprep.subr.mxu0 0.0
    %730 = vmatpush1.msra.mxu0 %v682
    %731 = vmatprep.subr.mxu0 0.0
    %732 = vmatpush1.msra.mxu0 %v684
    %733 = vmatprep.subr.mxu0 0.0
    %734 = vmatpush1.msra.mxu0 %v686
    %735 = vmatprep.subr.mxu0 0.0
    %736 = vmatpush1.msra.mxu0 %v688
    %737 = vmatprep.subr.mxu0 0.0
    %738 = vmatpush1.msra.mxu0 %v690
    %739 = vmatprep.subr.mxu0 0.0
    %740 = vmatpush1.msra.mxu0 %v692
    %741 = vmatprep.subr.mxu0 0.0
    %742 = vmatpush1.msra.mxu0 0.0
    %743 = vmatprep.subr.mxu0 0.0
    %744 = vmatpush1.msra.mxu0 0.0
    %745 = vmatprep.subr.mxu0 0.0
    %746 = vmatpush1.msra.mxu0 0.0
    %747 = vmatprep.subr.mxu0 0.0
    %748 = vmatpush1.msra.mxu0 0.0
    %749 = vmatprep.subr.mxu0 0.0
    %750 = vmatpush1.msra.mxu0 0.0
    %751 = vmatprep.subr.mxu0 0.0
    %752 = vmatpush1.msra.mxu0 0.0
    %753 = vmatprep.subr.mxu0 0.0
    %754 = vmatpush1.msra.mxu0 0.0
    %755 = vmatprep.subr.mxu0 0.0
    %756 = vmatpush1.msra.mxu0 0.0
    %757 = vmatprep.subr.mxu0 0.0
    %758 = vmatpush1.msra.mxu0 0.0
    %759 = vmatprep.subr.mxu0 0.0
    %760 = vmatpush1.msra.mxu0 0.0
    %761 = vmatprep.subr.mxu0 0.0
    %762 = vmatpush1.msra.mxu0 0.0
    %763 = vmatprep.subr.mxu0 0.0
    %764 = vmatpush1.msra.mxu0 0.0
    %765 = vmatprep.subr.mxu0 0.0
    %766 = vmatpush1.msra.mxu0 0.0
    %767 = vmatprep.subr.mxu0 0.0
    %768 = vmatpush1.msra.mxu0 0.0
    %769 = vmatprep.subr.mxu0 0.0
    %770 = vmatpush1.msra.mxu0 0.0
    %771 = vmatprep.subr.mxu0 0.0
    %772 = vmatpush1.msra.mxu0 0.0
    %773 = vmatprep.mubr.f32.mxu0 0.0
    %774 = vmatmul.mubr.f32.gmra.mrb[0].mxu0 %v642
    %v775 = vpop.f32.mrb[0].mxu0
    %v776 = vadd.f32 0.0, %v775
    %v777 = vpop.f32.mrb[0].mxu0
    %778 = vmatprep.mubr.f32.mxu0 0.0
    %779 = vmatmul.mubr.f32.gmra.mrb[0].mxu0 %v644
    %v780 = vpop.f32.mrb[0].mxu0
    %v781 = vadd.f32 0.0, %v780
    %v782 = vpop.f32.mrb[0].mxu0
    %783 = vdwg.mxu0
    %784 = vmatprep.subr.mxu0 0.0
    %785 = vmatpush1.msra.mxu0 %v216
    %786 = vmatprep.subr.mxu0 0.0
    %787 = vmatpush1.msra.mxu0 %v217
    %788 = vmatprep.subr.mxu0 0.0
    %789 = vmatpush1.msra.mxu0 %v218
    %790 = vmatprep.subr.mxu0 0.0
    %791 = vmatpush1.msra.mxu0 %v219
    %792 = vmatprep.subr.mxu0 0.0
    %793 = vmatpush1.msra.mxu0 %v220
    %794 = vmatprep.subr.mxu0 0.0
    %795 = vmatpush1.msra.mxu0 %v221
    %796 = vmatprep.subr.mxu0 0.0
    %797 = vmatpush1.msra.mxu0 %v222
    %798 = vmatprep.subr.mxu0 0.0
    %799 = vmatpush1.msra.mxu0 %v223
    %800 = vmatprep.subr.mxu0 0.0
    %801 = vmatpush1.msra.mxu0 %v224
    %802 = vmatprep.subr.mxu0 0.0
    %803 = vmatpush1.msra.mxu0 %v225
    %804 = vmatprep.subr.mxu0 0.0
    %805 = vmatpush1.msra.mxu0 %v226
    %806 = vmatprep.subr.mxu0 0.0
    %807 = vmatpush1.msra.mxu0 %v227
    %808 = vmatprep.subr.mxu0 0.0
    %809 = vmatpush1.msra.mxu0 %v228
    %810 = vmatprep.subr.mxu0 0.0
    %811 = vmatpush1.msra.mxu0 %v229
    %812 = vmatprep.subr.mxu0 0.0
    %813 = vmatpush1.msra.mxu0 %v230
    %814 = vmatprep.subr.mxu0 0.0
    %815 = vmatpush1.msra.mxu0 %v231
    %816 = vmatprep.subr.mxu0 0.0
    %817 = vmatpush1.msra.mxu0 0.0
    %818 = vmatprep.subr.mxu0 0.0
    %819 = vmatpush1.msra.mxu0 0.0
    %820 = vmatprep.subr.mxu0 0.0
    %821 = vmatpush1.msra.mxu0 0.0
    %822 = vmatprep.subr.mxu0 0.0
    %823 = vmatpush1.msra.mxu0 0.0
    %824 = vmatprep.subr.mxu0 0.0
    %825 = vmatpush1.msra.mxu0 0.0
    %826 = vmatprep.subr.mxu0 0.0
    %827 = vmatpush1.msra.mxu0 0.0
    %828 = vmatprep.subr.mxu0 0.0
    %829 = vmatpush1.msra.mxu0 0.0
    %830 = vmatprep.subr.mxu0 0.0
    %831 = vmatpush1.msra.mxu0 0.0
    %832 = vmatprep.subr.mxu0 0.0
    %833 = vmatpush1.msra.mxu0 0.0
    %834 = vmatprep.subr.mxu0 0.0
    %835 = vmatpush1.msra.mxu0 0.0
    %836 = vmatprep.subr.mxu0 0.0
    %837 = vmatpush1.msra.mxu0 0.0
    %838 = vmatprep.subr.mxu0 0.0
    %839 = vmatpush1.msra.mxu0 0.0
    %840 = vmatprep.subr.mxu0 0.0
    %841 = vmatpush1.msra.mxu0 0.0
    %842 = vmatprep.subr.mxu0 0.0
    %843 = vmatpush1.msra.mxu0 0.0
    %844 = vmatprep.subr.mxu0 0.0
    %845 = vmatpush1.msra.mxu0 0.0
    %846 = vmatprep.subr.mxu0 0.0
    %847 = vmatpush1.msra.mxu0 0.0
    %848 = vmatprep.mubr.f32.mxu0 0.0
    %849 = vmatmul.mubr.f32.gmra.mrb[0].mxu0 %v642
    %v850 = vpop.f32.mrb[0].mxu0
    %v851 = vadd.f32 0.0, %v850
    %v852 = vpop.f32.mrb[0].mxu0
    %853 = vmatprep.mubr.f32.mxu0 0.0
    %854 = vmatmul.mubr.f32.gmra.mrb[0].mxu0 %v644
    %v855 = vpop.f32.mrb[0].mxu0
    %v856 = vadd.f32 0.0, %v855
    %v857 = vpop.f32.mrb[0].mxu0
    %858 = vdwg.mxu0
    %v859 = vmax.f32 %v851, 1e-20
    %v860 = vmax.f32 %v856, 1e-20
    %v861 = vrcp.pop %v859
    %v862 = vrcp.pop %v860
    %v863 = vmul.f32 %v776, %v861
    %v864 = vmul.f32 %v781, %v862
    %v865 = vld [vmem:[%s7] sm:$0xff]
    %v866 = vld [vmem:[%s7 + $0x8] sm:$0xff]
    %v867 = vld [vmem:[%s7 + $0x10] sm:$0xff]
    %v868 = vld [vmem:[%s7 + $0x18] sm:$0xff]
    %v869 = vlaneseq
    %v870 = vshrl.u32 %v869, 7
    %v871 = vsub.s32 0, %v870
    %v872 = vrot.slane %v234, %v871
    %v874 = vsel %vm246, %v863, 0
    %v877 = vsel %vm246, %v864, 0
    %879 = vmatprep.subr.mxu0 0.0
    %880 = vmatpush1.msra.mxu0 %v865
    %881 = vmatprep.subr.mxu0 0.0
    %882 = vmatpush1.msra.mxu0 %v866
    %883 = vmatprep.subr.mxu0 0.0
    %884 = vmatpush1.msra.mxu0 %v867
    %885 = vmatprep.subr.mxu0 0.0
    %886 = vmatpush1.msra.mxu0 %v868
    %887 = vmatprep.subr.mxu0 0.0
    %888 = vmatpush1.msra.mxu0 0.0
    %889 = vmatprep.subr.mxu0 0.0
    %890 = vmatpush1.msra.mxu0 0.0
    %891 = vmatprep.subr.mxu0 0.0
    %892 = vmatpush1.msra.mxu0 0.0
    %893 = vmatprep.subr.mxu0 0.0
    %894 = vmatpush1.msra.mxu0 0.0
    %895 = vmatprep.subr.mxu0 0.0
    %896 = vmatpush1.msra.mxu0 0.0
    %897 = vmatprep.subr.mxu0 0.0
    %898 = vmatpush1.msra.mxu0 0.0
    %899 = vmatprep.subr.mxu0 0.0
    %900 = vmatpush1.msra.mxu0 0.0
    %901 = vmatprep.subr.mxu0 0.0
    %902 = vmatpush1.msra.mxu0 0.0
    %903 = vmatprep.subr.mxu0 0.0
    %904 = vmatpush1.msra.mxu0 0.0
    %905 = vmatprep.subr.mxu0 0.0
    %906 = vmatpush1.msra.mxu0 0.0
    %907 = vmatprep.subr.mxu0 0.0
    %908 = vmatpush1.msra.mxu0 0.0
    %909 = vmatprep.subr.mxu0 0.0
    %910 = vmatpush1.msra.mxu0 0.0
    %911 = vmatprep.subr.mxu0 0.0
    %912 = vmatpush1.msra.mxu0 0.0
    %913 = vmatprep.subr.mxu0 0.0
    %914 = vmatpush1.msra.mxu0 0.0
    %915 = vmatprep.subr.mxu0 0.0
    %916 = vmatpush1.msra.mxu0 0.0
    %917 = vmatprep.subr.mxu0 0.0
    %918 = vmatpush1.msra.mxu0 0.0
    %919 = vmatprep.subr.mxu0 0.0
    %920 = vmatpush1.msra.mxu0 0.0
    %921 = vmatprep.subr.mxu0 0.0
    %922 = vmatpush1.msra.mxu0 0.0
    %923 = vmatprep.subr.mxu0 0.0
    %924 = vmatpush1.msra.mxu0 0.0
    %925 = vmatprep.subr.mxu0 0.0
    %926 = vmatpush1.msra.mxu0 0.0
    %927 = vmatprep.subr.mxu0 0.0
    %928 = vmatpush1.msra.mxu0 0.0
    %929 = vmatprep.subr.mxu0 0.0
    %930 = vmatpush1.msra.mxu0 0.0
    %931 = vmatprep.subr.mxu0 0.0
    %932 = vmatpush1.msra.mxu0 0.0
    %933 = vmatprep.subr.mxu0 0.0
    %934 = vmatpush1.msra.mxu0 0.0
    %935 = vmatprep.subr.mxu0 0.0
    %936 = vmatpush1.msra.mxu0 0.0
    %937 = vmatprep.subr.mxu0 0.0
    %938 = vmatpush1.msra.mxu0 0.0
    %939 = vmatprep.subr.mxu0 0.0
    %940 = vmatpush1.msra.mxu0 0.0
    %941 = vmatprep.subr.mxu0 0.0
    %942 = vmatpush1.msra.mxu0 0.0
    %943 = vmatprep.mubr.f32.mxu0 0.0
    %944 = vmatmul.mubr.f32.gmra.mrb[0].mxu0 %v874
    %v945 = vpop.f32.mrb[0].mxu0
    %v946 = vadd.f32 %v872, %v945
    %v947 = vpop.f32.mrb[0].mxu0
    %948 = vmatprep.mubr.f32.mxu0 0.0
    %949 = vmatmul.mubr.f32.gmra.mrb[0].mxu0 %v877
    %v950 = vpop.f32.mrb[0].mxu0
    %v951 = vadd.f32 %v872, %v950
    %v952 = vpop.f32.mrb[0].mxu0
    %953 = vdwg.mxu0
    %v954 = vadd.f32 %v208, %v946
    %v955 = vadd.f32 %v213, %v951
    %v956 = vsel %vm246, %v954, 0.0
    %957 = vadd.xlane.f32.xlu0 %v956
    %v958 = vpop.xlane.xlu0 %957
    %v959 = vsel %vm246, %v955, 0.0
    %960 = vadd.xlane.f32.xlu0 %v959
    %v961 = vpop.xlane.xlu0 %960
    %v962 = vrcp.pop 32.0
    %v963 = vmul.f32 %v958, %v962
    %v964 = vmul.f32 %v961, %v962
    %v965 = vsub.f32 %v954, %v963
    %v966 = vsub.f32 %v955, %v964
    %v967 = vmul.f32 %v965, %v965
    %v968 = vmul.f32 %v966, %v966
    %v969 = vsel %vm246, %v967, 0.0
    %970 = vadd.xlane.f32.xlu0 %v969
    %v971 = vpop.xlane.xlu0 %970
    %v972 = vsel %vm246, %v968, 0.0
    %973 = vadd.xlane.f32.xlu0 %v972
    %v974 = vpop.xlane.xlu0 %973
    %v975 = vmul.f32 %v971, %v962
    %v976 = vmul.f32 %v974, %v962
    %v977 = vadd.f32 %v975, 1e-05
    %v978 = vadd.f32 %v976, 1e-05
    %v979 = vrsqrt.pop %v977
    %v980 = vrsqrt.pop %v978
    %v981 = vmul.f32 %v965, %v979
    %v982 = vmul.f32 %v966, %v980
    %v983 = vlaneseq
    %v984 = vshrl.u32 %v983, 7
    %v985 = vsub.s32 2, %v984
    %v986 = vrot.slane %v234, %v985
    %v987 = vmul.f32 %v981, %v986
    %v988 = vmul.f32 %v982, %v986
    %v989 = vlaneseq
    %v990 = vshrl.u32 %v989, 7
    %v991 = vsub.s32 3, %v990
    %v992 = vrot.slane %v234, %v991
    %v993 = vadd.f32 %v987, %v992
    %v994 = vadd.f32 %v988, %v992
    %v995 = vld [vmem:[%s8] sm:$0xff]
    %v996 = vld [vmem:[%s8 + $0x8] sm:$0xff]
    %v997 = vld [vmem:[%s8 + $0x10] sm:$0xff]
    %v998 = vld [vmem:[%s8 + $0x18] sm:$0xff]
    %v999 = vld [vmem:[#allocation5] sm:$0x1]
    %v1001 = vlaneseq
    %v1002 = vshrl.u32 %v1001, 7
    %v1003 = vsub.s32 0, %v1002
    %v1004 = vrot.slane %v999, %v1003
    %v1007 = vsel %vm246, %v993, 0
    %v1010 = vsel %vm246, %v994, 0
    %1012 = vmatprep.subr.mxu0 0.0
    %1013 = vmatpush1.msra.mxu0 %v995
    %1014 = vmatprep.subr.mxu0 0.0
    %1015 = vmatpush1.msra.mxu0 %v996
    %1016 = vmatprep.subr.mxu0 0.0
    %1017 = vmatpush1.msra.mxu0 %v997
    %1018 = vmatprep.subr.mxu0 0.0
    %1019 = vmatpush1.msra.mxu0 %v998
    %1020 = vmatprep.subr.mxu0 0.0
    %1021 = vmatpush1.msra.mxu0 0.0
    %1022 = vmatprep.subr.mxu0 0.0
    %1023 = vmatpush1.msra.mxu0 0.0
    %1024 = vmatprep.subr.mxu0 0.0
    %1025 = vmatpush1.msra.mxu0 0.0
    %1026 = vmatprep.subr.mxu0 0.0
    %1027 = vmatpush1.msra.mxu0 0.0
    %1028 = vmatprep.subr.mxu0 0.0
    %1029 = vmatpush1.msra.mxu0 0.0
    %1030 = vmatprep.subr.mxu0 0.0
    %1031 = vmatpush1.msra.mxu0 0.0
    %1032 = vmatprep.subr.mxu0 0.0
    %1033 = vmatpush1.msra.mxu0 0.0
    %1034 = vmatprep.subr.mxu0 0.0
    %1035 = vmatpush1.msra.mxu0 0.0
    %1036 = vmatprep.subr.mxu0 0.0
    %1037 = vmatpush1.msra.mxu0 0.0
    %1038 = vmatprep.subr.mxu0 0.0
    %1039 = vmatpush1.msra.mxu0 0.0
    %1040 = vmatprep.subr.mxu0 0.0
    %1041 = vmatpush1.msra.mxu0 0.0
    %1042 = vmatprep.subr.mxu0 0.0
    %1043 = vmatpush1.msra.mxu0 0.0
    %1044 = vmatprep.subr.mxu0 0.0
    %1045 = vmatpush1.msra.mxu0 0.0
    %1046 = vmatprep.subr.mxu0 0.0
    %1047 = vmatpush1.msra.mxu0 0.0
    %1048 = vmatprep.subr.mxu0 0.0
    %1049 = vmatpush1.msra.mxu0 0.0
    %1050 = vmatprep.subr.mxu0 0.0
    %1051 = vmatpush1.msra.mxu0 0.0
    %1052 = vmatprep.subr.mxu0 0.0
    %1053 = vmatpush1.msra.mxu0 0.0
    %1054 = vmatprep.subr.mxu0 0.0
    %1055 = vmatpush1.msra.mxu0 0.0
    %1056 = vmatprep.subr.mxu0 0.0
    %1057 = vmatpush1.msra.mxu0 0.0
    %1058 = vmatprep.subr.mxu0 0.0
    %1059 = vmatpush1.msra.mxu0 0.0
    %1060 = vmatprep.subr.mxu0 0.0
    %1061 = vmatpush1.msra.mxu0 0.0
    %1062 = vmatprep.subr.mxu0 0.0
    %1063 = vmatpush1.msra.mxu0 0.0
    %1064 = vmatprep.subr.mxu0 0.0
    %1065 = vmatpush1.msra.mxu0 0.0
    %1066 = vmatprep.subr.mxu0 0.0
    %1067 = vmatpush1.msra.mxu0 0.0
    %1068 = vmatprep.subr.mxu0 0.0
    %1069 = vmatpush1.msra.mxu0 0.0
    %1070 = vmatprep.subr.mxu0 0.0
    %1071 = vmatpush1.msra.mxu0 0.0
    %1072 = vmatprep.subr.mxu0 0.0
    %1073 = vmatpush1.msra.mxu0 0.0
    %1074 = vmatprep.subr.mxu0 0.0
    %1075 = vmatpush1.msra.mxu0 0.0
    %1076 = vmatprep.mubr.f32.mxu0 0.0
    %1077 = vmatmul.mubr.f32.gmra.mrb[0].mxu0 %v1007
    %v1078 = vpop.f32.mrb[0].mxu0
    %v1079 = vadd.f32 %v1004, %v1078
    %v1080 = vpop.f32.mrb[0].mxu0
    %1081 = vmatprep.mubr.f32.mxu0 0.0
    %1082 = vmatmul.mubr.f32.gmra.mrb[0].mxu0 %v1010
    %v1083 = vpop.f32.mrb[0].mxu0
    %v1084 = vadd.f32 %v1004, %v1083
    %v1085 = vpop.f32.mrb[0].mxu0
    %1086 = vdwg.mxu0
    %v1087 = vmax.f32 %v1079, 0.0
    %v1088 = vmax.f32 %v1084, 0.0
    %v1089 = vld [vmem:[%s10] sm:$0xff]
    %v1090 = vld [vmem:[%s10 + $0x8] sm:$0xff]
    %v1091 = vld [vmem:[%s10 + $0x10] sm:$0xff]
    %v1092 = vld [vmem:[%s10 + $0x18] sm:$0xff]
    %v1093 = vld [vmem:[%s10 + $0x20] sm:$0xff]
    %v1094 = vld [vmem:[%s10 + $0x28] sm:$0xff]
    %v1095 = vld [vmem:[%s10 + $0x30] sm:$0xff]
    %v1096 = vld [vmem:[%s10 + $0x38] sm:$0xff]
    %v1097 = vlaneseq
    %v1098 = vshrl.u32 %v1097, 7
    %v1099 = vsub.s32 1, %v1098
    %v1100 = vrot.slane %v234, %v1099
    %vm1101 = vcmask 523264
    %v1103 = vsel %vm1101, %v1087, 0
    %v1106 = vsel %vm1101, %v1088, 0
    %1108 = vmatprep.subr.mxu0 0.0
    %1109 = vmatpush1.msra.mxu0 %v1089
    %1110 = vmatprep.subr.mxu0 0.0
    %1111 = vmatpush1.msra.mxu0 %v1090
    %1112 = vmatprep.subr.mxu0 0.0
    %1113 = vmatpush1.msra.mxu0 %v1091
    %1114 = vmatprep.subr.mxu0 0.0
    %1115 = vmatpush1.msra.mxu0 %v1092
    %1116 = vmatprep.subr.mxu0 0.0
    %1117 = vmatpush1.msra.mxu0 %v1093
    %1118 = vmatprep.subr.mxu0 0.0
    %1119 = vmatpush1.msra.mxu0 %v1094
    %1120 = vmatprep.subr.mxu0 0.0
    %1121 = vmatpush1.msra.mxu0 %v1095
    %1122 = vmatprep.subr.mxu0 0.0
    %1123 = vmatpush1.msra.mxu0 %v1096
    %1124 = vmatprep.subr.mxu0 0.0
    %1125 = vmatpush1.msra.mxu0 0.0
    %1126 = vmatprep.subr.mxu0 0.0
    %1127 = vmatpush1.msra.mxu0 0.0
    %1128 = vmatprep.subr.mxu0 0.0
    %1129 = vmatpush1.msra.mxu0 0.0
    %1130 = vmatprep.subr.mxu0 0.0
    %1131 = vmatpush1.msra.mxu0 0.0
    %1132 = vmatprep.subr.mxu0 0.0
    %1133 = vmatpush1.msra.mxu0 0.0
    %1134 = vmatprep.subr.mxu0 0.0
    %1135 = vmatpush1.msra.mxu0 0.0
    %1136 = vmatprep.subr.mxu0 0.0
    %1137 = vmatpush1.msra.mxu0 0.0
    %1138 = vmatprep.subr.mxu0 0.0
    %1139 = vmatpush1.msra.mxu0 0.0
    %1140 = vmatprep.subr.mxu0 0.0
    %1141 = vmatpush1.msra.mxu0 0.0
    %1142 = vmatprep.subr.mxu0 0.0
    %1143 = vmatpush1.msra.mxu0 0.0
    %1144 = vmatprep.subr.mxu0 0.0
    %1145 = vmatpush1.msra.mxu0 0.0
    %1146 = vmatprep.subr.mxu0 0.0
    %1147 = vmatpush1.msra.mxu0 0.0
    %1148 = vmatprep.subr.mxu0 0.0
    %1149 = vmatpush1.msra.mxu0 0.0
    %1150 = vmatprep.subr.mxu0 0.0
    %1151 = vmatpush1.msra.mxu0 0.0
    %1152 = vmatprep.subr.mxu0 0.0
    %1153 = vmatpush1.msra.mxu0 0.0
    %1154 = vmatprep.subr.mxu0 0.0
    %1155 = vmatpush1.msra.mxu0 0.0
    %1156 = vmatprep.subr.mxu0 0.0
    %1157 = vmatpush1.msra.mxu0 0.0
    %1158 = vmatprep.subr.mxu0 0.0
    %1159 = vmatpush1.msra.mxu0 0.0
    %1160 = vmatprep.subr.mxu0 0.0
    %1161 = vmatpush1.msra.mxu0 0.0
    %1162 = vmatprep.subr.mxu0 0.0
    %1163 = vmatpush1.msra.mxu0 0.0
    %1164 = vmatprep.subr.mxu0 0.0
    %1165 = vmatpush1.msra.mxu0 0.0
    %1166 = vmatprep.subr.mxu0 0.0
    %1167 = vmatpush1.msra.mxu0 0.0
    %1168 = vmatprep.subr.mxu0 0.0
    %1169 = vmatpush1.msra.mxu0 0.0
    %1170 = vmatprep.subr.mxu0 0.0
    %1171 = vmatpush1.msra.mxu0 0.0
    %1172 = vmatprep.mubr.f32.mxu0 0.0
    %1173 = vmatmul.mubr.f32.gmra.mrb[0].mxu0 %v1103
    %v1174 = vpop.f32.mrb[0].mxu0
    %v1175 = vadd.f32 %v1100, %v1174
    %v1176 = vpop.f32.mrb[0].mxu0
    %1177 = vmatprep.mubr.f32.mxu0 0.0
    %1178 = vmatmul.mubr.f32.gmra.mrb[0].mxu0 %v1106
    %v1179 = vpop.f32.mrb[0].mxu0
    %v1180 = vadd.f32 %v1100, %v1179
    %v1181 = vpop.f32.mrb[0].mxu0
    %1182 = vdwg.mxu0
    %v1183 = vadd.f32 %v993, %v1175
    %v1184 = vadd.f32 %v994, %v1180
    %v1185 = vsel %vm246, %v1183, 0.0
    %1186 = vadd.xlane.f32.xlu0 %v1185
    %v1187 = vpop.xlane.xlu0 %1186
    %v1188 = vsel %vm246, %v1184, 0.0
    %1189 = vadd.xlane.f32.xlu0 %v1188
    %v1190 = vpop.xlane.xlu0 %1189
    %v1191 = vmul.f32 %v1187, %v962
    %v1192 = vmul.f32 %v1190, %v962
    %v1193 = vsub.f32 %v1183, %v1191
    %v1194 = vsub.f32 %v1184, %v1192
    %v1195 = vmul.f32 %v1193, %v1193
    %v1196 = vmul.f32 %v1194, %v1194
    %v1197 = vsel %vm246, %v1195, 0.0
    %1198 = vadd.xlane.f32.xlu0 %v1197
    %v1199 = vpop.xlane.xlu0 %1198
    %v1200 = vsel %vm246, %v1196, 0.0
    %1201 = vadd.xlane.f32.xlu0 %v1200
    %v1202 = vpop.xlane.xlu0 %1201
    %v1203 = vmul.f32 %v1199, %v962
    %v1204 = vmul.f32 %v1202, %v962
    %v1205 = vadd.f32 %v1203, 1e-05
    %v1206 = vadd.f32 %v1204, 1e-05
    %v1207 = vrsqrt.pop %v1205
    %v1208 = vrsqrt.pop %v1206
    %v1209 = vmul.f32 %v1193, %v1207
    %v1210 = vmul.f32 %v1194, %v1208
    %v1211 = vlaneseq
    %v1212 = vshrl.u32 %v1211, 7
    %v1213 = vsub.s32 4, %v1212
    %v1214 = vrot.slane %v234, %v1213
    %v1215 = vmul.f32 %v1209, %v1214
    %v1216 = vmul.f32 %v1210, %v1214
    %v1217 = vlaneseq
    %v1218 = vshrl.u32 %v1217, 7
    %v1219 = vsub.s32 5, %v1218
    %v1220 = vrot.slane %v234, %v1219
    %v1221 = vadd.f32 %v1215, %v1220
    %v1222 = vadd.f32 %v1216, %v1220
    %s1223 = scalar_lea.vmem %s11, 8
    %v1224 = vld [vmem:[%s1223] sm:$0xff]
    %s1225 = scalar_lea.vmem %s5, 32
    %v1226 = vld [vmem:[%s1225] sm:$0xff]
    %v1227 = vld [vmem:[%s1225 + $0x8] sm:$0xff]
    %v1228 = vld [vmem:[%s1225 + $0x10] sm:$0xff]
    %v1229 = vld [vmem:[%s1225 + $0x18] sm:$0xff]
    %s1230 = scalar_lea.vmem [#allocation2], 1
    %v1231 = vld [vmem:[%s1230] sm:$0x1]
    %v1233 = vlaneseq
    %v1234 = vshrl.u32 %v1233, 7
    %v1235 = vsub.s32 0, %v1234
    %v1236 = vrot.slane %v1231, %v1235
    %v1239 = vsel %vm246, %v1221, 0
    %v1242 = vsel %vm246, %v1222, 0
    %1244 = vmatprep.subr.mxu0 0.0
    %1245 = vmatpush1.msra.mxu0 %v1226
    %1246 = vmatprep.subr.mxu0 0.0
    %1247 = vmatpush1.msra.mxu0 %v1227
    %1248 = vmatprep.subr.mxu0 0.0
    %1249 = vmatpush1.msra.mxu0 %v1228
    %1250 = vmatprep.subr.mxu0 0.0
    %1251 = vmatpush1.msra.mxu0 %v1229
    %1252 = vmatprep.subr.mxu0 0.0
    %1253 = vmatpush1.msra.mxu0 0.0
    %1254 = vmatprep.subr.mxu0 0.0
    %1255 = vmatpush1.msra.mxu0 0.0
    %1256 = vmatprep.subr.mxu0 0.0
    %1257 = vmatpush1.msra.mxu0 0.0
    %1258 = vmatprep.subr.mxu0 0.0
    %1259 = vmatpush1.msra.mxu0 0.0
    %1260 = vmatprep.subr.mxu0 0.0
    %1261 = vmatpush1.msra.mxu0 0.0
    %1262 = vmatprep.subr.mxu0 0.0
    %1263 = vmatpush1.msra.mxu0 0.0
    %1264 = vmatprep.subr.mxu0 0.0
    %1265 = vmatpush1.msra.mxu0 0.0
    %1266 = vmatprep.subr.mxu0 0.0
    %1267 = vmatpush1.msra.mxu0 0.0
    %1268 = vmatprep.subr.mxu0 0.0
    %1269 = vmatpush1.msra.mxu0 0.0
    %1270 = vmatprep.subr.mxu0 0.0
    %1271 = vmatpush1.msra.mxu0 0.0
    %1272 = vmatprep.subr.mxu0 0.0
    %1273 = vmatpush1.msra.mxu0 0.0
    %1274 = vmatprep.subr.mxu0 0.0
    %1275 = vmatpush1.msra.mxu0 0.0
    %1276 = vmatprep.subr.mxu0 0.0
    %1277 = vmatpush1.msra.mxu0 0.0
    %1278 = vmatprep.subr.mxu0 0.0
    %1279 = vmatpush1.msra.mxu0 0.0
    %1280 = vmatprep.subr.mxu0 0.0
    %1281 = vmatpush1.msra.mxu0 0.0
    %1282 = vmatprep.subr.mxu0 0.0
    %1283 = vmatpush1.msra.mxu0 0.0
    %1284 = vmatprep.subr.mxu0 0.0
    %1285 = vmatpush1.msra.mxu0 0.0
    %1286 = vmatprep.subr.mxu0 0.0
    %1287 = vmatpush1.msra.mxu0 0.0
    %1288 = vmatprep.subr.mxu0 0.0
    %1289 = vmatpush1.msra.mxu0 0.0
    %1290 = vmatprep.subr.mxu0 0.0
    %1291 = vmatpush1.msra.mxu0 0.0
    %1292 = vmatprep.subr.mxu0 0.0
    %1293 = vmatpush1.msra.mxu0 0.0
    %1294 = vmatprep.subr.mxu0 0.0
    %1295 = vmatpush1.msra.mxu0 0.0
    %1296 = vmatprep.subr.mxu0 0.0
    %1297 = vmatpush1.msra.mxu0 0.0
    %1298 = vmatprep.subr.mxu0 0.0
    %1299 = vmatpush1.msra.mxu0 0.0
    %1300 = vmatprep.subr.mxu0 0.0
    %1301 = vmatpush1.msra.mxu0 0.0
    %1302 = vmatprep.subr.mxu0 0.0
    %1303 = vmatpush1.msra.mxu0 0.0
    %1304 = vmatprep.subr.mxu0 0.0
    %1305 = vmatpush1.msra.mxu0 0.0
    %1306 = vmatprep.subr.mxu0 0.0
    %1307 = vmatpush1.msra.mxu0 0.0
    %1308 = vmatprep.mubr.f32.mxu0 0.0
    %1309 = vmatmul.mubr.f32.gmra.mrb[0].mxu0 %v1239
    %v1310 = vpop.f32.mrb[0].mxu0
    %v1311 = vadd.f32 %v1236, %v1310
    %v1312 = vpop.f32.mrb[0].mxu0
    %1313 = vmatprep.mubr.f32.mxu0 0.0
    %1314 = vmatmul.mubr.f32.gmra.mrb[0].mxu0 %v1242
    %v1315 = vpop.f32.mrb[0].mxu0
    %v1316 = vadd.f32 %v1236, %v1315
    %v1317 = vpop.f32.mrb[0].mxu0
    %1318 = vdwg.mxu0
    %v1319 = vmul.f32 %v1311, 0.5
    %v1320 = vmul.f32 %v1316, 0.5
    %v1321 = vmul.f32 %v1311, %v347
    %v1322 = vmul.f32 %v1316, %v349
    %v1323 = vmul.f32 %v1311, %v351
    %v1324 = vmul.f32 %v1316, %v353
    %v1325 = vmul.f32 %v1311, %v355
    %v1326 = vmul.f32 %v1316, %v357
    %v1327 = vmul.f32 %v1311, %v359
    %v1328 = vmul.f32 %v1316, %v361
    %v1329 = vmul.f32 %v1311, %v363
    %v1330 = vmul.f32 %v1316, %v365
    %v1331 = vmul.f32 %v1311, %v367
    %v1332 = vmul.f32 %v1316, %v369
    %v1333 = vmul.f32 %v1311, %v371
    %v1334 = vmul.f32 %v1316, %v373
    %v1335 = vmul.f32 %v1311, %v375
    %v1336 = vmul.f32 %v1316, %v377
    %v1337 = vmul.f32 %v1311, %v411
    %v1338 = vmul.f32 %v1316, %v413
    %v1339 = vmul.f32 %v1311, %v415
    %v1340 = vmul.f32 %v1316, %v417
    %v1341 = vmul.f32 %v1311, %v419
    %v1342 = vmul.f32 %v1316, %v421
    %v1343 = vmul.f32 %v1311, %v423
    %v1344 = vmul.f32 %v1316, %v425
    %v1345 = vmul.f32 %v1311, %v427
    %v1346 = vmul.f32 %v1316, %v429
    %v1347 = vmul.f32 %v1311, %v431
    %v1348 = vmul.f32 %v1316, %v433
    %v1349 = vmul.f32 %v1311, %v435
    %v1350 = vmul.f32 %v1316, %v437
    %v1351 = vmul.f32 %v1311, %v439
    %v1352 = vmul.f32 %v1316, %v441
    %1369 = vrot.lane.b32.xlu0 %v1321, 96
    %v1370 = vpop.permute.xlu0 %1369
    %1371 = vrot.lane.b32.xlu0 %v1322, 96
    %v1372 = vpop.permute.xlu0 %1371
    %1373 = vrot.lane.b32.xlu0 %v1323, 96
    %v1374 = vpop.permute.xlu0 %1373
    %1375 = vrot.lane.b32.xlu0 %v1324, 96
    %v1376 = vpop.permute.xlu0 %1375
    %1377 = vrot.lane.b32.xlu0 %v1325, 96
    %v1378 = vpop.permute.xlu0 %1377
    %1379 = vrot.lane.b32.xlu0 %v1326, 96
    %v1380 = vpop.permute.xlu0 %1379
    %1381 = vrot.lane.b32.xlu0 %v1327, 96
    %v1382 = vpop.permute.xlu0 %1381
    %1383 = vrot.lane.b32.xlu0 %v1328, 96
    %v1384 = vpop.permute.xlu0 %1383
    %1385 = vrot.lane.b32.xlu0 %v1329, 96
    %v1386 = vpop.permute.xlu0 %1385
    %1387 = vrot.lane.b32.xlu0 %v1330, 96
    %v1388 = vpop.permute.xlu0 %1387
    %1389 = vrot.lane.b32.xlu0 %v1331, 96
    %v1390 = vpop.permute.xlu0 %1389
    %1391 = vrot.lane.b32.xlu0 %v1332, 96
    %v1392 = vpop.permute.xlu0 %1391
    %1393 = vrot.lane.b32.xlu0 %v1333, 96
    %v1394 = vpop.permute.xlu0 %1393
    %1395 = vrot.lane.b32.xlu0 %v1334, 96
    %v1396 = vpop.permute.xlu0 %1395
    %1397 = vrot.lane.b32.xlu0 %v1335, 96
    %v1398 = vpop.permute.xlu0 %1397
    %1399 = vrot.lane.b32.xlu0 %v1336, 96
    %v1400 = vpop.permute.xlu0 %1399
    %v1402 = vsel %vm246, %v1319, 0
    %v1405 = vsel %vm246, %v1320, 0
    %v1407 = vsel %vm246, %v1370, 0
    %v1409 = vsel %vm246, %v1372, 0
    %v1411 = vsel %vm246, %v1374, 0
    %v1413 = vsel %vm246, %v1376, 0
    %v1415 = vsel %vm246, %v1378, 0
    %v1417 = vsel %vm246, %v1380, 0
    %v1419 = vsel %vm246, %v1382, 0
    %v1421 = vsel %vm246, %v1384, 0
    %v1423 = vsel %vm246, %v1386, 0
    %v1425 = vsel %vm246, %v1388, 0
    %v1427 = vsel %vm246, %v1390, 0
    %v1429 = vsel %vm246, %v1392, 0
    %v1431 = vsel %vm246, %v1394, 0
    %v1433 = vsel %vm246, %v1396, 0
    %v1435 = vsel %vm246, %v1398, 0
    %v1437 = vsel %vm246, %v1400, 0
    %1439 = vmatprep.subr.mxu0 0.0
    %1440 = vmatpush1.xpose.msra.mxu0 %v1407
    %1441 = vmatprep.subr.mxu0 0.0
    %1442 = vmatpush1.xpose.msra.mxu0 %v1409
    %1443 = vmatprep.subr.mxu0 0.0
    %1444 = vmatpush1.xpose.msra.mxu0 %v1411
    %1445 = vmatprep.subr.mxu0 0.0
    %1446 = vmatpush1.xpose.msra.mxu0 %v1413
    %1447 = vmatprep.subr.mxu0 0.0
    %1448 = vmatpush1.xpose.msra.mxu0 %v1415
    %1449 = vmatprep.subr.mxu0 0.0
    %1450 = vmatpush1.xpose.msra.mxu0 %v1417
    %1451 = vmatprep.subr.mxu0 0.0
    %1452 = vmatpush1.xpose.msra.mxu0 %v1419
    %1453 = vmatprep.subr.mxu0 0.0
    %1454 = vmatpush1.xpose.msra.mxu0 %v1421
    %1455 = vmatprep.subr.mxu0 0.0
    %1456 = vmatpush1.xpose.msra.mxu0 %v1423
    %1457 = vmatprep.subr.mxu0 0.0
    %1458 = vmatpush1.xpose.msra.mxu0 %v1425
    %1459 = vmatprep.subr.mxu0 0.0
    %1460 = vmatpush1.xpose.msra.mxu0 %v1427
    %1461 = vmatprep.subr.mxu0 0.0
    %1462 = vmatpush1.xpose.msra.mxu0 %v1429
    %1463 = vmatprep.subr.mxu0 0.0
    %1464 = vmatpush1.xpose.msra.mxu0 %v1431
    %1465 = vmatprep.subr.mxu0 0.0
    %1466 = vmatpush1.xpose.msra.mxu0 %v1433
    %1467 = vmatprep.subr.mxu0 0.0
    %1468 = vmatpush1.xpose.msra.mxu0 %v1435
    %1469 = vmatprep.subr.mxu0 0.0
    %1470 = vmatpush1.xpose.msra.mxu0 %v1437
    %1471 = vmatprep.subr.mxu0 0.0
    %1472 = vmatpush1.xpose.msra.mxu0 0.0
    %1473 = vmatprep.subr.mxu0 0.0
    %1474 = vmatpush1.xpose.msra.mxu0 0.0
    %1475 = vmatprep.subr.mxu0 0.0
    %1476 = vmatpush1.xpose.msra.mxu0 0.0
    %1477 = vmatprep.subr.mxu0 0.0
    %1478 = vmatpush1.xpose.msra.mxu0 0.0
    %1479 = vmatprep.subr.mxu0 0.0
    %1480 = vmatpush1.xpose.msra.mxu0 0.0
    %1481 = vmatprep.subr.mxu0 0.0
    %1482 = vmatpush1.xpose.msra.mxu0 0.0
    %1483 = vmatprep.subr.mxu0 0.0
    %1484 = vmatpush1.xpose.msra.mxu0 0.0
    %1485 = vmatprep.subr.mxu0 0.0
    %1486 = vmatpush1.xpose.msra.mxu0 0.0
    %1487 = vmatprep.subr.mxu0 0.0
    %1488 = vmatpush1.xpose.msra.mxu0 0.0
    %1489 = vmatprep.subr.mxu0 0.0
    %1490 = vmatpush1.xpose.msra.mxu0 0.0
    %1491 = vmatprep.subr.mxu0 0.0
    %1492 = vmatpush1.xpose.msra.mxu0 0.0
    %1493 = vmatprep.subr.mxu0 0.0
    %1494 = vmatpush1.xpose.msra.mxu0 0.0
    %1495 = vmatprep.subr.mxu0 0.0
    %1496 = vmatpush1.xpose.msra.mxu0 0.0
    %1497 = vmatprep.subr.mxu0 0.0
    %1498 = vmatpush1.xpose.msra.mxu0 0.0
    %1499 = vmatprep.subr.mxu0 0.0
    %1500 = vmatpush1.xpose.msra.mxu0 0.0
    %1501 = vmatprep.subr.mxu0 0.0
    %1502 = vmatpush1.xpose.msra.mxu0 0.0
    %1503 = vmatprep.mubr.f32.mxu0 0.0
    %1504 = vmatmul.mubr.f32.gmra.mrb[0].mxu0 %v1402
    %v1505 = vpop.f32.mrb[0].mxu0
    %v1506 = vadd.f32 %v232, %v1505
    %v1507 = vpop.f32.mrb[0].mxu0
    %1508 = vmatprep.mubr.f32.mxu0 0.0
    %1509 = vmatmul.mubr.f32.gmra.mrb[0].mxu0 %v1405
    %v1510 = vpop.f32.mrb[0].mxu0
    %v1511 = vadd.f32 %v233, %v1510
    %v1512 = vpop.f32.mrb[0].mxu0
    %1513 = vdwg.mxu0
    %1514 = vmax.xlane.f32.xlu0 %v1506
    %v1515 = vpop.xlane.xlu0 %1514
    %1516 = vmax.xlane.f32.xlu0 %v1511
    %v1517 = vpop.xlane.xlu0 %1516
    %v1518 = vsub.f32 %v1506, %v1515
    %v1519 = vsub.f32 %v1511, %v1517
    %v1520 = vmul.f32 %v1518, 1.442695
    %v1521 = vpow.pop %v1520
    %v1522 = vmul.f32 %v1519, 1.442695
    %v1523 = vpow.pop %v1522
    %1540 = vrot.lane.b32.xlu0 %v1337, 64
    %v1541 = vpop.permute.xlu0 %1540
    %1542 = vrot.lane.b32.xlu0 %v1338, 64
    %v1543 = vpop.permute.xlu0 %1542
    %1544 = vrot.lane.b32.xlu0 %v1339, 64
    %v1545 = vpop.permute.xlu0 %1544
    %1546 = vrot.lane.b32.xlu0 %v1340, 64
    %v1547 = vpop.permute.xlu0 %1546
    %1548 = vrot.lane.b32.xlu0 %v1341, 64
    %v1549 = vpop.permute.xlu0 %1548
    %1550 = vrot.lane.b32.xlu0 %v1342, 64
    %v1551 = vpop.permute.xlu0 %1550
    %1552 = vrot.lane.b32.xlu0 %v1343, 64
    %v1553 = vpop.permute.xlu0 %1552
    %1554 = vrot.lane.b32.xlu0 %v1344, 64
    %v1555 = vpop.permute.xlu0 %1554
    %1556 = vrot.lane.b32.xlu0 %v1345, 64
    %v1557 = vpop.permute.xlu0 %1556
    %1558 = vrot.lane.b32.xlu0 %v1346, 64
    %v1559 = vpop.permute.xlu0 %1558
    %1560 = vrot.lane.b32.xlu0 %v1347, 64
    %v1561 = vpop.permute.xlu0 %1560
    %1562 = vrot.lane.b32.xlu0 %v1348, 64
    %v1563 = vpop.permute.xlu0 %1562
    %1564 = vrot.lane.b32.xlu0 %v1349, 64
    %v1565 = vpop.permute.xlu0 %1564
    %1566 = vrot.lane.b32.xlu0 %v1350, 64
    %v1567 = vpop.permute.xlu0 %1566
    %1568 = vrot.lane.b32.xlu0 %v1351, 64
    %v1569 = vpop.permute.xlu0 %1568
    %1570 = vrot.lane.b32.xlu0 %v1352, 64
    %v1571 = vpop.permute.xlu0 %1570
    %1588 = vmatprep.subr.mxu0 0.0
    %1589 = vmatpush1.msra.mxu0 %v1541
    %1590 = vmatprep.subr.mxu0 0.0
    %1591 = vmatpush1.msra.mxu0 %v1543
    %1592 = vmatprep.subr.mxu0 0.0
    %1593 = vmatpush1.msra.mxu0 %v1545
    %1594 = vmatprep.subr.mxu0 0.0
    %1595 = vmatpush1.msra.mxu0 %v1547
    %1596 = vmatprep.subr.mxu0 0.0
    %1597 = vmatpush1.msra.mxu0 %v1549
    %1598 = vmatprep.subr.mxu0 0.0
    %1599 = vmatpush1.msra.mxu0 %v1551
    %1600 = vmatprep.subr.mxu0 0.0
    %1601 = vmatpush1.msra.mxu0 %v1553
    %1602 = vmatprep.subr.mxu0 0.0
    %1603 = vmatpush1.msra.mxu0 %v1555
    %1604 = vmatprep.subr.mxu0 0.0
    %1605 = vmatpush1.msra.mxu0 %v1557
    %1606 = vmatprep.subr.mxu0 0.0
    %1607 = vmatpush1.msra.mxu0 %v1559
    %1608 = vmatprep.subr.mxu0 0.0
    %1609 = vmatpush1.msra.mxu0 %v1561
    %1610 = vmatprep.subr.mxu0 0.0
    %1611 = vmatpush1.msra.mxu0 %v1563
    %1612 = vmatprep.subr.mxu0 0.0
    %1613 = vmatpush1.msra.mxu0 %v1565
    %1614 = vmatprep.subr.mxu0 0.0
    %1615 = vmatpush1.msra.mxu0 %v1567
    %1616 = vmatprep.subr.mxu0 0.0
    %1617 = vmatpush1.msra.mxu0 %v1569
    %1618 = vmatprep.subr.mxu0 0.0
    %1619 = vmatpush1.msra.mxu0 %v1571
    %1620 = vmatprep.subr.mxu0 0.0
    %1621 = vmatpush1.msra.mxu0 0.0
    %1622 = vmatprep.subr.mxu0 0.0
    %1623 = vmatpush1.msra.mxu0 0.0
    %1624 = vmatprep.subr.mxu0 0.0
    %1625 = vmatpush1.msra.mxu0 0.0
    %1626 = vmatprep.subr.mxu0 0.0
    %1627 = vmatpush1.msra.mxu0 0.0
    %1628 = vmatprep.subr.mxu0 0.0
    %1629 = vmatpush1.msra.mxu0 0.0
    %1630 = vmatprep.subr.mxu0 0.0
    %1631 = vmatpush1.msra.mxu0 0.0
    %1632 = vmatprep.subr.mxu0 0.0
    %1633 = vmatpush1.msra.mxu0 0.0
    %1634 = vmatprep.subr.mxu0 0.0
    %1635 = vmatpush1.msra.mxu0 0.0
    %1636 = vmatprep.subr.mxu0 0.0
    %1637 = vmatpush1.msra.mxu0 0.0
    %1638 = vmatprep.subr.mxu0 0.0
    %1639 = vmatpush1.msra.mxu0 0.0
    %1640 = vmatprep.subr.mxu0 0.0
    %1641 = vmatpush1.msra.mxu0 0.0
    %1642 = vmatprep.subr.mxu0 0.0
    %1643 = vmatpush1.msra.mxu0 0.0
    %1644 = vmatprep.subr.mxu0 0.0
    %1645 = vmatpush1.msra.mxu0 0.0
    %1646 = vmatprep.subr.mxu0 0.0
    %1647 = vmatpush1.msra.mxu0 0.0
    %1648 = vmatprep.subr.mxu0 0.0
    %1649 = vmatpush1.msra.mxu0 0.0
    %1650 = vmatprep.subr.mxu0 0.0
    %1651 = vmatpush1.msra.mxu0 0.0
    %1652 = vmatprep.mubr.f32.mxu0 0.0
    %1653 = vmatmul.mubr.f32.gmra.mrb[0].mxu0 %v1521
    %v1654 = vpop.f32.mrb[0].mxu0
    %v1655 = vadd.f32 0.0, %v1654
    %v1656 = vpop.f32.mrb[0].mxu0
    %1657 = vmatprep.mubr.f32.mxu0 0.0
    %1658 = vmatmul.mubr.f32.gmra.mrb[0].mxu0 %v1523
    %v1659 = vpop.f32.mrb[0].mxu0
    %v1660 = vadd.f32 0.0, %v1659
    %v1661 = vpop.f32.mrb[0].mxu0
    %1662 = vdwg.mxu0
    %1663 = vmatprep.subr.mxu0 0.0
    %1664 = vmatpush1.msra.mxu0 %v216
    %1665 = vmatprep.subr.mxu0 0.0
    %1666 = vmatpush1.msra.mxu0 %v217
    %1667 = vmatprep.subr.mxu0 0.0
    %1668 = vmatpush1.msra.mxu0 %v218
    %1669 = vmatprep.subr.mxu0 0.0
    %1670 = vmatpush1.msra.mxu0 %v219
    %1671 = vmatprep.subr.mxu0 0.0
    %1672 = vmatpush1.msra.mxu0 %v220
    %1673 = vmatprep.subr.mxu0 0.0
    %1674 = vmatpush1.msra.mxu0 %v221
    %1675 = vmatprep.subr.mxu0 0.0
    %1676 = vmatpush1.msra.mxu0 %v222
    %1677 = vmatprep.subr.mxu0 0.0
    %1678 = vmatpush1.msra.mxu0 %v223
    %1679 = vmatprep.subr.mxu0 0.0
    %1680 = vmatpush1.msra.mxu0 %v224
    %1681 = vmatprep.subr.mxu0 0.0
    %1682 = vmatpush1.msra.mxu0 %v225
    %1683 = vmatprep.subr.mxu0 0.0
    %1684 = vmatpush1.msra.mxu0 %v226
    %1685 = vmatprep.subr.mxu0 0.0
    %1686 = vmatpush1.msra.mxu0 %v227
    %1687 = vmatprep.subr.mxu0 0.0
    %1688 = vmatpush1.msra.mxu0 %v228
    %1689 = vmatprep.subr.mxu0 0.0
    %1690 = vmatpush1.msra.mxu0 %v229
    %1691 = vmatprep.subr.mxu0 0.0
    %1692 = vmatpush1.msra.mxu0 %v230
    %1693 = vmatprep.subr.mxu0 0.0
    %1694 = vmatpush1.msra.mxu0 %v231
    %1695 = vmatprep.subr.mxu0 0.0
    %1696 = vmatpush1.msra.mxu0 0.0
    %1697 = vmatprep.subr.mxu0 0.0
    %1698 = vmatpush1.msra.mxu0 0.0
    %1699 = vmatprep.subr.mxu0 0.0
    %1700 = vmatpush1.msra.mxu0 0.0
    %1701 = vmatprep.subr.mxu0 0.0
    %1702 = vmatpush1.msra.mxu0 0.0
    %1703 = vmatprep.subr.mxu0 0.0
    %1704 = vmatpush1.msra.mxu0 0.0
    %1705 = vmatprep.subr.mxu0 0.0
    %1706 = vmatpush1.msra.mxu0 0.0
    %1707 = vmatprep.subr.mxu0 0.0
    %1708 = vmatpush1.msra.mxu0 0.0
    %1709 = vmatprep.subr.mxu0 0.0
    %1710 = vmatpush1.msra.mxu0 0.0
    %1711 = vmatprep.subr.mxu0 0.0
    %1712 = vmatpush1.msra.mxu0 0.0
    %1713 = vmatprep.subr.mxu0 0.0
    %1714 = vmatpush1.msra.mxu0 0.0
    %1715 = vmatprep.subr.mxu0 0.0
    %1716 = vmatpush1.msra.mxu0 0.0
    %1717 = vmatprep.subr.mxu0 0.0
    %1718 = vmatpush1.msra.mxu0 0.0
    %1719 = vmatprep.subr.mxu0 0.0
    %1720 = vmatpush1.msra.mxu0 0.0
    %1721 = vmatprep.subr.mxu0 0.0
    %1722 = vmatpush1.msra.mxu0 0.0
    %1723 = vmatprep.subr.mxu0 0.0
    %1724 = vmatpush1.msra.mxu0 0.0
    %1725 = vmatprep.subr.mxu0 0.0
    %1726 = vmatpush1.msra.mxu0 0.0
    %1727 = vmatprep.mubr.f32.mxu0 0.0
    %1728 = vmatmul.mubr.f32.gmra.mrb[0].mxu0 %v1521
    %v1729 = vpop.f32.mrb[0].mxu0
    %v1730 = vadd.f32 0.0, %v1729
    %v1731 = vpop.f32.mrb[0].mxu0
    %1732 = vmatprep.mubr.f32.mxu0 0.0
    %1733 = vmatmul.mubr.f32.gmra.mrb[0].mxu0 %v1523
    %v1734 = vpop.f32.mrb[0].mxu0
    %v1735 = vadd.f32 0.0, %v1734
    %v1736 = vpop.f32.mrb[0].mxu0
    %1737 = vdwg.mxu0
    %v1738 = vmax.f32 %v1730, 1e-20
    %v1739 = vmax.f32 %v1735, 1e-20
    %v1740 = vrcp.pop %v1738
    %v1741 = vrcp.pop %v1739
    %v1742 = vmul.f32 %v1655, %v1740
    %v1743 = vmul.f32 %v1660, %v1741
    %s1744 = scalar_lea.vmem %s7, 32
    %v1745 = vld [vmem:[%s1744] sm:$0xff]
    %v1746 = vld [vmem:[%s1744 + $0x8] sm:$0xff]
    %v1747 = vld [vmem:[%s1744 + $0x10] sm:$0xff]
    %v1748 = vld [vmem:[%s1744 + $0x18] sm:$0xff]
    %v1749 = vlaneseq
    %v1750 = vshrl.u32 %v1749, 7
    %v1751 = vsub.s32 0, %v1750
    %v1752 = vrot.slane %v1224, %v1751
    %v1754 = vsel %vm246, %v1742, 0
    %v1757 = vsel %vm246, %v1743, 0
    %1759 = vmatprep.subr.mxu0 0.0
    %1760 = vmatpush1.msra.mxu0 %v1745
    %1761 = vmatprep.subr.mxu0 0.0
    %1762 = vmatpush1.msra.mxu0 %v1746
    %1763 = vmatprep.subr.mxu0 0.0
    %1764 = vmatpush1.msra.mxu0 %v1747
    %1765 = vmatprep.subr.mxu0 0.0
    %1766 = vmatpush1.msra.mxu0 %v1748
    %1767 = vmatprep.subr.mxu0 0.0
    %1768 = vmatpush1.msra.mxu0 0.0
    %1769 = vmatprep.subr.mxu0 0.0
    %1770 = vmatpush1.msra.mxu0 0.0
    %1771 = vmatprep.subr.mxu0 0.0
    %1772 = vmatpush1.msra.mxu0 0.0
    %1773 = vmatprep.subr.mxu0 0.0
    %1774 = vmatpush1.msra.mxu0 0.0
    %1775 = vmatprep.subr.mxu0 0.0
    %1776 = vmatpush1.msra.mxu0 0.0
    %1777 = vmatprep.subr.mxu0 0.0
    %1778 = vmatpush1.msra.mxu0 0.0
    %1779 = vmatprep.subr.mxu0 0.0
    %1780 = vmatpush1.msra.mxu0 0.0
    %1781 = vmatprep.subr.mxu0 0.0
    %1782 = vmatpush1.msra.mxu0 0.0
    %1783 = vmatprep.subr.mxu0 0.0
    %1784 = vmatpush1.msra.mxu0 0.0
    %1785 = vmatprep.subr.mxu0 0.0
    %1786 = vmatpush1.msra.mxu0 0.0
    %1787 = vmatprep.subr.mxu0 0.0
    %1788 = vmatpush1.msra.mxu0 0.0
    %1789 = vmatprep.subr.mxu0 0.0
    %1790 = vmatpush1.msra.mxu0 0.0
    %1791 = vmatprep.subr.mxu0 0.0
    %1792 = vmatpush1.msra.mxu0 0.0
    %1793 = vmatprep.subr.mxu0 0.0
    %1794 = vmatpush1.msra.mxu0 0.0
    %1795 = vmatprep.subr.mxu0 0.0
    %1796 = vmatpush1.msra.mxu0 0.0
    %1797 = vmatprep.subr.mxu0 0.0
    %1798 = vmatpush1.msra.mxu0 0.0
    %1799 = vmatprep.subr.mxu0 0.0
    %1800 = vmatpush1.msra.mxu0 0.0
    %1801 = vmatprep.subr.mxu0 0.0
    %1802 = vmatpush1.msra.mxu0 0.0
    %1803 = vmatprep.subr.mxu0 0.0
    %1804 = vmatpush1.msra.mxu0 0.0
    %1805 = vmatprep.subr.mxu0 0.0
    %1806 = vmatpush1.msra.mxu0 0.0
    %1807 = vmatprep.subr.mxu0 0.0
    %1808 = vmatpush1.msra.mxu0 0.0
    %1809 = vmatprep.subr.mxu0 0.0
    %1810 = vmatpush1.msra.mxu0 0.0
    %1811 = vmatprep.subr.mxu0 0.0
    %1812 = vmatpush1.msra.mxu0 0.0
    %1813 = vmatprep.subr.mxu0 0.0
    %1814 = vmatpush1.msra.mxu0 0.0
    %1815 = vmatprep.subr.mxu0 0.0
    %1816 = vmatpush1.msra.mxu0 0.0
    %1817 = vmatprep.subr.mxu0 0.0
    %1818 = vmatpush1.msra.mxu0 0.0
    %1819 = vmatprep.subr.mxu0 0.0
    %1820 = vmatpush1.msra.mxu0 0.0
    %1821 = vmatprep.subr.mxu0 0.0
    %1822 = vmatpush1.msra.mxu0 0.0
    %1823 = vmatprep.mubr.f32.mxu0 0.0
    %1824 = vmatmul.mubr.f32.gmra.mrb[0].mxu0 %v1754
    %v1825 = vpop.f32.mrb[0].mxu0
    %v1826 = vadd.f32 %v1752, %v1825
    %v1827 = vpop.f32.mrb[0].mxu0
    %1828 = vmatprep.mubr.f32.mxu0 0.0
    %1829 = vmatmul.mubr.f32.gmra.mrb[0].mxu0 %v1757
    %v1830 = vpop.f32.mrb[0].mxu0
    %v1831 = vadd.f32 %v1752, %v1830
    %v1832 = vpop.f32.mrb[0].mxu0
    %1833 = vdwg.mxu0
    %v1834 = vadd.f32 %v1221, %v1826
    %v1835 = vadd.f32 %v1222, %v1831
    %v1836 = vsel %vm246, %v1834, 0.0
    %1837 = vadd.xlane.f32.xlu0 %v1836
    %v1838 = vpop.xlane.xlu0 %1837
    %v1839 = vsel %vm246, %v1835, 0.0
    %1840 = vadd.xlane.f32.xlu0 %v1839
    %v1841 = vpop.xlane.xlu0 %1840
    %v1842 = vmul.f32 %v1838, %v962
    %v1843 = vmul.f32 %v1841, %v962
    %v1844 = vsub.f32 %v1834, %v1842
    %v1845 = vsub.f32 %v1835, %v1843
    %v1846 = vmul.f32 %v1844, %v1844
    %v1847 = vmul.f32 %v1845, %v1845
    %v1848 = vsel %vm246, %v1846, 0.0
    %1849 = vadd.xlane.f32.xlu0 %v1848
    %v1850 = vpop.xlane.xlu0 %1849
    %v1851 = vsel %vm246, %v1847, 0.0
    %1852 = vadd.xlane.f32.xlu0 %v1851
    %v1853 = vpop.xlane.xlu0 %1852
    %v1854 = vmul.f32 %v1850, %v962
    %v1855 = vmul.f32 %v1853, %v962
    %v1856 = vadd.f32 %v1854, 1e-05
    %v1857 = vadd.f32 %v1855, 1e-05
    %v1858 = vrsqrt.pop %v1856
    %v1859 = vrsqrt.pop %v1857
    %v1860 = vmul.f32 %v1844, %v1858
    %v1861 = vmul.f32 %v1845, %v1859
    %v1862 = vlaneseq
    %v1863 = vshrl.u32 %v1862, 7
    %v1864 = vsub.s32 2, %v1863
    %v1865 = vrot.slane %v1224, %v1864
    %v1866 = vmul.f32 %v1860, %v1865
    %v1867 = vmul.f32 %v1861, %v1865
    %v1868 = vlaneseq
    %v1869 = vshrl.u32 %v1868, 7
    %v1870 = vsub.s32 3, %v1869
    %v1871 = vrot.slane %v1224, %v1870
    %v1872 = vadd.f32 %v1866, %v1871
    %v1873 = vadd.f32 %v1867, %v1871
    %s1874 = scalar_lea.vmem %s8, 32
    %v1875 = vld [vmem:[%s1874] sm:$0xff]
    %v1876 = vld [vmem:[%s1874 + $0x8] sm:$0xff]
    %v1877 = vld [vmem:[%s1874 + $0x10] sm:$0xff]
    %v1878 = vld [vmem:[%s1874 + $0x18] sm:$0xff]
    %s1879 = scalar_lea.vmem [#allocation5], 1
    %v1880 = vld [vmem:[%s1879] sm:$0x1]
    %v1882 = vlaneseq
    %v1883 = vshrl.u32 %v1882, 7
    %v1884 = vsub.s32 0, %v1883
    %v1885 = vrot.slane %v1880, %v1884
    %v1888 = vsel %vm246, %v1872, 0
    %v1891 = vsel %vm246, %v1873, 0
    %1893 = vmatprep.subr.mxu0 0.0
    %1894 = vmatpush1.msra.mxu0 %v1875
    %1895 = vmatprep.subr.mxu0 0.0
    %1896 = vmatpush1.msra.mxu0 %v1876
    %1897 = vmatprep.subr.mxu0 0.0
    %1898 = vmatpush1.msra.mxu0 %v1877
    %1899 = vmatprep.subr.mxu0 0.0
    %1900 = vmatpush1.msra.mxu0 %v1878
    %1901 = vmatprep.subr.mxu0 0.0
    %1902 = vmatpush1.msra.mxu0 0.0
    %1903 = vmatprep.subr.mxu0 0.0
    %1904 = vmatpush1.msra.mxu0 0.0
    %1905 = vmatprep.subr.mxu0 0.0
    %1906 = vmatpush1.msra.mxu0 0.0
    %1907 = vmatprep.subr.mxu0 0.0
    %1908 = vmatpush1.msra.mxu0 0.0
    %1909 = vmatprep.subr.mxu0 0.0
    %1910 = vmatpush1.msra.mxu0 0.0
    %1911 = vmatprep.subr.mxu0 0.0
    %1912 = vmatpush1.msra.mxu0 0.0
    %1913 = vmatprep.subr.mxu0 0.0
    %1914 = vmatpush1.msra.mxu0 0.0
    %1915 = vmatprep.subr.mxu0 0.0
    %1916 = vmatpush1.msra.mxu0 0.0
    %1917 = vmatprep.subr.mxu0 0.0
    %1918 = vmatpush1.msra.mxu0 0.0
    %1919 = vmatprep.subr.mxu0 0.0
    %1920 = vmatpush1.msra.mxu0 0.0
    %1921 = vmatprep.subr.mxu0 0.0
    %1922 = vmatpush1.msra.mxu0 0.0
    %1923 = vmatprep.subr.mxu0 0.0
    %1924 = vmatpush1.msra.mxu0 0.0
    %1925 = vmatprep.subr.mxu0 0.0
    %1926 = vmatpush1.msra.mxu0 0.0
    %1927 = vmatprep.subr.mxu0 0.0
    %1928 = vmatpush1.msra.mxu0 0.0
    %1929 = vmatprep.subr.mxu0 0.0
    %1930 = vmatpush1.msra.mxu0 0.0
    %1931 = vmatprep.subr.mxu0 0.0
    %1932 = vmatpush1.msra.mxu0 0.0
    %1933 = vmatprep.subr.mxu0 0.0
    %1934 = vmatpush1.msra.mxu0 0.0
    %1935 = vmatprep.subr.mxu0 0.0
    %1936 = vmatpush1.msra.mxu0 0.0
    %1937 = vmatprep.subr.mxu0 0.0
    %1938 = vmatpush1.msra.mxu0 0.0
    %1939 = vmatprep.subr.mxu0 0.0
    %1940 = vmatpush1.msra.mxu0 0.0
    %1941 = vmatprep.subr.mxu0 0.0
    %1942 = vmatpush1.msra.mxu0 0.0
    %1943 = vmatprep.subr.mxu0 0.0
    %1944 = vmatpush1.msra.mxu0 0.0
    %1945 = vmatprep.subr.mxu0 0.0
    %1946 = vmatpush1.msra.mxu0 0.0
    %1947 = vmatprep.subr.mxu0 0.0
    %1948 = vmatpush1.msra.mxu0 0.0
    %1949 = vmatprep.subr.mxu0 0.0
    %1950 = vmatpush1.msra.mxu0 0.0
    %1951 = vmatprep.subr.mxu0 0.0
    %1952 = vmatpush1.msra.mxu0 0.0
    %1953 = vmatprep.subr.mxu0 0.0
    %1954 = vmatpush1.msra.mxu0 0.0
    %1955 = vmatprep.subr.mxu0 0.0
    %1956 = vmatpush1.msra.mxu0 0.0
    %1957 = vmatprep.mubr.f32.mxu0 0.0
    %1958 = vmatmul.mubr.f32.gmra.mrb[0].mxu0 %v1888
    %v1959 = vpop.f32.mrb[0].mxu0
    %v1960 = vadd.f32 %v1885, %v1959
    %v1961 = vpop.f32.mrb[0].mxu0
    %1962 = vmatprep.mubr.f32.mxu0 0.0
    %1963 = vmatmul.mubr.f32.gmra.mrb[0].mxu0 %v1891
    %v1964 = vpop.f32.mrb[0].mxu0
    %v1965 = vadd.f32 %v1885, %v1964
    %v1966 = vpop.f32.mrb[0].mxu0
    %1967 = vdwg.mxu0
    %v1968 = vmax.f32 %v1960, 0.0
    %v1969 = vmax.f32 %v1965, 0.0
    %s1970 = scalar_lea.vmem %s10, 64
    %v1971 = vld [vmem:[%s1970] sm:$0xff]
    %v1972 = vld [vmem:[%s1970 + $0x8] sm:$0xff]
    %v1973 = vld [vmem:[%s1970 + $0x10] sm:$0xff]
    %v1974 = vld [vmem:[%s1970 + $0x18] sm:$0xff]
    %v1975 = vld [vmem:[%s1970 + $0x20] sm:$0xff]
    %v1976 = vld [vmem:[%s1970 + $0x28] sm:$0xff]
    %v1977 = vld [vmem:[%s1970 + $0x30] sm:$0xff]
    %v1978 = vld [vmem:[%s1970 + $0x38] sm:$0xff]
    %v1979 = vlaneseq
    %v1980 = vshrl.u32 %v1979, 7
    %v1981 = vsub.s32 1, %v1980
    %v1982 = vrot.slane %v1224, %v1981
    %v1984 = vsel %vm1101, %v1968, 0
    %v1987 = vsel %vm1101, %v1969, 0
    %1989 = vmatprep.subr.mxu0 0.0
    %1990 = vmatpush1.msra.mxu0 %v1971
    %1991 = vmatprep.subr.mxu0 0.0
    %1992 = vmatpush1.msra.mxu0 %v1972
    %1993 = vmatprep.subr.mxu0 0.0
    %1994 = vmatpush1.msra.mxu0 %v1973
    %1995 = vmatprep.subr.mxu0 0.0
    %1996 = vmatpush1.msra.mxu0 %v1974
    %1997 = vmatprep.subr.mxu0 0.0
    %1998 = vmatpush1.msra.mxu0 %v1975
    %1999 = vmatprep.subr.mxu0 0.0
    %2000 = vmatpush1.msra.mxu0 %v1976
    %2001 = vmatprep.subr.mxu0 0.0
    %2002 = vmatpush1.msra.mxu0 %v1977
    %2003 = vmatprep.subr.mxu0 0.0
    %2004 = vmatpush1.msra.mxu0 %v1978
    %2005 = vmatprep.subr.mxu0 0.0
    %2006 = vmatpush1.msra.mxu0 0.0
    %2007 = vmatprep.subr.mxu0 0.0
    %2008 = vmatpush1.msra.mxu0 0.0
    %2009 = vmatprep.subr.mxu0 0.0
    %2010 = vmatpush1.msra.mxu0 0.0
    %2011 = vmatprep.subr.mxu0 0.0
    %2012 = vmatpush1.msra.mxu0 0.0
    %2013 = vmatprep.subr.mxu0 0.0
    %2014 = vmatpush1.msra.mxu0 0.0
    %2015 = vmatprep.subr.mxu0 0.0
    %2016 = vmatpush1.msra.mxu0 0.0
    %2017 = vmatprep.subr.mxu0 0.0
    %2018 = vmatpush1.msra.mxu0 0.0
    %2019 = vmatprep.subr.mxu0 0.0
    %2020 = vmatpush1.msra.mxu0 0.0
    %2021 = vmatprep.subr.mxu0 0.0
    %2022 = vmatpush1.msra.mxu0 0.0
    %2023 = vmatprep.subr.mxu0 0.0
    %2024 = vmatpush1.msra.mxu0 0.0
    %2025 = vmatprep.subr.mxu0 0.0
    %2026 = vmatpush1.msra.mxu0 0.0
    %2027 = vmatprep.subr.mxu0 0.0
    %2028 = vmatpush1.msra.mxu0 0.0
    %2029 = vmatprep.subr.mxu0 0.0
    %2030 = vmatpush1.msra.mxu0 0.0
    %2031 = vmatprep.subr.mxu0 0.0
    %2032 = vmatpush1.msra.mxu0 0.0
    %2033 = vmatprep.subr.mxu0 0.0
    %2034 = vmatpush1.msra.mxu0 0.0
    %2035 = vmatprep.subr.mxu0 0.0
    %2036 = vmatpush1.msra.mxu0 0.0
    %2037 = vmatprep.subr.mxu0 0.0
    %2038 = vmatpush1.msra.mxu0 0.0
    %2039 = vmatprep.subr.mxu0 0.0
    %2040 = vmatpush1.msra.mxu0 0.0
    %2041 = vmatprep.subr.mxu0 0.0
    %2042 = vmatpush1.msra.mxu0 0.0
    %2043 = vmatprep.subr.mxu0 0.0
    %2044 = vmatpush1.msra.mxu0 0.0
    %2045 = vmatprep.subr.mxu0 0.0
    %2046 = vmatpush1.msra.mxu0 0.0
    %2047 = vmatprep.subr.mxu0 0.0
    %2048 = vmatpush1.msra.mxu0 0.0
    %2049 = vmatprep.subr.mxu0 0.0
    %2050 = vmatpush1.msra.mxu0 0.0
    %2051 = vmatprep.subr.mxu0 0.0
    %2052 = vmatpush1.msra.mxu0 0.0
    %2053 = vmatprep.mubr.f32.mxu0 0.0
    %2054 = vmatmul.mubr.f32.gmra.mrb[0].mxu0 %v1984
    %v2055 = vpop.f32.mrb[0].mxu0
    %v2056 = vadd.f32 %v1982, %v2055
    %v2057 = vpop.f32.mrb[0].mxu0
    %2058 = vmatprep.mubr.f32.mxu0 0.0
    %2059 = vmatmul.mubr.f32.gmra.mrb[0].mxu0 %v1987
    %v2060 = vpop.f32.mrb[0].mxu0
    %v2061 = vadd.f32 %v1982, %v2060
    %v2062 = vpop.f32.mrb[0].mxu0
    %2063 = vdwg.mxu0
    %v2064 = vadd.f32 %v1872, %v2056
    %v2065 = vadd.f32 %v1873, %v2061
    %v2066 = vsel %vm246, %v2064, 0.0
    %2067 = vadd.xlane.f32.xlu0 %v2066
    %v2068 = vpop.xlane.xlu0 %2067
    %v2069 = vsel %vm246, %v2065, 0.0
    %2070 = vadd.xlane.f32.xlu0 %v2069
    %v2071 = vpop.xlane.xlu0 %2070
    %v2072 = vmul.f32 %v2068, %v962
    %v2073 = vmul.f32 %v2071, %v962
    %v2074 = vsub.f32 %v2064, %v2072
    %v2075 = vsub.f32 %v2065, %v2073
    %v2076 = vmul.f32 %v2074, %v2074
    %v2077 = vmul.f32 %v2075, %v2075
    %v2078 = vsel %vm246, %v2076, 0.0
    %2079 = vadd.xlane.f32.xlu0 %v2078
    %v2080 = vpop.xlane.xlu0 %2079
    %v2081 = vsel %vm246, %v2077, 0.0
    %2082 = vadd.xlane.f32.xlu0 %v2081
    %v2083 = vpop.xlane.xlu0 %2082
    %v2084 = vmul.f32 %v2080, %v962
    %v2085 = vmul.f32 %v2083, %v962
    %v2086 = vadd.f32 %v2084, 1e-05
    %v2087 = vadd.f32 %v2085, 1e-05
    %v2088 = vrsqrt.pop %v2086
    %v2089 = vrsqrt.pop %v2087
    %v2090 = vmul.f32 %v2074, %v2088
    %v2091 = vmul.f32 %v2075, %v2089
    %v2092 = vlaneseq
    %v2093 = vshrl.u32 %v2092, 7
    %v2094 = vsub.s32 4, %v2093
    %v2095 = vrot.slane %v1224, %v2094
    %v2096 = vmul.f32 %v2090, %v2095
    %v2097 = vmul.f32 %v2091, %v2095
    %v2098 = vlaneseq
    %v2099 = vshrl.u32 %v2098, 7
    %v2100 = vsub.s32 5, %v2099
    %v2101 = vrot.slane %v1224, %v2100
    %v2102 = vadd.f32 %v2096, %v2101
    %v2103 = vadd.f32 %v2097, %v2101
    %s2104 = scalar_lea.vmem %s11, 16
    %v2105 = vld [vmem:[%s2104] sm:$0xff]
    %s2106 = scalar_lea.vmem %s5, 64
    %v2107 = vld [vmem:[%s2106] sm:$0xff]
    %v2108 = vld [vmem:[%s2106 + $0x8] sm:$0xff]
    %v2109 = vld [vmem:[%s2106 + $0x10] sm:$0xff]
    %v2110 = vld [vmem:[%s2106 + $0x18] sm:$0xff]
    %s2111 = scalar_lea.vmem [#allocation2], 2
    %v2112 = vld [vmem:[%s2111] sm:$0x1]
    %v2114 = vlaneseq
    %v2115 = vshrl.u32 %v2114, 7
    %v2116 = vsub.s32 0, %v2115
    %v2117 = vrot.slane %v2112, %v2116
    %v2120 = vsel %vm246, %v2102, 0
    %v2123 = vsel %vm246, %v2103, 0
    %2125 = vmatprep.subr.mxu0 0.0
    %2126 = vmatpush1.msra.mxu0 %v2107
    %2127 = vmatprep.subr.mxu0 0.0
    %2128 = vmatpush1.msra.mxu0 %v2108
    %2129 = vmatprep.subr.mxu0 0.0
    %2130 = vmatpush1.msra.mxu0 %v2109
    %2131 = vmatprep.subr.mxu0 0.0
    %2132 = vmatpush1.msra.mxu0 %v2110
    %2133 = vmatprep.subr.mxu0 0.0
    %2134 = vmatpush1.msra.mxu0 0.0
    %2135 = vmatprep.subr.mxu0 0.0
    %2136 = vmatpush1.msra.mxu0 0.0
    %2137 = vmatprep.subr.mxu0 0.0
    %2138 = vmatpush1.msra.mxu0 0.0
    %2139 = vmatprep.subr.mxu0 0.0
    %2140 = vmatpush1.msra.mxu0 0.0
    %2141 = vmatprep.subr.mxu0 0.0
    %2142 = vmatpush1.msra.mxu0 0.0
    %2143 = vmatprep.subr.mxu0 0.0
    %2144 = vmatpush1.msra.mxu0 0.0
    %2145 = vmatprep.subr.mxu0 0.0
    %2146 = vmatpush1.msra.mxu0 0.0
    %2147 = vmatprep.subr.mxu0 0.0
    %2148 = vmatpush1.msra.mxu0 0.0
    %2149 = vmatprep.subr.mxu0 0.0
    %2150 = vmatpush1.msra.mxu0 0.0
    %2151 = vmatprep.subr.mxu0 0.0
    %2152 = vmatpush1.msra.mxu0 0.0
    %2153 = vmatprep.subr.mxu0 0.0
    %2154 = vmatpush1.msra.mxu0 0.0
    %2155 = vmatprep.subr.mxu0 0.0
    %2156 = vmatpush1.msra.mxu0 0.0
    %2157 = vmatprep.subr.mxu0 0.0
    %2158 = vmatpush1.msra.mxu0 0.0
    %2159 = vmatprep.subr.mxu0 0.0
    %2160 = vmatpush1.msra.mxu0 0.0
    %2161 = vmatprep.subr.mxu0 0.0
    %2162 = vmatpush1.msra.mxu0 0.0
    %2163 = vmatprep.subr.mxu0 0.0
    %2164 = vmatpush1.msra.mxu0 0.0
    %2165 = vmatprep.subr.mxu0 0.0
    %2166 = vmatpush1.msra.mxu0 0.0
    %2167 = vmatprep.subr.mxu0 0.0
    %2168 = vmatpush1.msra.mxu0 0.0
    %2169 = vmatprep.subr.mxu0 0.0
    %2170 = vmatpush1.msra.mxu0 0.0
    %2171 = vmatprep.subr.mxu0 0.0
    %2172 = vmatpush1.msra.mxu0 0.0
    %2173 = vmatprep.subr.mxu0 0.0
    %2174 = vmatpush1.msra.mxu0 0.0
    %2175 = vmatprep.subr.mxu0 0.0
    %2176 = vmatpush1.msra.mxu0 0.0
    %2177 = vmatprep.subr.mxu0 0.0
    %2178 = vmatpush1.msra.mxu0 0.0
    %2179 = vmatprep.subr.mxu0 0.0
    %2180 = vmatpush1.msra.mxu0 0.0
    %2181 = vmatprep.subr.mxu0 0.0
    %2182 = vmatpush1.msra.mxu0 0.0
    %2183 = vmatprep.subr.mxu0 0.0
    %2184 = vmatpush1.msra.mxu0 0.0
    %2185 = vmatprep.subr.mxu0 0.0
    %2186 = vmatpush1.msra.mxu0 0.0
    %2187 = vmatprep.subr.mxu0 0.0
    %2188 = vmatpush1.msra.mxu0 0.0
    %2189 = vmatprep.mubr.f32.mxu0 0.0
    %2190 = vmatmul.mubr.f32.gmra.mrb[0].mxu0 %v2120
    %v2191 = vpop.f32.mrb[0].mxu0
    %v2192 = vadd.f32 %v2117, %v2191
    %v2193 = vpop.f32.mrb[0].mxu0
    %2194 = vmatprep.mubr.f32.mxu0 0.0
    %2195 = vmatmul.mubr.f32.gmra.mrb[0].mxu0 %v2123
    %v2196 = vpop.f32.mrb[0].mxu0
    %v2197 = vadd.f32 %v2117, %v2196
    %v2198 = vpop.f32.mrb[0].mxu0
    %2199 = vdwg.mxu0
    %v2200 = vmul.f32 %v2192, 0.5
    %v2201 = vmul.f32 %v2197, 0.5
    %v2202 = vmul.f32 %v2192, %v347
    %v2203 = vmul.f32 %v2197, %v349
    %v2204 = vmul.f32 %v2192, %v351
    %v2205 = vmul.f32 %v2197, %v353
    %v2206 = vmul.f32 %v2192, %v355
    %v2207 = vmul.f32 %v2197, %v357
    %v2208 = vmul.f32 %v2192, %v359
    %v2209 = vmul.f32 %v2197, %v361
    %v2210 = vmul.f32 %v2192, %v363
    %v2211 = vmul.f32 %v2197, %v365
    %v2212 = vmul.f32 %v2192, %v367
    %v2213 = vmul.f32 %v2197, %v369
    %v2214 = vmul.f32 %v2192, %v371
    %v2215 = vmul.f32 %v2197, %v373
    %v2216 = vmul.f32 %v2192, %v375
    %v2217 = vmul.f32 %v2197, %v377
    %v2218 = vmul.f32 %v2192, %v411
    %v2219 = vmul.f32 %v2197, %v413
    %v2220 = vmul.f32 %v2192, %v415
    %v2221 = vmul.f32 %v2197, %v417
    %v2222 = vmul.f32 %v2192, %v419
    %v2223 = vmul.f32 %v2197, %v421
    %v2224 = vmul.f32 %v2192, %v423
    %v2225 = vmul.f32 %v2197, %v425
    %v2226 = vmul.f32 %v2192, %v427
    %v2227 = vmul.f32 %v2197, %v429
    %v2228 = vmul.f32 %v2192, %v431
    %v2229 = vmul.f32 %v2197, %v433
    %v2230 = vmul.f32 %v2192, %v435
    %v2231 = vmul.f32 %v2197, %v437
    %v2232 = vmul.f32 %v2192, %v439
    %v2233 = vmul.f32 %v2197, %v441
    %2250 = vrot.lane.b32.xlu0 %v2202, 96
    %v2251 = vpop.permute.xlu0 %2250
    %2252 = vrot.lane.b32.xlu0 %v2203, 96
    %v2253 = vpop.permute.xlu0 %2252
    %2254 = vrot.lane.b32.xlu0 %v2204, 96
    %v2255 = vpop.permute.xlu0 %2254
    %2256 = vrot.lane.b32.xlu0 %v2205, 96
    %v2257 = vpop.permute.xlu0 %2256
    %2258 = vrot.lane.b32.xlu0 %v2206, 96
    %v2259 = vpop.permute.xlu0 %2258
    %2260 = vrot.lane.b32.xlu0 %v2207, 96
    %v2261 = vpop.permute.xlu0 %2260
    %2262 = vrot.lane.b32.xlu0 %v2208, 96
    %v2263 = vpop.permute.xlu0 %2262
    %2264 = vrot.lane.b32.xlu0 %v2209, 96
    %v2265 = vpop.permute.xlu0 %2264
    %2266 = vrot.lane.b32.xlu0 %v2210, 96
    %v2267 = vpop.permute.xlu0 %2266
    %2268 = vrot.lane.b32.xlu0 %v2211, 96
    %v2269 = vpop.permute.xlu0 %2268
    %2270 = vrot.lane.b32.xlu0 %v2212, 96
    %v2271 = vpop.permute.xlu0 %2270
    %2272 = vrot.lane.b32.xlu0 %v2213, 96
    %v2273 = vpop.permute.xlu0 %2272
    %2274 = vrot.lane.b32.xlu0 %v2214, 96
    %v2275 = vpop.permute.xlu0 %2274
    %2276 = vrot.lane.b32.xlu0 %v2215, 96
    %v2277 = vpop.permute.xlu0 %2276
    %2278 = vrot.lane.b32.xlu0 %v2216, 96
    %v2279 = vpop.permute.xlu0 %2278
    %2280 = vrot.lane.b32.xlu0 %v2217, 96
    %v2281 = vpop.permute.xlu0 %2280
    %v2283 = vsel %vm246, %v2200, 0
    %v2286 = vsel %vm246, %v2201, 0
    %v2288 = vsel %vm246, %v2251, 0
    %v2290 = vsel %vm246, %v2253, 0
    %v2292 = vsel %vm246, %v2255, 0
    %v2294 = vsel %vm246, %v2257, 0
    %v2296 = vsel %vm246, %v2259, 0
    %v2298 = vsel %vm246, %v2261, 0
    %v2300 = vsel %vm246, %v2263, 0
    %v2302 = vsel %vm246, %v2265, 0
    %v2304 = vsel %vm246, %v2267, 0
    %v2306 = vsel %vm246, %v2269, 0
    %v2308 = vsel %vm246, %v2271, 0
    %v2310 = vsel %vm246, %v2273, 0
    %v2312 = vsel %vm246, %v2275, 0
    %v2314 = vsel %vm246, %v2277, 0
    %v2316 = vsel %vm246, %v2279, 0
    %v2318 = vsel %vm246, %v2281, 0
    %2320 = vmatprep.subr.mxu0 0.0
    %2321 = vmatpush1.xpose.msra.mxu0 %v2288
    %2322 = vmatprep.subr.mxu0 0.0
    %2323 = vmatpush1.xpose.msra.mxu0 %v2290
    %2324 = vmatprep.subr.mxu0 0.0
    %2325 = vmatpush1.xpose.msra.mxu0 %v2292
    %2326 = vmatprep.subr.mxu0 0.0
    %2327 = vmatpush1.xpose.msra.mxu0 %v2294
    %2328 = vmatprep.subr.mxu0 0.0
    %2329 = vmatpush1.xpose.msra.mxu0 %v2296
    %2330 = vmatprep.subr.mxu0 0.0
    %2331 = vmatpush1.xpose.msra.mxu0 %v2298
    %2332 = vmatprep.subr.mxu0 0.0
    %2333 = vmatpush1.xpose.msra.mxu0 %v2300
    %2334 = vmatprep.subr.mxu0 0.0
    %2335 = vmatpush1.xpose.msra.mxu0 %v2302
    %2336 = vmatprep.subr.mxu0 0.0
    %2337 = vmatpush1.xpose.msra.mxu0 %v2304
    %2338 = vmatprep.subr.mxu0 0.0
    %2339 = vmatpush1.xpose.msra.mxu0 %v2306
    %2340 = vmatprep.subr.mxu0 0.0
    %2341 = vmatpush1.xpose.msra.mxu0 %v2308
    %2342 = vmatprep.subr.mxu0 0.0
    %2343 = vmatpush1.xpose.msra.mxu0 %v2310
    %2344 = vmatprep.subr.mxu0 0.0
    %2345 = vmatpush1.xpose.msra.mxu0 %v2312
    %2346 = vmatprep.subr.mxu0 0.0
    %2347 = vmatpush1.xpose.msra.mxu0 %v2314
    %2348 = vmatprep.subr.mxu0 0.0
    %2349 = vmatpush1.xpose.msra.mxu0 %v2316
    %2350 = vmatprep.subr.mxu0 0.0
    %2351 = vmatpush1.xpose.msra.mxu0 %v2318
    %2352 = vmatprep.subr.mxu0 0.0
    %2353 = vmatpush1.xpose.msra.mxu0 0.0
    %2354 = vmatprep.subr.mxu0 0.0
    %2355 = vmatpush1.xpose.msra.mxu0 0.0
    %2356 = vmatprep.subr.mxu0 0.0
    %2357 = vmatpush1.xpose.msra.mxu0 0.0
    %2358 = vmatprep.subr.mxu0 0.0
    %2359 = vmatpush1.xpose.msra.mxu0 0.0
    %2360 = vmatprep.subr.mxu0 0.0
    %2361 = vmatpush1.xpose.msra.mxu0 0.0
    %2362 = vmatprep.subr.mxu0 0.0
    %2363 = vmatpush1.xpose.msra.mxu0 0.0
    %2364 = vmatprep.subr.mxu0 0.0
    %2365 = vmatpush1.xpose.msra.mxu0 0.0
    %2366 = vmatprep.subr.mxu0 0.0
    %2367 = vmatpush1.xpose.msra.mxu0 0.0
    %2368 = vmatprep.subr.mxu0 0.0
    %2369 = vmatpush1.xpose.msra.mxu0 0.0
    %2370 = vmatprep.subr.mxu0 0.0
    %2371 = vmatpush1.xpose.msra.mxu0 0.0
    %2372 = vmatprep.subr.mxu0 0.0
    %2373 = vmatpush1.xpose.msra.mxu0 0.0
    %2374 = vmatprep.subr.mxu0 0.0
    %2375 = vmatpush1.xpose.msra.mxu0 0.0
    %2376 = vmatprep.subr.mxu0 0.0
    %2377 = vmatpush1.xpose.msra.mxu0 0.0
    %2378 = vmatprep.subr.mxu0 0.0
    %2379 = vmatpush1.xpose.msra.mxu0 0.0
    %2380 = vmatprep.subr.mxu0 0.0
    %2381 = vmatpush1.xpose.msra.mxu0 0.0
    %2382 = vmatprep.subr.mxu0 0.0
    %2383 = vmatpush1.xpose.msra.mxu0 0.0
    %2384 = vmatprep.mubr.f32.mxu0 0.0
    %2385 = vmatmul.mubr.f32.gmra.mrb[0].mxu0 %v2283
    %v2386 = vpop.f32.mrb[0].mxu0
    %v2387 = vadd.f32 %v232, %v2386
    %v2388 = vpop.f32.mrb[0].mxu0
    %2389 = vmatprep.mubr.f32.mxu0 0.0
    %2390 = vmatmul.mubr.f32.gmra.mrb[0].mxu0 %v2286
    %v2391 = vpop.f32.mrb[0].mxu0
    %v2392 = vadd.f32 %v233, %v2391
    %v2393 = vpop.f32.mrb[0].mxu0
    %2394 = vdwg.mxu0
    %2395 = vmax.xlane.f32.xlu0 %v2387
    %v2396 = vpop.xlane.xlu0 %2395
    %2397 = vmax.xlane.f32.xlu0 %v2392
    %v2398 = vpop.xlane.xlu0 %2397
    %v2399 = vsub.f32 %v2387, %v2396
    %v2400 = vsub.f32 %v2392, %v2398
    %v2401 = vmul.f32 %v2399, 1.442695
    %v2402 = vpow.pop %v2401
    %v2403 = vmul.f32 %v2400, 1.442695
    %v2404 = vpow.pop %v2403
    %2421 = vrot.lane.b32.xlu0 %v2218, 64
    %v2422 = vpop.permute.xlu0 %2421
    %2423 = vrot.lane.b32.xlu0 %v2219, 64
    %v2424 = vpop.permute.xlu0 %2423
    %2425 = vrot.lane.b32.xlu0 %v2220, 64
    %v2426 = vpop.permute.xlu0 %2425
    %2427 = vrot.lane.b32.xlu0 %v2221, 64
    %v2428 = vpop.permute.xlu0 %2427
    %2429 = vrot.lane.b32.xlu0 %v2222, 64
    %v2430 = vpop.permute.xlu0 %2429
    %2431 = vrot.lane.b32.xlu0 %v2223, 64
    %v2432 = vpop.permute.xlu0 %2431
    %2433 = vrot.lane.b32.xlu0 %v2224, 64
    %v2434 = vpop.permute.xlu0 %2433
    %2435 = vrot.lane.b32.xlu0 %v2225, 64
    %v2436 = vpop.permute.xlu0 %2435
    %2437 = vrot.lane.b32.xlu0 %v2226, 64
    %v2438 = vpop.permute.xlu0 %2437
    %2439 = vrot.lane.b32.xlu0 %v2227, 64
    %v2440 = vpop.permute.xlu0 %2439
    %2441 = vrot.lane.b32.xlu0 %v2228, 64
    %v2442 = vpop.permute.xlu0 %2441
    %2443 = vrot.lane.b32.xlu0 %v2229, 64
    %v2444 = vpop.permute.xlu0 %2443
    %2445 = vrot.lane.b32.xlu0 %v2230, 64
    %v2446 = vpop.permute.xlu0 %2445
    %2447 = vrot.lane.b32.xlu0 %v2231, 64
    %v2448 = vpop.permute.xlu0 %2447
    %2449 = vrot.lane.b32.xlu0 %v2232, 64
    %v2450 = vpop.permute.xlu0 %2449
    %2451 = vrot.lane.b32.xlu0 %v2233, 64
    %v2452 = vpop.permute.xlu0 %2451
    %2469 = vmatprep.subr.mxu0 0.0
    %2470 = vmatpush1.msra.mxu0 %v2422
    %2471 = vmatprep.subr.mxu0 0.0
    %2472 = vmatpush1.msra.mxu0 %v2424
    %2473 = vmatprep.subr.mxu0 0.0
    %2474 = vmatpush1.msra.mxu0 %v2426
    %2475 = vmatprep.subr.mxu0 0.0
    %2476 = vmatpush1.msra.mxu0 %v2428
    %2477 = vmatprep.subr.mxu0 0.0
    %2478 = vmatpush1.msra.mxu0 %v2430
    %2479 = vmatprep.subr.mxu0 0.0
    %2480 = vmatpush1.msra.mxu0 %v2432
    %2481 = vmatprep.subr.mxu0 0.0
    %2482 = vmatpush1.msra.mxu0 %v2434
    %2483 = vmatprep.subr.mxu0 0.0
    %2484 = vmatpush1.msra.mxu0 %v2436
    %2485 = vmatprep.subr.mxu0 0.0
    %2486 = vmatpush1.msra.mxu0 %v2438
    %2487 = vmatprep.subr.mxu0 0.0
    %2488 = vmatpush1.msra.mxu0 %v2440
    %2489 = vmatprep.subr.mxu0 0.0
    %2490 = vmatpush1.msra.mxu0 %v2442
    %2491 = vmatprep.subr.mxu0 0.0
    %2492 = vmatpush1.msra.mxu0 %v2444
    %2493 = vmatprep.subr.mxu0 0.0
    %2494 = vmatpush1.msra.mxu0 %v2446
    %2495 = vmatprep.subr.mxu0 0.0
    %2496 = vmatpush1.msra.mxu0 %v2448
    %2497 = vmatprep.subr.mxu0 0.0
    %2498 = vmatpush1.msra.mxu0 %v2450
    %2499 = vmatprep.subr.mxu0 0.0
    %2500 = vmatpush1.msra.mxu0 %v2452
    %2501 = vmatprep.subr.mxu0 0.0
    %2502 = vmatpush1.msra.mxu0 0.0
    %2503 = vmatprep.subr.mxu0 0.0
    %2504 = vmatpush1.msra.mxu0 0.0
    %2505 = vmatprep.subr.mxu0 0.0
    %2506 = vmatpush1.msra.mxu0 0.0
    %2507 = vmatprep.subr.mxu0 0.0
    %2508 = vmatpush1.msra.mxu0 0.0
    %2509 = vmatprep.subr.mxu0 0.0
    %2510 = vmatpush1.msra.mxu0 0.0
    %2511 = vmatprep.subr.mxu0 0.0
    %2512 = vmatpush1.msra.mxu0 0.0
    %2513 = vmatprep.subr.mxu0 0.0
    %2514 = vmatpush1.msra.mxu0 0.0
    %2515 = vmatprep.subr.mxu0 0.0
    %2516 = vmatpush1.msra.mxu0 0.0
    %2517 = vmatprep.subr.mxu0 0.0
    %2518 = vmatpush1.msra.mxu0 0.0
    %2519 = vmatprep.subr.mxu0 0.0
    %2520 = vmatpush1.msra.mxu0 0.0
    %2521 = vmatprep.subr.mxu0 0.0
    %2522 = vmatpush1.msra.mxu0 0.0
    %2523 = vmatprep.subr.mxu0 0.0
    %2524 = vmatpush1.msra.mxu0 0.0
    %2525 = vmatprep.subr.mxu0 0.0
    %2526 = vmatpush1.msra.mxu0 0.0
    %2527 = vmatprep.subr.mxu0 0.0
    %2528 = vmatpush1.msra.mxu0 0.0
    %2529 = vmatprep.subr.mxu0 0.0
    %2530 = vmatpush1.msra.mxu0 0.0
    %2531 = vmatprep.subr.mxu0 0.0
    %2532 = vmatpush1.msra.mxu0 0.0
    %2533 = vmatprep.mubr.f32.mxu0 0.0
    %2534 = vmatmul.mubr.f32.gmra.mrb[0].mxu0 %v2402
    %v2535 = vpop.f32.mrb[0].mxu0
    %v2536 = vadd.f32 0.0, %v2535
    %v2537 = vpop.f32.mrb[0].mxu0
    %2538 = vmatprep.mubr.f32.mxu0 0.0
    %2539 = vmatmul.mubr.f32.gmra.mrb[0].mxu0 %v2404
    %v2540 = vpop.f32.mrb[0].mxu0
    %v2541 = vadd.f32 0.0, %v2540
    %v2542 = vpop.f32.mrb[0].mxu0
    %2543 = vdwg.mxu0
    %2544 = vmatprep.subr.mxu0 0.0
    %2545 = vmatpush1.msra.mxu0 %v216
    %2546 = vmatprep.subr.mxu0 0.0
    %2547 = vmatpush1.msra.mxu0 %v217
    %2548 = vmatprep.subr.mxu0 0.0
    %2549 = vmatpush1.msra.mxu0 %v218
    %2550 = vmatprep.subr.mxu0 0.0
    %2551 = vmatpush1.msra.mxu0 %v219
    %2552 = vmatprep.subr.mxu0 0.0
    %2553 = vmatpush1.msra.mxu0 %v220
    %2554 = vmatprep.subr.mxu0 0.0
    %2555 = vmatpush1.msra.mxu0 %v221
    %2556 = vmatprep.subr.mxu0 0.0
    %2557 = vmatpush1.msra.mxu0 %v222
    %2558 = vmatprep.subr.mxu0 0.0
    %2559 = vmatpush1.msra.mxu0 %v223
    %2560 = vmatprep.subr.mxu0 0.0
    %2561 = vmatpush1.msra.mxu0 %v224
    %2562 = vmatprep.subr.mxu0 0.0
    %2563 = vmatpush1.msra.mxu0 %v225
    %2564 = vmatprep.subr.mxu0 0.0
    %2565 = vmatpush1.msra.mxu0 %v226
    %2566 = vmatprep.subr.mxu0 0.0
    %2567 = vmatpush1.msra.mxu0 %v227
    %2568 = vmatprep.subr.mxu0 0.0
    %2569 = vmatpush1.msra.mxu0 %v228
    %2570 = vmatprep.subr.mxu0 0.0
    %2571 = vmatpush1.msra.mxu0 %v229
    %2572 = vmatprep.subr.mxu0 0.0
    %2573 = vmatpush1.msra.mxu0 %v230
    %2574 = vmatprep.subr.mxu0 0.0
    %2575 = vmatpush1.msra.mxu0 %v231
    %2576 = vmatprep.subr.mxu0 0.0
    %2577 = vmatpush1.msra.mxu0 0.0
    %2578 = vmatprep.subr.mxu0 0.0
    %2579 = vmatpush1.msra.mxu0 0.0
    %2580 = vmatprep.subr.mxu0 0.0
    %2581 = vmatpush1.msra.mxu0 0.0
    %2582 = vmatprep.subr.mxu0 0.0
    %2583 = vmatpush1.msra.mxu0 0.0
    %2584 = vmatprep.subr.mxu0 0.0
    %2585 = vmatpush1.msra.mxu0 0.0
    %2586 = vmatprep.subr.mxu0 0.0
    %2587 = vmatpush1.msra.mxu0 0.0
    %2588 = vmatprep.subr.mxu0 0.0
    %2589 = vmatpush1.msra.mxu0 0.0
    %2590 = vmatprep.subr.mxu0 0.0
    %2591 = vmatpush1.msra.mxu0 0.0
    %2592 = vmatprep.subr.mxu0 0.0
    %2593 = vmatpush1.msra.mxu0 0.0
    %2594 = vmatprep.subr.mxu0 0.0
    %2595 = vmatpush1.msra.mxu0 0.0
    %2596 = vmatprep.subr.mxu0 0.0
    %2597 = vmatpush1.msra.mxu0 0.0
    %2598 = vmatprep.subr.mxu0 0.0
    %2599 = vmatpush1.msra.mxu0 0.0
    %2600 = vmatprep.subr.mxu0 0.0
    %2601 = vmatpush1.msra.mxu0 0.0
    %2602 = vmatprep.subr.mxu0 0.0
    %2603 = vmatpush1.msra.mxu0 0.0
    %2604 = vmatprep.subr.mxu0 0.0
    %2605 = vmatpush1.msra.mxu0 0.0
    %2606 = vmatprep.subr.mxu0 0.0
    %2607 = vmatpush1.msra.mxu0 0.0
    %2608 = vmatprep.mubr.f32.mxu0 0.0
    %2609 = vmatmul.mubr.f32.gmra.mrb[0].mxu0 %v2402
    %v2610 = vpop.f32.mrb[0].mxu0
    %v2611 = vadd.f32 0.0, %v2610
    %v2612 = vpop.f32.mrb[0].mxu0
    %2613 = vmatprep.mubr.f32.mxu0 0.0
    %2614 = vmatmul.mubr.f32.gmra.mrb[0].mxu0 %v2404
    %v2615 = vpop.f32.mrb[0].mxu0
    %v2616 = vadd.f32 0.0, %v2615
    %v2617 = vpop.f32.mrb[0].mxu0
    %2618 = vdwg.mxu0
    %v2619 = vmax.f32 %v2611, 1e-20
    %v2620 = vmax.f32 %v2616, 1e-20
    %v2621 = vrcp.pop %v2619
    %v2622 = vrcp.pop %v2620
    %v2623 = vmul.f32 %v2536, %v2621
    %v2624 = vmul.f32 %v2541, %v2622
    %s2625 = scalar_lea.vmem %s7, 64
    %v2626 = vld [vmem:[%s2625] sm:$0xff]
    %v2627 = vld [vmem:[%s2625 + $0x8] sm:$0xff]
    %v2628 = vld [vmem:[%s2625 + $0x10] sm:$0xff]
    %v2629 = vld [vmem:[%s2625 + $0x18] sm:$0xff]
    %v2630 = vlaneseq
    %v2631 = vshrl.u32 %v2630, 7
    %v2632 = vsub.s32 0, %v2631
    %v2633 = vrot.slane %v2105, %v2632
    %v2635 = vsel %vm246, %v2623, 0
    %v2638 = vsel %vm246, %v2624, 0
    %2640 = vmatprep.subr.mxu0 0.0
    %2641 = vmatpush1.msra.mxu0 %v2626
    %2642 = vmatprep.subr.mxu0 0.0
    %2643 = vmatpush1.msra.mxu0 %v2627
    %2644 = vmatprep.subr.mxu0 0.0
    %2645 = vmatpush1.msra.mxu0 %v2628
    %2646 = vmatprep.subr.mxu0 0.0
    %2647 = vmatpush1.msra.mxu0 %v2629
    %2648 = vmatprep.subr.mxu0 0.0
    %2649 = vmatpush1.msra.mxu0 0.0
    %2650 = vmatprep.subr.mxu0 0.0
    %2651 = vmatpush1.msra.mxu0 0.0
    %2652 = vmatprep.subr.mxu0 0.0
    %2653 = vmatpush1.msra.mxu0 0.0
    %2654 = vmatprep.subr.mxu0 0.0
    %2655 = vmatpush1.msra.mxu0 0.0
    %2656 = vmatprep.subr.mxu0 0.0
    %2657 = vmatpush1.msra.mxu0 0.0
    %2658 = vmatprep.subr.mxu0 0.0
    %2659 = vmatpush1.msra.mxu0 0.0
    %2660 = vmatprep.subr.mxu0 0.0
    %2661 = vmatpush1.msra.mxu0 0.0
    %2662 = vmatprep.subr.mxu0 0.0
    %2663 = vmatpush1.msra.mxu0 0.0
    %2664 = vmatprep.subr.mxu0 0.0
    %2665 = vmatpush1.msra.mxu0 0.0
    %2666 = vmatprep.subr.mxu0 0.0
    %2667 = vmatpush1.msra.mxu0 0.0
    %2668 = vmatprep.subr.mxu0 0.0
    %2669 = vmatpush1.msra.mxu0 0.0
    %2670 = vmatprep.subr.mxu0 0.0
    %2671 = vmatpush1.msra.mxu0 0.0
    %2672 = vmatprep.subr.mxu0 0.0
    %2673 = vmatpush1.msra.mxu0 0.0
    %2674 = vmatprep.subr.mxu0 0.0
    %2675 = vmatpush1.msra.mxu0 0.0
    %2676 = vmatprep.subr.mxu0 0.0
    %2677 = vmatpush1.msra.mxu0 0.0
    %2678 = vmatprep.subr.mxu0 0.0
    %2679 = vmatpush1.msra.mxu0 0.0
    %2680 = vmatprep.subr.mxu0 0.0
    %2681 = vmatpush1.msra.mxu0 0.0
    %2682 = vmatprep.subr.mxu0 0.0
    %2683 = vmatpush1.msra.mxu0 0.0
    %2684 = vmatprep.subr.mxu0 0.0
    %2685 = vmatpush1.msra.mxu0 0.0
    %2686 = vmatprep.subr.mxu0 0.0
    %2687 = vmatpush1.msra.mxu0 0.0
    %2688 = vmatprep.subr.mxu0 0.0
    %2689 = vmatpush1.msra.mxu0 0.0
    %2690 = vmatprep.subr.mxu0 0.0
    %2691 = vmatpush1.msra.mxu0 0.0
    %2692 = vmatprep.subr.mxu0 0.0
    %2693 = vmatpush1.msra.mxu0 0.0
    %2694 = vmatprep.subr.mxu0 0.0
    %2695 = vmatpush1.msra.mxu0 0.0
    %2696 = vmatprep.subr.mxu0 0.0
    %2697 = vmatpush1.msra.mxu0 0.0
    %2698 = vmatprep.subr.mxu0 0.0
    %2699 = vmatpush1.msra.mxu0 0.0
    %2700 = vmatprep.subr.mxu0 0.0
    %2701 = vmatpush1.msra.mxu0 0.0
    %2702 = vmatprep.subr.mxu0 0.0
    %2703 = vmatpush1.msra.mxu0 0.0
    %2704 = vmatprep.mubr.f32.mxu0 0.0
    %2705 = vmatmul.mubr.f32.gmra.mrb[0].mxu0 %v2635
    %v2706 = vpop.f32.mrb[0].mxu0
    %v2707 = vadd.f32 %v2633, %v2706
    %v2708 = vpop.f32.mrb[0].mxu0
    %2709 = vmatprep.mubr.f32.mxu0 0.0
    %2710 = vmatmul.mubr.f32.gmra.mrb[0].mxu0 %v2638
    %v2711 = vpop.f32.mrb[0].mxu0
    %v2712 = vadd.f32 %v2633, %v2711
    %v2713 = vpop.f32.mrb[0].mxu0
    %2714 = vdwg.mxu0
    %v2715 = vadd.f32 %v2102, %v2707
    %v2716 = vadd.f32 %v2103, %v2712
    %v2717 = vsel %vm246, %v2715, 0.0
    %2718 = vadd.xlane.f32.xlu0 %v2717
    %v2719 = vpop.xlane.xlu0 %2718
    %v2720 = vsel %vm246, %v2716, 0.0
    %2721 = vadd.xlane.f32.xlu0 %v2720
    %v2722 = vpop.xlane.xlu0 %2721
    %v2723 = vmul.f32 %v2719, %v962
    %v2724 = vmul.f32 %v2722, %v962
    %v2725 = vsub.f32 %v2715, %v2723
    %v2726 = vsub.f32 %v2716, %v2724
    %v2727 = vmul.f32 %v2725, %v2725
    %v2728 = vmul.f32 %v2726, %v2726
    %v2729 = vsel %vm246, %v2727, 0.0
    %2730 = vadd.xlane.f32.xlu0 %v2729
    %v2731 = vpop.xlane.xlu0 %2730
    %v2732 = vsel %vm246, %v2728, 0.0
    %2733 = vadd.xlane.f32.xlu0 %v2732
    %v2734 = vpop.xlane.xlu0 %2733
    %v2735 = vmul.f32 %v2731, %v962
    %v2736 = vmul.f32 %v2734, %v962
    %v2737 = vadd.f32 %v2735, 1e-05
    %v2738 = vadd.f32 %v2736, 1e-05
    %v2739 = vrsqrt.pop %v2737
    %v2740 = vrsqrt.pop %v2738
    %v2741 = vmul.f32 %v2725, %v2739
    %v2742 = vmul.f32 %v2726, %v2740
    %v2743 = vlaneseq
    %v2744 = vshrl.u32 %v2743, 7
    %v2745 = vsub.s32 2, %v2744
    %v2746 = vrot.slane %v2105, %v2745
    %v2747 = vmul.f32 %v2741, %v2746
    %v2748 = vmul.f32 %v2742, %v2746
    %v2749 = vlaneseq
    %v2750 = vshrl.u32 %v2749, 7
    %v2751 = vsub.s32 3, %v2750
    %v2752 = vrot.slane %v2105, %v2751
    %v2753 = vadd.f32 %v2747, %v2752
    %v2754 = vadd.f32 %v2748, %v2752
    %s2755 = scalar_lea.vmem %s8, 64
    %v2756 = vld [vmem:[%s2755] sm:$0xff]
    %v2757 = vld [vmem:[%s2755 + $0x8] sm:$0xff]
    %v2758 = vld [vmem:[%s2755 + $0x10] sm:$0xff]
    %v2759 = vld [vmem:[%s2755 + $0x18] sm:$0xff]
    %s2760 = scalar_lea.vmem [#allocation5], 2
    %v2761 = vld [vmem:[%s2760] sm:$0x1]
    %v2763 = vlaneseq
    %v2764 = vshrl.u32 %v2763, 7
    %v2765 = vsub.s32 0, %v2764
    %v2766 = vrot.slane %v2761, %v2765
    %v2769 = vsel %vm246, %v2753, 0
    %v2772 = vsel %vm246, %v2754, 0
    %2774 = vmatprep.subr.mxu0 0.0
    %2775 = vmatpush1.msra.mxu0 %v2756
    %2776 = vmatprep.subr.mxu0 0.0
    %2777 = vmatpush1.msra.mxu0 %v2757
    %2778 = vmatprep.subr.mxu0 0.0
    %2779 = vmatpush1.msra.mxu0 %v2758
    %2780 = vmatprep.subr.mxu0 0.0
    %2781 = vmatpush1.msra.mxu0 %v2759
    %2782 = vmatprep.subr.mxu0 0.0
    %2783 = vmatpush1.msra.mxu0 0.0
    %2784 = vmatprep.subr.mxu0 0.0
    %2785 = vmatpush1.msra.mxu0 0.0
    %2786 = vmatprep.subr.mxu0 0.0
    %2787 = vmatpush1.msra.mxu0 0.0
    %2788 = vmatprep.subr.mxu0 0.0
    %2789 = vmatpush1.msra.mxu0 0.0
    %2790 = vmatprep.subr.mxu0 0.0
    %2791 = vmatpush1.msra.mxu0 0.0
    %2792 = vmatprep.subr.mxu0 0.0
    %2793 = vmatpush1.msra.mxu0 0.0
    %2794 = vmatprep.subr.mxu0 0.0
    %2795 = vmatpush1.msra.mxu0 0.0
    %2796 = vmatprep.subr.mxu0 0.0
    %2797 = vmatpush1.msra.mxu0 0.0
    %2798 = vmatprep.subr.mxu0 0.0
    %2799 = vmatpush1.msra.mxu0 0.0
    %2800 = vmatprep.subr.mxu0 0.0
    %2801 = vmatpush1.msra.mxu0 0.0
    %2802 = vmatprep.subr.mxu0 0.0
    %2803 = vmatpush1.msra.mxu0 0.0
    %2804 = vmatprep.subr.mxu0 0.0
    %2805 = vmatpush1.msra.mxu0 0.0
    %2806 = vmatprep.subr.mxu0 0.0
    %2807 = vmatpush1.msra.mxu0 0.0
    %2808 = vmatprep.subr.mxu0 0.0
    %2809 = vmatpush1.msra.mxu0 0.0
    %2810 = vmatprep.subr.mxu0 0.0
    %2811 = vmatpush1.msra.mxu0 0.0
    %2812 = vmatprep.subr.mxu0 0.0
    %2813 = vmatpush1.msra.mxu0 0.0
    %2814 = vmatprep.subr.mxu0 0.0
    %2815 = vmatpush1.msra.mxu0 0.0
    %2816 = vmatprep.subr.mxu0 0.0
    %2817 = vmatpush1.msra.mxu0 0.0
    %2818 = vmatprep.subr.mxu0 0.0
    %2819 = vmatpush1.msra.mxu0 0.0
    %2820 = vmatprep.subr.mxu0 0.0
    %2821 = vmatpush1.msra.mxu0 0.0
    %2822 = vmatprep.subr.mxu0 0.0
    %2823 = vmatpush1.msra.mxu0 0.0
    %2824 = vmatprep.subr.mxu0 0.0
    %2825 = vmatpush1.msra.mxu0 0.0
    %2826 = vmatprep.subr.mxu0 0.0
    %2827 = vmatpush1.msra.mxu0 0.0
    %2828 = vmatprep.subr.mxu0 0.0
    %2829 = vmatpush1.msra.mxu0 0.0
    %2830 = vmatprep.subr.mxu0 0.0
    %2831 = vmatpush1.msra.mxu0 0.0
    %2832 = vmatprep.subr.mxu0 0.0
    %2833 = vmatpush1.msra.mxu0 0.0
    %2834 = vmatprep.subr.mxu0 0.0
    %2835 = vmatpush1.msra.mxu0 0.0
    %2836 = vmatprep.subr.mxu0 0.0
    %2837 = vmatpush1.msra.mxu0 0.0
    %2838 = vmatprep.mubr.f32.mxu0 0.0
    %2839 = vmatmul.mubr.f32.gmra.mrb[0].mxu0 %v2769
    %v2840 = vpop.f32.mrb[0].mxu0
    %v2841 = vadd.f32 %v2766, %v2840
    %v2842 = vpop.f32.mrb[0].mxu0
    %2843 = vmatprep.mubr.f32.mxu0 0.0
    %2844 = vmatmul.mubr.f32.gmra.mrb[0].mxu0 %v2772
    %v2845 = vpop.f32.mrb[0].mxu0
    %v2846 = vadd.f32 %v2766, %v2845
    %v2847 = vpop.f32.mrb[0].mxu0
    %2848 = vdwg.mxu0
    %v2849 = vmax.f32 %v2841, 0.0
    %v2850 = vmax.f32 %v2846, 0.0
    %s2851 = scalar_lea.vmem %s10, 128
    %v2852 = vld [vmem:[%s2851] sm:$0xff]
    %v2853 = vld [vmem:[%s2851 + $0x8] sm:$0xff]
    %v2854 = vld [vmem:[%s2851 + $0x10] sm:$0xff]
    %v2855 = vld [vmem:[%s2851 + $0x18] sm:$0xff]
    %v2856 = vld [vmem:[%s2851 + $0x20] sm:$0xff]
    %v2857 = vld [vmem:[%s2851 + $0x28] sm:$0xff]
    %v2858 = vld [vmem:[%s2851 + $0x30] sm:$0xff]
    %v2859 = vld [vmem:[%s2851 + $0x38] sm:$0xff]
    %v2860 = vlaneseq
    %v2861 = vshrl.u32 %v2860, 7
    %v2862 = vsub.s32 1, %v2861
    %v2863 = vrot.slane %v2105, %v2862
    %v2865 = vsel %vm1101, %v2849, 0
    %v2868 = vsel %vm1101, %v2850, 0
    %2870 = vmatprep.subr.mxu0 0.0
    %2871 = vmatpush1.msra.mxu0 %v2852
    %2872 = vmatprep.subr.mxu0 0.0
    %2873 = vmatpush1.msra.mxu0 %v2853
    %2874 = vmatprep.subr.mxu0 0.0
    %2875 = vmatpush1.msra.mxu0 %v2854
    %2876 = vmatprep.subr.mxu0 0.0
    %2877 = vmatpush1.msra.mxu0 %v2855
    %2878 = vmatprep.subr.mxu0 0.0
    %2879 = vmatpush1.msra.mxu0 %v2856
    %2880 = vmatprep.subr.mxu0 0.0
    %2881 = vmatpush1.msra.mxu0 %v2857
    %2882 = vmatprep.subr.mxu0 0.0
    %2883 = vmatpush1.msra.mxu0 %v2858
    %2884 = vmatprep.subr.mxu0 0.0
    %2885 = vmatpush1.msra.mxu0 %v2859
    %2886 = vmatprep.subr.mxu0 0.0
    %2887 = vmatpush1.msra.mxu0 0.0
    %2888 = vmatprep.subr.mxu0 0.0
    %2889 = vmatpush1.msra.mxu0 0.0
    %2890 = vmatprep.subr.mxu0 0.0
    %2891 = vmatpush1.msra.mxu0 0.0
    %2892 = vmatprep.subr.mxu0 0.0
    %2893 = vmatpush1.msra.mxu0 0.0
    %2894 = vmatprep.subr.mxu0 0.0
    %2895 = vmatpush1.msra.mxu0 0.0
    %2896 = vmatprep.subr.mxu0 0.0
    %2897 = vmatpush1.msra.mxu0 0.0
    %2898 = vmatprep.subr.mxu0 0.0
    %2899 = vmatpush1.msra.mxu0 0.0
    %2900 = vmatprep.subr.mxu0 0.0
    %2901 = vmatpush1.msra.mxu0 0.0
    %2902 = vmatprep.subr.mxu0 0.0
    %2903 = vmatpush1.msra.mxu0 0.0
    %2904 = vmatprep.subr.mxu0 0.0
    %2905 = vmatpush1.msra.mxu0 0.0
    %2906 = vmatprep.subr.mxu0 0.0
    %2907 = vmatpush1.msra.mxu0 0.0
    %2908 = vmatprep.subr.mxu0 0.0
    %2909 = vmatpush1.msra.mxu0 0.0
    %2910 = vmatprep.subr.mxu0 0.0
    %2911 = vmatpush1.msra.mxu0 0.0
    %2912 = vmatprep.subr.mxu0 0.0
    %2913 = vmatpush1.msra.mxu0 0.0
    %2914 = vmatprep.subr.mxu0 0.0
    %2915 = vmatpush1.msra.mxu0 0.0
    %2916 = vmatprep.subr.mxu0 0.0
    %2917 = vmatpush1.msra.mxu0 0.0
    %2918 = vmatprep.subr.mxu0 0.0
    %2919 = vmatpush1.msra.mxu0 0.0
    %2920 = vmatprep.subr.mxu0 0.0
    %2921 = vmatpush1.msra.mxu0 0.0
    %2922 = vmatprep.subr.mxu0 0.0
    %2923 = vmatpush1.msra.mxu0 0.0
    %2924 = vmatprep.subr.mxu0 0.0
    %2925 = vmatpush1.msra.mxu0 0.0
    %2926 = vmatprep.subr.mxu0 0.0
    %2927 = vmatpush1.msra.mxu0 0.0
    %2928 = vmatprep.subr.mxu0 0.0
    %2929 = vmatpush1.msra.mxu0 0.0
    %2930 = vmatprep.subr.mxu0 0.0
    %2931 = vmatpush1.msra.mxu0 0.0
    %2932 = vmatprep.subr.mxu0 0.0
    %2933 = vmatpush1.msra.mxu0 0.0
    %2934 = vmatprep.mubr.f32.mxu0 0.0
    %2935 = vmatmul.mubr.f32.gmra.mrb[0].mxu0 %v2865
    %v2936 = vpop.f32.mrb[0].mxu0
    %v2937 = vadd.f32 %v2863, %v2936
    %v2938 = vpop.f32.mrb[0].mxu0
    %2939 = vmatprep.mubr.f32.mxu0 0.0
    %2940 = vmatmul.mubr.f32.gmra.mrb[0].mxu0 %v2868
    %v2941 = vpop.f32.mrb[0].mxu0
    %v2942 = vadd.f32 %v2863, %v2941
    %v2943 = vpop.f32.mrb[0].mxu0
    %2944 = vdwg.mxu0
    %v2945 = vadd.f32 %v2753, %v2937
    %v2946 = vadd.f32 %v2754, %v2942
    %v2947 = vsel %vm246, %v2945, 0.0
    %2948 = vadd.xlane.f32.xlu0 %v2947
    %v2949 = vpop.xlane.xlu0 %2948
    %v2950 = vsel %vm246, %v2946, 0.0
    %2951 = vadd.xlane.f32.xlu0 %v2950
    %v2952 = vpop.xlane.xlu0 %2951
    %v2953 = vmul.f32 %v2949, %v962
    %v2954 = vmul.f32 %v2952, %v962
    %v2955 = vsub.f32 %v2945, %v2953
    %v2956 = vsub.f32 %v2946, %v2954
    %v2957 = vmul.f32 %v2955, %v2955
    %v2958 = vmul.f32 %v2956, %v2956
    %v2959 = vsel %vm246, %v2957, 0.0
    %2960 = vadd.xlane.f32.xlu0 %v2959
    %v2961 = vpop.xlane.xlu0 %2960
    %v2962 = vsel %vm246, %v2958, 0.0
    %2963 = vadd.xlane.f32.xlu0 %v2962
    %v2964 = vpop.xlane.xlu0 %2963
    %v2965 = vmul.f32 %v2961, %v962
    %v2966 = vmul.f32 %v2964, %v962
    %v2967 = vadd.f32 %v2965, 1e-05
    %v2968 = vadd.f32 %v2966, 1e-05
    %v2969 = vrsqrt.pop %v2967
    %v2970 = vrsqrt.pop %v2968
    %v2971 = vmul.f32 %v2955, %v2969
    %v2972 = vmul.f32 %v2956, %v2970
    %v2973 = vlaneseq
    %v2974 = vshrl.u32 %v2973, 7
    %v2975 = vsub.s32 4, %v2974
    %v2976 = vrot.slane %v2105, %v2975
    %v2977 = vmul.f32 %v2971, %v2976
    %v2978 = vmul.f32 %v2972, %v2976
    %v2979 = vlaneseq
    %v2980 = vshrl.u32 %v2979, 7
    %v2981 = vsub.s32 5, %v2980
    %v2982 = vrot.slane %v2105, %v2981
    %v2983 = vadd.f32 %v2977, %v2982
    %v2984 = vadd.f32 %v2978, %v2982
    %s2985 = scalar_lea.vmem %s11, 24
    %v2986 = vld [vmem:[%s2985] sm:$0xff]
    %s2987 = scalar_lea.vmem %s5, 96
    %v2988 = vld [vmem:[%s2987] sm:$0xff]
    %v2989 = vld [vmem:[%s2987 + $0x8] sm:$0xff]
    %v2990 = vld [vmem:[%s2987 + $0x10] sm:$0xff]
    %v2991 = vld [vmem:[%s2987 + $0x18] sm:$0xff]
    %s2992 = scalar_lea.vmem [#allocation2], 3
    %v2993 = vld [vmem:[%s2992] sm:$0x1]
    %v2995 = vlaneseq
    %v2996 = vshrl.u32 %v2995, 7
    %v2997 = vsub.s32 0, %v2996
    %v2998 = vrot.slane %v2993, %v2997
    %v3001 = vsel %vm246, %v2983, 0
    %v3004 = vsel %vm246, %v2984, 0
    %3006 = vmatprep.subr.mxu0 0.0
    %3007 = vmatpush1.msra.mxu0 %v2988
    %3008 = vmatprep.subr.mxu0 0.0
    %3009 = vmatpush1.msra.mxu0 %v2989
    %3010 = vmatprep.subr.mxu0 0.0
    %3011 = vmatpush1.msra.mxu0 %v2990
    %3012 = vmatprep.subr.mxu0 0.0
    %3013 = vmatpush1.msra.mxu0 %v2991
    %3014 = vmatprep.subr.mxu0 0.0
    %3015 = vmatpush1.msra.mxu0 0.0
    %3016 = vmatprep.subr.mxu0 0.0
    %3017 = vmatpush1.msra.mxu0 0.0
    %3018 = vmatprep.subr.mxu0 0.0
    %3019 = vmatpush1.msra.mxu0 0.0
    %3020 = vmatprep.subr.mxu0 0.0
    %3021 = vmatpush1.msra.mxu0 0.0
    %3022 = vmatprep.subr.mxu0 0.0
    %3023 = vmatpush1.msra.mxu0 0.0
    %3024 = vmatprep.subr.mxu0 0.0
    %3025 = vmatpush1.msra.mxu0 0.0
    %3026 = vmatprep.subr.mxu0 0.0
    %3027 = vmatpush1.msra.mxu0 0.0
    %3028 = vmatprep.subr.mxu0 0.0
    %3029 = vmatpush1.msra.mxu0 0.0
    %3030 = vmatprep.subr.mxu0 0.0
    %3031 = vmatpush1.msra.mxu0 0.0
    %3032 = vmatprep.subr.mxu0 0.0
    %3033 = vmatpush1.msra.mxu0 0.0
    %3034 = vmatprep.subr.mxu0 0.0
    %3035 = vmatpush1.msra.mxu0 0.0
    %3036 = vmatprep.subr.mxu0 0.0
    %3037 = vmatpush1.msra.mxu0 0.0
    %3038 = vmatprep.subr.mxu0 0.0
    %3039 = vmatpush1.msra.mxu0 0.0
    %3040 = vmatprep.subr.mxu0 0.0
    %3041 = vmatpush1.msra.mxu0 0.0
    %3042 = vmatprep.subr.mxu0 0.0
    %3043 = vmatpush1.msra.mxu0 0.0
    %3044 = vmatprep.subr.mxu0 0.0
    %3045 = vmatpush1.msra.mxu0 0.0
    %3046 = vmatprep.subr.mxu0 0.0
    %3047 = vmatpush1.msra.mxu0 0.0
    %3048 = vmatprep.subr.mxu0 0.0
    %3049 = vmatpush1.msra.mxu0 0.0
    %3050 = vmatprep.subr.mxu0 0.0
    %3051 = vmatpush1.msra.mxu0 0.0
    %3052 = vmatprep.subr.mxu0 0.0
    %3053 = vmatpush1.msra.mxu0 0.0
    %3054 = vmatprep.subr.mxu0 0.0
    %3055 = vmatpush1.msra.mxu0 0.0
    %3056 = vmatprep.subr.mxu0 0.0
    %3057 = vmatpush1.msra.mxu0 0.0
    %3058 = vmatprep.subr.mxu0 0.0
    %3059 = vmatpush1.msra.mxu0 0.0
    %3060 = vmatprep.subr.mxu0 0.0
    %3061 = vmatpush1.msra.mxu0 0.0
    %3062 = vmatprep.subr.mxu0 0.0
    %3063 = vmatpush1.msra.mxu0 0.0
    %3064 = vmatprep.subr.mxu0 0.0
    %3065 = vmatpush1.msra.mxu0 0.0
    %3066 = vmatprep.subr.mxu0 0.0
    %3067 = vmatpush1.msra.mxu0 0.0
    %3068 = vmatprep.subr.mxu0 0.0
    %3069 = vmatpush1.msra.mxu0 0.0
    %3070 = vmatprep.mubr.f32.mxu0 0.0
    %3071 = vmatmul.mubr.f32.gmra.mrb[0].mxu0 %v3001
    %v3072 = vpop.f32.mrb[0].mxu0
    %v3073 = vadd.f32 %v2998, %v3072
    %v3074 = vpop.f32.mrb[0].mxu0
    %3075 = vmatprep.mubr.f32.mxu0 0.0
    %3076 = vmatmul.mubr.f32.gmra.mrb[0].mxu0 %v3004
    %v3077 = vpop.f32.mrb[0].mxu0
    %v3078 = vadd.f32 %v2998, %v3077
    %v3079 = vpop.f32.mrb[0].mxu0
    %3080 = vdwg.mxu0
    %v3081 = vmul.f32 %v3073, 0.5
    %v3082 = vmul.f32 %v3078, 0.5
    %v3083 = vmul.f32 %v3073, %v347
    %v3084 = vmul.f32 %v3078, %v349
    %v3085 = vmul.f32 %v3073, %v351
    %v3086 = vmul.f32 %v3078, %v353
    %v3087 = vmul.f32 %v3073, %v355
    %v3088 = vmul.f32 %v3078, %v357
    %v3089 = vmul.f32 %v3073, %v359
    %v3090 = vmul.f32 %v3078, %v361
    %v3091 = vmul.f32 %v3073, %v363
    %v3092 = vmul.f32 %v3078, %v365
    %v3093 = vmul.f32 %v3073, %v367
    %v3094 = vmul.f32 %v3078, %v369
    %v3095 = vmul.f32 %v3073, %v371
    %v3096 = vmul.f32 %v3078, %v373
    %v3097 = vmul.f32 %v3073, %v375
    %v3098 = vmul.f32 %v3078, %v377
    %v3099 = vmul.f32 %v3073, %v411
    %v3100 = vmul.f32 %v3078, %v413
    %v3101 = vmul.f32 %v3073, %v415
    %v3102 = vmul.f32 %v3078, %v417
    %v3103 = vmul.f32 %v3073, %v419
    %v3104 = vmul.f32 %v3078, %v421
    %v3105 = vmul.f32 %v3073, %v423
    %v3106 = vmul.f32 %v3078, %v425
    %v3107 = vmul.f32 %v3073, %v427
    %v3108 = vmul.f32 %v3078, %v429
    %v3109 = vmul.f32 %v3073, %v431
    %v3110 = vmul.f32 %v3078, %v433
    %v3111 = vmul.f32 %v3073, %v435
    %v3112 = vmul.f32 %v3078, %v437
    %v3113 = vmul.f32 %v3073, %v439
    %v3114 = vmul.f32 %v3078, %v441
    %3131 = vrot.lane.b32.xlu0 %v3083, 96
    %v3132 = vpop.permute.xlu0 %3131
    %3133 = vrot.lane.b32.xlu0 %v3084, 96
    %v3134 = vpop.permute.xlu0 %3133
    %3135 = vrot.lane.b32.xlu0 %v3085, 96
    %v3136 = vpop.permute.xlu0 %3135
    %3137 = vrot.lane.b32.xlu0 %v3086, 96
    %v3138 = vpop.permute.xlu0 %3137
    %3139 = vrot.lane.b32.xlu0 %v3087, 96
    %v3140 = vpop.permute.xlu0 %3139
    %3141 = vrot.lane.b32.xlu0 %v3088, 96
    %v3142 = vpop.permute.xlu0 %3141
    %3143 = vrot.lane.b32.xlu0 %v3089, 96
    %v3144 = vpop.permute.xlu0 %3143
    %3145 = vrot.lane.b32.xlu0 %v3090, 96
    %v3146 = vpop.permute.xlu0 %3145
    %3147 = vrot.lane.b32.xlu0 %v3091, 96
    %v3148 = vpop.permute.xlu0 %3147
    %3149 = vrot.lane.b32.xlu0 %v3092, 96
    %v3150 = vpop.permute.xlu0 %3149
    %3151 = vrot.lane.b32.xlu0 %v3093, 96
    %v3152 = vpop.permute.xlu0 %3151
    %3153 = vrot.lane.b32.xlu0 %v3094, 96
    %v3154 = vpop.permute.xlu0 %3153
    %3155 = vrot.lane.b32.xlu0 %v3095, 96
    %v3156 = vpop.permute.xlu0 %3155
    %3157 = vrot.lane.b32.xlu0 %v3096, 96
    %v3158 = vpop.permute.xlu0 %3157
    %3159 = vrot.lane.b32.xlu0 %v3097, 96
    %v3160 = vpop.permute.xlu0 %3159
    %3161 = vrot.lane.b32.xlu0 %v3098, 96
    %v3162 = vpop.permute.xlu0 %3161
    %v3164 = vsel %vm246, %v3081, 0
    %v3167 = vsel %vm246, %v3082, 0
    %v3169 = vsel %vm246, %v3132, 0
    %v3171 = vsel %vm246, %v3134, 0
    %v3173 = vsel %vm246, %v3136, 0
    %v3175 = vsel %vm246, %v3138, 0
    %v3177 = vsel %vm246, %v3140, 0
    %v3179 = vsel %vm246, %v3142, 0
    %v3181 = vsel %vm246, %v3144, 0
    %v3183 = vsel %vm246, %v3146, 0
    %v3185 = vsel %vm246, %v3148, 0
    %v3187 = vsel %vm246, %v3150, 0
    %v3189 = vsel %vm246, %v3152, 0
    %v3191 = vsel %vm246, %v3154, 0
    %v3193 = vsel %vm246, %v3156, 0
    %v3195 = vsel %vm246, %v3158, 0
    %v3197 = vsel %vm246, %v3160, 0
    %v3199 = vsel %vm246, %v3162, 0
    %3201 = vmatprep.subr.mxu0 0.0
    %3202 = vmatpush1.xpose.msra.mxu0 %v3169
    %3203 = vmatprep.subr.mxu0 0.0
    %3204 = vmatpush1.xpose.msra.mxu0 %v3171
    %3205 = vmatprep.subr.mxu0 0.0
    %3206 = vmatpush1.xpose.msra.mxu0 %v3173
    %3207 = vmatprep.subr.mxu0 0.0
    %3208 = vmatpush1.xpose.msra.mxu0 %v3175
    %3209 = vmatprep.subr.mxu0 0.0
    %3210 = vmatpush1.xpose.msra.mxu0 %v3177
    %3211 = vmatprep.subr.mxu0 0.0
    %3212 = vmatpush1.xpose.msra.mxu0 %v3179
    %3213 = vmatprep.subr.mxu0 0.0
    %3214 = vmatpush1.xpose.msra.mxu0 %v3181
    %3215 = vmatprep.subr.mxu0 0.0
    %3216 = vmatpush1.xpose.msra.mxu0 %v3183
    %3217 = vmatprep.subr.mxu0 0.0
    %3218 = vmatpush1.xpose.msra.mxu0 %v3185
    %3219 = vmatprep.subr.mxu0 0.0
    %3220 = vmatpush1.xpose.msra.mxu0 %v3187
    %3221 = vmatprep.subr.mxu0 0.0
    %3222 = vmatpush1.xpose.msra.mxu0 %v3189
    %3223 = vmatprep.subr.mxu0 0.0
    %3224 = vmatpush1.xpose.msra.mxu0 %v3191
    %3225 = vmatprep.subr.mxu0 0.0
    %3226 = vmatpush1.xpose.msra.mxu0 %v3193
    %3227 = vmatprep.subr.mxu0 0.0
    %3228 = vmatpush1.xpose.msra.mxu0 %v3195
    %3229 = vmatprep.subr.mxu0 0.0
    %3230 = vmatpush1.xpose.msra.mxu0 %v3197
    %3231 = vmatprep.subr.mxu0 0.0
    %3232 = vmatpush1.xpose.msra.mxu0 %v3199
    %3233 = vmatprep.subr.mxu0 0.0
    %3234 = vmatpush1.xpose.msra.mxu0 0.0
    %3235 = vmatprep.subr.mxu0 0.0
    %3236 = vmatpush1.xpose.msra.mxu0 0.0
    %3237 = vmatprep.subr.mxu0 0.0
    %3238 = vmatpush1.xpose.msra.mxu0 0.0
    %3239 = vmatprep.subr.mxu0 0.0
    %3240 = vmatpush1.xpose.msra.mxu0 0.0
    %3241 = vmatprep.subr.mxu0 0.0
    %3242 = vmatpush1.xpose.msra.mxu0 0.0
    %3243 = vmatprep.subr.mxu0 0.0
    %3244 = vmatpush1.xpose.msra.mxu0 0.0
    %3245 = vmatprep.subr.mxu0 0.0
    %3246 = vmatpush1.xpose.msra.mxu0 0.0
    %3247 = vmatprep.subr.mxu0 0.0
    %3248 = vmatpush1.xpose.msra.mxu0 0.0
    %3249 = vmatprep.subr.mxu0 0.0
    %3250 = vmatpush1.xpose.msra.mxu0 0.0
    %3251 = vmatprep.subr.mxu0 0.0
    %3252 = vmatpush1.xpose.msra.mxu0 0.0
    %3253 = vmatprep.subr.mxu0 0.0
    %3254 = vmatpush1.xpose.msra.mxu0 0.0
    %3255 = vmatprep.subr.mxu0 0.0
    %3256 = vmatpush1.xpose.msra.mxu0 0.0
    %3257 = vmatprep.subr.mxu0 0.0
    %3258 = vmatpush1.xpose.msra.mxu0 0.0
    %3259 = vmatprep.subr.mxu0 0.0
    %3260 = vmatpush1.xpose.msra.mxu0 0.0
    %3261 = vmatprep.subr.mxu0 0.0
    %3262 = vmatpush1.xpose.msra.mxu0 0.0
    %3263 = vmatprep.subr.mxu0 0.0
    %3264 = vmatpush1.xpose.msra.mxu0 0.0
    %3265 = vmatprep.mubr.f32.mxu0 0.0
    %3266 = vmatmul.mubr.f32.gmra.mrb[0].mxu0 %v3164
    %v3267 = vpop.f32.mrb[0].mxu0
    %v3268 = vadd.f32 %v232, %v3267
    %v3269 = vpop.f32.mrb[0].mxu0
    %3270 = vmatprep.mubr.f32.mxu0 0.0
    %3271 = vmatmul.mubr.f32.gmra.mrb[0].mxu0 %v3167
    %v3272 = vpop.f32.mrb[0].mxu0
    %v3273 = vadd.f32 %v233, %v3272
    %v3274 = vpop.f32.mrb[0].mxu0
    %3275 = vdwg.mxu0
    %3276 = vmax.xlane.f32.xlu0 %v3268
    %v3277 = vpop.xlane.xlu0 %3276
    %3278 = vmax.xlane.f32.xlu0 %v3273
    %v3279 = vpop.xlane.xlu0 %3278
    %v3280 = vsub.f32 %v3268, %v3277
    %v3281 = vsub.f32 %v3273, %v3279
    %v3282 = vmul.f32 %v3280, 1.442695
    %v3283 = vpow.pop %v3282
    %v3284 = vmul.f32 %v3281, 1.442695
    %v3285 = vpow.pop %v3284
    %3302 = vrot.lane.b32.xlu0 %v3099, 64
    %v3303 = vpop.permute.xlu0 %3302
    %3304 = vrot.lane.b32.xlu0 %v3100, 64
    %v3305 = vpop.permute.xlu0 %3304
    %3306 = vrot.lane.b32.xlu0 %v3101, 64
    %v3307 = vpop.permute.xlu0 %3306
    %3308 = vrot.lane.b32.xlu0 %v3102, 64
    %v3309 = vpop.permute.xlu0 %3308
    %3310 = vrot.lane.b32.xlu0 %v3103, 64
    %v3311 = vpop.permute.xlu0 %3310
    %3312 = vrot.lane.b32.xlu0 %v3104, 64
    %v3313 = vpop.permute.xlu0 %3312
    %3314 = vrot.lane.b32.xlu0 %v3105, 64
    %v3315 = vpop.permute.xlu0 %3314
    %3316 = vrot.lane.b32.xlu0 %v3106, 64
    %v3317 = vpop.permute.xlu0 %3316
    %3318 = vrot.lane.b32.xlu0 %v3107, 64
    %v3319 = vpop.permute.xlu0 %3318
    %3320 = vrot.lane.b32.xlu0 %v3108, 64
    %v3321 = vpop.permute.xlu0 %3320
    %3322 = vrot.lane.b32.xlu0 %v3109, 64
    %v3323 = vpop.permute.xlu0 %3322
    %3324 = vrot.lane.b32.xlu0 %v3110, 64
    %v3325 = vpop.permute.xlu0 %3324
    %3326 = vrot.lane.b32.xlu0 %v3111, 64
    %v3327 = vpop.permute.xlu0 %3326
    %3328 = vrot.lane.b32.xlu0 %v3112, 64
    %v3329 = vpop.permute.xlu0 %3328
    %3330 = vrot.lane.b32.xlu0 %v3113, 64
    %v3331 = vpop.permute.xlu0 %3330
    %3332 = vrot.lane.b32.xlu0 %v3114, 64
    %v3333 = vpop.permute.xlu0 %3332
    %3350 = vmatprep.subr.mxu0 0.0
    %3351 = vmatpush1.msra.mxu0 %v3303
    %3352 = vmatprep.subr.mxu0 0.0
    %3353 = vmatpush1.msra.mxu0 %v3305
    %3354 = vmatprep.subr.mxu0 0.0
    %3355 = vmatpush1.msra.mxu0 %v3307
    %3356 = vmatprep.subr.mxu0 0.0
    %3357 = vmatpush1.msra.mxu0 %v3309
    %3358 = vmatprep.subr.mxu0 0.0
    %3359 = vmatpush1.msra.mxu0 %v3311
    %3360 = vmatprep.subr.mxu0 0.0
    %3361 = vmatpush1.msra.mxu0 %v3313
    %3362 = vmatprep.subr.mxu0 0.0
    %3363 = vmatpush1.msra.mxu0 %v3315
    %3364 = vmatprep.subr.mxu0 0.0
    %3365 = vmatpush1.msra.mxu0 %v3317
    %3366 = vmatprep.subr.mxu0 0.0
    %3367 = vmatpush1.msra.mxu0 %v3319
    %3368 = vmatprep.subr.mxu0 0.0
    %3369 = vmatpush1.msra.mxu0 %v3321
    %3370 = vmatprep.subr.mxu0 0.0
    %3371 = vmatpush1.msra.mxu0 %v3323
    %3372 = vmatprep.subr.mxu0 0.0
    %3373 = vmatpush1.msra.mxu0 %v3325
    %3374 = vmatprep.subr.mxu0 0.0
    %3375 = vmatpush1.msra.mxu0 %v3327
    %3376 = vmatprep.subr.mxu0 0.0
    %3377 = vmatpush1.msra.mxu0 %v3329
    %3378 = vmatprep.subr.mxu0 0.0
    %3379 = vmatpush1.msra.mxu0 %v3331
    %3380 = vmatprep.subr.mxu0 0.0
    %3381 = vmatpush1.msra.mxu0 %v3333
    %3382 = vmatprep.subr.mxu0 0.0
    %3383 = vmatpush1.msra.mxu0 0.0
    %3384 = vmatprep.subr.mxu0 0.0
    %3385 = vmatpush1.msra.mxu0 0.0
    %3386 = vmatprep.subr.mxu0 0.0
    %3387 = vmatpush1.msra.mxu0 0.0
    %3388 = vmatprep.subr.mxu0 0.0
    %3389 = vmatpush1.msra.mxu0 0.0
    %3390 = vmatprep.subr.mxu0 0.0
    %3391 = vmatpush1.msra.mxu0 0.0
    %3392 = vmatprep.subr.mxu0 0.0
    %3393 = vmatpush1.msra.mxu0 0.0
    %3394 = vmatprep.subr.mxu0 0.0
    %3395 = vmatpush1.msra.mxu0 0.0
    %3396 = vmatprep.subr.mxu0 0.0
    %3397 = vmatpush1.msra.mxu0 0.0
    %3398 = vmatprep.subr.mxu0 0.0
    %3399 = vmatpush1.msra.mxu0 0.0
    %3400 = vmatprep.subr.mxu0 0.0
    %3401 = vmatpush1.msra.mxu0 0.0
    %3402 = vmatprep.subr.mxu0 0.0
    %3403 = vmatpush1.msra.mxu0 0.0
    %3404 = vmatprep.subr.mxu0 0.0
    %3405 = vmatpush1.msra.mxu0 0.0
    %3406 = vmatprep.subr.mxu0 0.0
    %3407 = vmatpush1.msra.mxu0 0.0
    %3408 = vmatprep.subr.mxu0 0.0
    %3409 = vmatpush1.msra.mxu0 0.0
    %3410 = vmatprep.subr.mxu0 0.0
    %3411 = vmatpush1.msra.mxu0 0.0
    %3412 = vmatprep.subr.mxu0 0.0
    %3413 = vmatpush1.msra.mxu0 0.0
    %3414 = vmatprep.mubr.f32.mxu0 0.0
    %3415 = vmatmul.mubr.f32.gmra.mrb[0].mxu0 %v3283
    %v3416 = vpop.f32.mrb[0].mxu0
    %v3417 = vadd.f32 0.0, %v3416
    %v3418 = vpop.f32.mrb[0].mxu0
    %3419 = vmatprep.mubr.f32.mxu0 0.0
    %3420 = vmatmul.mubr.f32.gmra.mrb[0].mxu0 %v3285
    %v3421 = vpop.f32.mrb[0].mxu0
    %v3422 = vadd.f32 0.0, %v3421
    %v3423 = vpop.f32.mrb[0].mxu0
    %3424 = vdwg.mxu0
    %3425 = vmatprep.subr.mxu0 0.0
    %3426 = vmatpush1.msra.mxu0 %v216
    %3427 = vmatprep.subr.mxu0 0.0
    %3428 = vmatpush1.msra.mxu0 %v217
    %3429 = vmatprep.subr.mxu0 0.0
    %3430 = vmatpush1.msra.mxu0 %v218
    %3431 = vmatprep.subr.mxu0 0.0
    %3432 = vmatpush1.msra.mxu0 %v219
    %3433 = vmatprep.subr.mxu0 0.0
    %3434 = vmatpush1.msra.mxu0 %v220
    %3435 = vmatprep.subr.mxu0 0.0
    %3436 = vmatpush1.msra.mxu0 %v221
    %3437 = vmatprep.subr.mxu0 0.0
    %3438 = vmatpush1.msra.mxu0 %v222
    %3439 = vmatprep.subr.mxu0 0.0
    %3440 = vmatpush1.msra.mxu0 %v223
    %3441 = vmatprep.subr.mxu0 0.0
    %3442 = vmatpush1.msra.mxu0 %v224
    %3443 = vmatprep.subr.mxu0 0.0
    %3444 = vmatpush1.msra.mxu0 %v225
    %3445 = vmatprep.subr.mxu0 0.0
    %3446 = vmatpush1.msra.mxu0 %v226
    %3447 = vmatprep.subr.mxu0 0.0
    %3448 = vmatpush1.msra.mxu0 %v227
    %3449 = vmatprep.subr.mxu0 0.0
    %3450 = vmatpush1.msra.mxu0 %v228
    %3451 = vmatprep.subr.mxu0 0.0
    %3452 = vmatpush1.msra.mxu0 %v229
    %3453 = vmatprep.subr.mxu0 0.0
    %3454 = vmatpush1.msra.mxu0 %v230
    %3455 = vmatprep.subr.mxu0 0.0
    %3456 = vmatpush1.msra.mxu0 %v231
    %3457 = vmatprep.subr.mxu0 0.0
    %3458 = vmatpush1.msra.mxu0 0.0
    %3459 = vmatprep.subr.mxu0 0.0
    %3460 = vmatpush1.msra.mxu0 0.0
    %3461 = vmatprep.subr.mxu0 0.0
    %3462 = vmatpush1.msra.mxu0 0.0
    %3463 = vmatprep.subr.mxu0 0.0
    %3464 = vmatpush1.msra.mxu0 0.0
    %3465 = vmatprep.subr.mxu0 0.0
    %3466 = vmatpush1.msra.mxu0 0.0
    %3467 = vmatprep.subr.mxu0 0.0
    %3468 = vmatpush1.msra.mxu0 0.0
    %3469 = vmatprep.subr.mxu0 0.0
    %3470 = vmatpush1.msra.mxu0 0.0
    %3471 = vmatprep.subr.mxu0 0.0
    %3472 = vmatpush1.msra.mxu0 0.0
    %3473 = vmatprep.subr.mxu0 0.0
    %3474 = vmatpush1.msra.mxu0 0.0
    %3475 = vmatprep.subr.mxu0 0.0
    %3476 = vmatpush1.msra.mxu0 0.0
    %3477 = vmatprep.subr.mxu0 0.0
    %3478 = vmatpush1.msra.mxu0 0.0
    %3479 = vmatprep.subr.mxu0 0.0
    %3480 = vmatpush1.msra.mxu0 0.0
    %3481 = vmatprep.subr.mxu0 0.0
    %3482 = vmatpush1.msra.mxu0 0.0
    %3483 = vmatprep.subr.mxu0 0.0
    %3484 = vmatpush1.msra.mxu0 0.0
    %3485 = vmatprep.subr.mxu0 0.0
    %3486 = vmatpush1.msra.mxu0 0.0
    %3487 = vmatprep.subr.mxu0 0.0
    %3488 = vmatpush1.msra.mxu0 0.0
    %3489 = vmatprep.mubr.f32.mxu0 0.0
    %3490 = vmatmul.mubr.f32.gmra.mrb[0].mxu0 %v3283
    %v3491 = vpop.f32.mrb[0].mxu0
    %v3492 = vadd.f32 0.0, %v3491
    %v3493 = vpop.f32.mrb[0].mxu0
    %3494 = vmatprep.mubr.f32.mxu0 0.0
    %3495 = vmatmul.mubr.f32.gmra.mrb[0].mxu0 %v3285
    %v3496 = vpop.f32.mrb[0].mxu0
    %v3497 = vadd.f32 0.0, %v3496
    %v3498 = vpop.f32.mrb[0].mxu0
    %3499 = vdwg.mxu0
    %v3500 = vmax.f32 %v3492, 1e-20
    %v3501 = vmax.f32 %v3497, 1e-20
    %v3502 = vrcp.pop %v3500
    %v3503 = vrcp.pop %v3501
    %v3504 = vmul.f32 %v3417, %v3502
    %v3505 = vmul.f32 %v3422, %v3503
    %s3506 = scalar_lea.vmem %s7, 96
    %v3507 = vld [vmem:[%s3506] sm:$0xff]
    %v3508 = vld [vmem:[%s3506 + $0x8] sm:$0xff]
    %v3509 = vld [vmem:[%s3506 + $0x10] sm:$0xff]
    %v3510 = vld [vmem:[%s3506 + $0x18] sm:$0xff]
    %v3511 = vlaneseq
    %v3512 = vshrl.u32 %v3511, 7
    %v3513 = vsub.s32 0, %v3512
    %v3514 = vrot.slane %v2986, %v3513
    %v3516 = vsel %vm246, %v3504, 0
    %v3519 = vsel %vm246, %v3505, 0
    %3521 = vmatprep.subr.mxu0 0.0
    %3522 = vmatpush1.msra.mxu0 %v3507
    %3523 = vmatprep.subr.mxu0 0.0
    %3524 = vmatpush1.msra.mxu0 %v3508
    %3525 = vmatprep.subr.mxu0 0.0
    %3526 = vmatpush1.msra.mxu0 %v3509
    %3527 = vmatprep.subr.mxu0 0.0
    %3528 = vmatpush1.msra.mxu0 %v3510
    %3529 = vmatprep.subr.mxu0 0.0
    %3530 = vmatpush1.msra.mxu0 0.0
    %3531 = vmatprep.subr.mxu0 0.0
    %3532 = vmatpush1.msra.mxu0 0.0
    %3533 = vmatprep.subr.mxu0 0.0
    %3534 = vmatpush1.msra.mxu0 0.0
    %3535 = vmatprep.subr.mxu0 0.0
    %3536 = vmatpush1.msra.mxu0 0.0
    %3537 = vmatprep.subr.mxu0 0.0
    %3538 = vmatpush1.msra.mxu0 0.0
    %3539 = vmatprep.subr.mxu0 0.0
    %3540 = vmatpush1.msra.mxu0 0.0
    %3541 = vmatprep.subr.mxu0 0.0
    %3542 = vmatpush1.msra.mxu0 0.0
    %3543 = vmatprep.subr.mxu0 0.0
    %3544 = vmatpush1.msra.mxu0 0.0
    %3545 = vmatprep.subr.mxu0 0.0
    %3546 = vmatpush1.msra.mxu0 0.0
    %3547 = vmatprep.subr.mxu0 0.0
    %3548 = vmatpush1.msra.mxu0 0.0
    %3549 = vmatprep.subr.mxu0 0.0
    %3550 = vmatpush1.msra.mxu0 0.0
    %3551 = vmatprep.subr.mxu0 0.0
    %3552 = vmatpush1.msra.mxu0 0.0
    %3553 = vmatprep.subr.mxu0 0.0
    %3554 = vmatpush1.msra.mxu0 0.0
    %3555 = vmatprep.subr.mxu0 0.0
    %3556 = vmatpush1.msra.mxu0 0.0
    %3557 = vmatprep.subr.mxu0 0.0
    %3558 = vmatpush1.msra.mxu0 0.0
    %3559 = vmatprep.subr.mxu0 0.0
    %3560 = vmatpush1.msra.mxu0 0.0
    %3561 = vmatprep.subr.mxu0 0.0
    %3562 = vmatpush1.msra.mxu0 0.0
    %3563 = vmatprep.subr.mxu0 0.0
    %3564 = vmatpush1.msra.mxu0 0.0
    %3565 = vmatprep.subr.mxu0 0.0
    %3566 = vmatpush1.msra.mxu0 0.0
    %3567 = vmatprep.subr.mxu0 0.0
    %3568 = vmatpush1.msra.mxu0 0.0
    %3569 = vmatprep.subr.mxu0 0.0
    %3570 = vmatpush1.msra.mxu0 0.0
    %3571 = vmatprep.subr.mxu0 0.0
    %3572 = vmatpush1.msra.mxu0 0.0
    %3573 = vmatprep.subr.mxu0 0.0
    %3574 = vmatpush1.msra.mxu0 0.0
    %3575 = vmatprep.subr.mxu0 0.0
    %3576 = vmatpush1.msra.mxu0 0.0
    %3577 = vmatprep.subr.mxu0 0.0
    %3578 = vmatpush1.msra.mxu0 0.0
    %3579 = vmatprep.subr.mxu0 0.0
    %3580 = vmatpush1.msra.mxu0 0.0
    %3581 = vmatprep.subr.mxu0 0.0
    %3582 = vmatpush1.msra.mxu0 0.0
    %3583 = vmatprep.subr.mxu0 0.0
    %3584 = vmatpush1.msra.mxu0 0.0
    %3585 = vmatprep.mubr.f32.mxu0 0.0
    %3586 = vmatmul.mubr.f32.gmra.mrb[0].mxu0 %v3516
    %v3587 = vpop.f32.mrb[0].mxu0
    %v3588 = vadd.f32 %v3514, %v3587
    %v3589 = vpop.f32.mrb[0].mxu0
    %3590 = vmatprep.mubr.f32.mxu0 0.0
    %3591 = vmatmul.mubr.f32.gmra.mrb[0].mxu0 %v3519
    %v3592 = vpop.f32.mrb[0].mxu0
    %v3593 = vadd.f32 %v3514, %v3592
    %v3594 = vpop.f32.mrb[0].mxu0
    %3595 = vdwg.mxu0
    %v3596 = vadd.f32 %v2983, %v3588
    %v3597 = vadd.f32 %v2984, %v3593
    %v3598 = vsel %vm246, %v3596, 0.0
    %3599 = vadd.xlane.f32.xlu0 %v3598
    %v3600 = vpop.xlane.xlu0 %3599
    %v3601 = vsel %vm246, %v3597, 0.0
    %3602 = vadd.xlane.f32.xlu0 %v3601
    %v3603 = vpop.xlane.xlu0 %3602
    %v3604 = vmul.f32 %v3600, %v962
    %v3605 = vmul.f32 %v3603, %v962
    %v3606 = vsub.f32 %v3596, %v3604
    %v3607 = vsub.f32 %v3597, %v3605
    %v3608 = vmul.f32 %v3606, %v3606
    %v3609 = vmul.f32 %v3607, %v3607
    %v3610 = vsel %vm246, %v3608, 0.0
    %3611 = vadd.xlane.f32.xlu0 %v3610
    %v3612 = vpop.xlane.xlu0 %3611
    %v3613 = vsel %vm246, %v3609, 0.0
    %3614 = vadd.xlane.f32.xlu0 %v3613
    %v3615 = vpop.xlane.xlu0 %3614
    %v3616 = vmul.f32 %v3612, %v962
    %v3617 = vmul.f32 %v3615, %v962
    %v3618 = vadd.f32 %v3616, 1e-05
    %v3619 = vadd.f32 %v3617, 1e-05
    %v3620 = vrsqrt.pop %v3618
    %v3621 = vrsqrt.pop %v3619
    %v3622 = vmul.f32 %v3606, %v3620
    %v3623 = vmul.f32 %v3607, %v3621
    %v3624 = vlaneseq
    %v3625 = vshrl.u32 %v3624, 7
    %v3626 = vsub.s32 2, %v3625
    %v3627 = vrot.slane %v2986, %v3626
    %v3628 = vmul.f32 %v3622, %v3627
    %v3629 = vmul.f32 %v3623, %v3627
    %v3630 = vlaneseq
    %v3631 = vshrl.u32 %v3630, 7
    %v3632 = vsub.s32 3, %v3631
    %v3633 = vrot.slane %v2986, %v3632
    %v3634 = vadd.f32 %v3628, %v3633
    %v3635 = vadd.f32 %v3629, %v3633
    %s3636 = scalar_lea.vmem %s8, 96
    %v3637 = vld [vmem:[%s3636] sm:$0xff]
    %v3638 = vld [vmem:[%s3636 + $0x8] sm:$0xff]
    %v3639 = vld [vmem:[%s3636 + $0x10] sm:$0xff]
    %v3640 = vld [vmem:[%s3636 + $0x18] sm:$0xff]
    %s3641 = scalar_lea.vmem [#allocation5], 3
    %v3642 = vld [vmem:[%s3641] sm:$0x1]
    %v3644 = vlaneseq
    %v3645 = vshrl.u32 %v3644, 7
    %v3646 = vsub.s32 0, %v3645
    %v3647 = vrot.slane %v3642, %v3646
    %v3650 = vsel %vm246, %v3634, 0
    %v3653 = vsel %vm246, %v3635, 0
    %3655 = vmatprep.subr.mxu0 0.0
    %3656 = vmatpush1.msra.mxu0 %v3637
    %3657 = vmatprep.subr.mxu0 0.0
    %3658 = vmatpush1.msra.mxu0 %v3638
    %3659 = vmatprep.subr.mxu0 0.0
    %3660 = vmatpush1.msra.mxu0 %v3639
    %3661 = vmatprep.subr.mxu0 0.0
    %3662 = vmatpush1.msra.mxu0 %v3640
    %3663 = vmatprep.subr.mxu0 0.0
    %3664 = vmatpush1.msra.mxu0 0.0
    %3665 = vmatprep.subr.mxu0 0.0
    %3666 = vmatpush1.msra.mxu0 0.0
    %3667 = vmatprep.subr.mxu0 0.0
    %3668 = vmatpush1.msra.mxu0 0.0
    %3669 = vmatprep.subr.mxu0 0.0
    %3670 = vmatpush1.msra.mxu0 0.0
    %3671 = vmatprep.subr.mxu0 0.0
    %3672 = vmatpush1.msra.mxu0 0.0
    %3673 = vmatprep.subr.mxu0 0.0
    %3674 = vmatpush1.msra.mxu0 0.0
    %3675 = vmatprep.subr.mxu0 0.0
    %3676 = vmatpush1.msra.mxu0 0.0
    %3677 = vmatprep.subr.mxu0 0.0
    %3678 = vmatpush1.msra.mxu0 0.0
    %3679 = vmatprep.subr.mxu0 0.0
    %3680 = vmatpush1.msra.mxu0 0.0
    %3681 = vmatprep.subr.mxu0 0.0
    %3682 = vmatpush1.msra.mxu0 0.0
    %3683 = vmatprep.subr.mxu0 0.0
    %3684 = vmatpush1.msra.mxu0 0.0
    %3685 = vmatprep.subr.mxu0 0.0
    %3686 = vmatpush1.msra.mxu0 0.0
    %3687 = vmatprep.subr.mxu0 0.0
    %3688 = vmatpush1.msra.mxu0 0.0
    %3689 = vmatprep.subr.mxu0 0.0
    %3690 = vmatpush1.msra.mxu0 0.0
    %3691 = vmatprep.subr.mxu0 0.0
    %3692 = vmatpush1.msra.mxu0 0.0
    %3693 = vmatprep.subr.mxu0 0.0
    %3694 = vmatpush1.msra.mxu0 0.0
    %3695 = vmatprep.subr.mxu0 0.0
    %3696 = vmatpush1.msra.mxu0 0.0
    %3697 = vmatprep.subr.mxu0 0.0
    %3698 = vmatpush1.msra.mxu0 0.0
    %3699 = vmatprep.subr.mxu0 0.0
    %3700 = vmatpush1.msra.mxu0 0.0
    %3701 = vmatprep.subr.mxu0 0.0
    %3702 = vmatpush1.msra.mxu0 0.0
    %3703 = vmatprep.subr.mxu0 0.0
    %3704 = vmatpush1.msra.mxu0 0.0
    %3705 = vmatprep.subr.mxu0 0.0
    %3706 = vmatpush1.msra.mxu0 0.0
    %3707 = vmatprep.subr.mxu0 0.0
    %3708 = vmatpush1.msra.mxu0 0.0
    %3709 = vmatprep.subr.mxu0 0.0
    %3710 = vmatpush1.msra.mxu0 0.0
    %3711 = vmatprep.subr.mxu0 0.0
    %3712 = vmatpush1.msra.mxu0 0.0
    %3713 = vmatprep.subr.mxu0 0.0
    %3714 = vmatpush1.msra.mxu0 0.0
    %3715 = vmatprep.subr.mxu0 0.0
    %3716 = vmatpush1.msra.mxu0 0.0
    %3717 = vmatprep.subr.mxu0 0.0
    %3718 = vmatpush1.msra.mxu0 0.0
    %3719 = vmatprep.mubr.f32.mxu0 0.0
    %3720 = vmatmul.mubr.f32.gmra.mrb[0].mxu0 %v3650
    %v3721 = vpop.f32.mrb[0].mxu0
    %v3722 = vadd.f32 %v3647, %v3721
    %v3723 = vpop.f32.mrb[0].mxu0
    %3724 = vmatprep.mubr.f32.mxu0 0.0
    %3725 = vmatmul.mubr.f32.gmra.mrb[0].mxu0 %v3653
    %v3726 = vpop.f32.mrb[0].mxu0
    %v3727 = vadd.f32 %v3647, %v3726
    %v3728 = vpop.f32.mrb[0].mxu0
    %3729 = vdwg.mxu0
    %v3730 = vmax.f32 %v3722, 0.0
    %v3731 = vmax.f32 %v3727, 0.0
    %s3732 = scalar_lea.vmem %s10, 192
    %v3733 = vld [vmem:[%s3732] sm:$0xff]
    %v3734 = vld [vmem:[%s3732 + $0x8] sm:$0xff]
    %v3735 = vld [vmem:[%s3732 + $0x10] sm:$0xff]
    %v3736 = vld [vmem:[%s3732 + $0x18] sm:$0xff]
    %v3737 = vld [vmem:[%s3732 + $0x20] sm:$0xff]
    %v3738 = vld [vmem:[%s3732 + $0x28] sm:$0xff]
    %v3739 = vld [vmem:[%s3732 + $0x30] sm:$0xff]
    %v3740 = vld [vmem:[%s3732 + $0x38] sm:$0xff]
    %v3741 = vlaneseq
    %v3742 = vshrl.u32 %v3741, 7
    %v3743 = vsub.s32 1, %v3742
    %v3744 = vrot.slane %v2986, %v3743
    %v3746 = vsel %vm1101, %v3730, 0
    %v3749 = vsel %vm1101, %v3731, 0
    %3751 = vmatprep.subr.mxu0 0.0
    %3752 = vmatpush1.msra.mxu0 %v3733
    %3753 = vmatprep.subr.mxu0 0.0
    %3754 = vmatpush1.msra.mxu0 %v3734
    %3755 = vmatprep.subr.mxu0 0.0
    %3756 = vmatpush1.msra.mxu0 %v3735
    %3757 = vmatprep.subr.mxu0 0.0
    %3758 = vmatpush1.msra.mxu0 %v3736
    %3759 = vmatprep.subr.mxu0 0.0
    %3760 = vmatpush1.msra.mxu0 %v3737
    %3761 = vmatprep.subr.mxu0 0.0
    %3762 = vmatpush1.msra.mxu0 %v3738
    %3763 = vmatprep.subr.mxu0 0.0
    %3764 = vmatpush1.msra.mxu0 %v3739
    %3765 = vmatprep.subr.mxu0 0.0
    %3766 = vmatpush1.msra.mxu0 %v3740
    %3767 = vmatprep.subr.mxu0 0.0
    %3768 = vmatpush1.msra.mxu0 0.0
    %3769 = vmatprep.subr.mxu0 0.0
    %3770 = vmatpush1.msra.mxu0 0.0
    %3771 = vmatprep.subr.mxu0 0.0
    %3772 = vmatpush1.msra.mxu0 0.0
    %3773 = vmatprep.subr.mxu0 0.0
    %3774 = vmatpush1.msra.mxu0 0.0
    %3775 = vmatprep.subr.mxu0 0.0
    %3776 = vmatpush1.msra.mxu0 0.0
    %3777 = vmatprep.subr.mxu0 0.0
    %3778 = vmatpush1.msra.mxu0 0.0
    %3779 = vmatprep.subr.mxu0 0.0
    %3780 = vmatpush1.msra.mxu0 0.0
    %3781 = vmatprep.subr.mxu0 0.0
    %3782 = vmatpush1.msra.mxu0 0.0
    %3783 = vmatprep.subr.mxu0 0.0
    %3784 = vmatpush1.msra.mxu0 0.0
    %3785 = vmatprep.subr.mxu0 0.0
    %3786 = vmatpush1.msra.mxu0 0.0
    %3787 = vmatprep.subr.mxu0 0.0
    %3788 = vmatpush1.msra.mxu0 0.0
    %3789 = vmatprep.subr.mxu0 0.0
    %3790 = vmatpush1.msra.mxu0 0.0
    %3791 = vmatprep.subr.mxu0 0.0
    %3792 = vmatpush1.msra.mxu0 0.0
    %3793 = vmatprep.subr.mxu0 0.0
    %3794 = vmatpush1.msra.mxu0 0.0
    %3795 = vmatprep.subr.mxu0 0.0
    %3796 = vmatpush1.msra.mxu0 0.0
    %3797 = vmatprep.subr.mxu0 0.0
    %3798 = vmatpush1.msra.mxu0 0.0
    %3799 = vmatprep.subr.mxu0 0.0
    %3800 = vmatpush1.msra.mxu0 0.0
    %3801 = vmatprep.subr.mxu0 0.0
    %3802 = vmatpush1.msra.mxu0 0.0
    %3803 = vmatprep.subr.mxu0 0.0
    %3804 = vmatpush1.msra.mxu0 0.0
    %3805 = vmatprep.subr.mxu0 0.0
    %3806 = vmatpush1.msra.mxu0 0.0
    %3807 = vmatprep.subr.mxu0 0.0
    %3808 = vmatpush1.msra.mxu0 0.0
    %3809 = vmatprep.subr.mxu0 0.0
    %3810 = vmatpush1.msra.mxu0 0.0
    %3811 = vmatprep.subr.mxu0 0.0
    %3812 = vmatpush1.msra.mxu0 0.0
    %3813 = vmatprep.subr.mxu0 0.0
    %3814 = vmatpush1.msra.mxu0 0.0
    %3815 = vmatprep.mubr.f32.mxu0 0.0
    %3816 = vmatmul.mubr.f32.gmra.mrb[0].mxu0 %v3746
    %v3817 = vpop.f32.mrb[0].mxu0
    %v3818 = vadd.f32 %v3744, %v3817
    %v3819 = vpop.f32.mrb[0].mxu0
    %3820 = vmatprep.mubr.f32.mxu0 0.0
    %3821 = vmatmul.mubr.f32.gmra.mrb[0].mxu0 %v3749
    %v3822 = vpop.f32.mrb[0].mxu0
    %v3823 = vadd.f32 %v3744, %v3822
    %v3824 = vpop.f32.mrb[0].mxu0
    %3825 = vdwg.mxu0
    %v3826 = vadd.f32 %v3634, %v3818
    %v3827 = vadd.f32 %v3635, %v3823
    %v3828 = vsel %vm246, %v3826, 0.0
    %3829 = vadd.xlane.f32.xlu0 %v3828
    %v3830 = vpop.xlane.xlu0 %3829
    %v3831 = vsel %vm246, %v3827, 0.0
    %3832 = vadd.xlane.f32.xlu0 %v3831
    %v3833 = vpop.xlane.xlu0 %3832
    %v3834 = vmul.f32 %v3830, %v962
    %v3835 = vmul.f32 %v3833, %v962
    %v3836 = vsub.f32 %v3826, %v3834
    %v3837 = vsub.f32 %v3827, %v3835
    %v3838 = vmul.f32 %v3836, %v3836
    %v3839 = vmul.f32 %v3837, %v3837
    %v3840 = vsel %vm246, %v3838, 0.0
    %3841 = vadd.xlane.f32.xlu0 %v3840
    %v3842 = vpop.xlane.xlu0 %3841
    %v3843 = vsel %vm246, %v3839, 0.0
    %3844 = vadd.xlane.f32.xlu0 %v3843
    %v3845 = vpop.xlane.xlu0 %3844
    %v3846 = vmul.f32 %v3842, %v962
    %v3847 = vmul.f32 %v3845, %v962
    %v3848 = vadd.f32 %v3846, 1e-05
    %v3849 = vadd.f32 %v3847, 1e-05
    %v3850 = vrsqrt.pop %v3848
    %v3851 = vrsqrt.pop %v3849
    %v3852 = vmul.f32 %v3836, %v3850
    %v3853 = vmul.f32 %v3837, %v3851
    %v3854 = vlaneseq
    %v3855 = vshrl.u32 %v3854, 7
    %v3856 = vsub.s32 4, %v3855
    %v3857 = vrot.slane %v2986, %v3856
    %v3858 = vmul.f32 %v3852, %v3857
    %v3859 = vmul.f32 %v3853, %v3857
    %v3860 = vlaneseq
    %v3861 = vshrl.u32 %v3860, 7
    %v3862 = vsub.s32 5, %v3861
    %v3863 = vrot.slane %v2986, %v3862
    %v3864 = vadd.f32 %v3858, %v3863
    %v3865 = vadd.f32 %v3859, %v3863
    %v3866 = vld [vmem:[#allocation7] sm:$0xff]
    %v3867 = vld [vmem:[#allocation7 + $0x8] sm:$0xff]
    %v3868 = vld [vmem:[#allocation7 + $0x10] sm:$0xff]
    %v3869 = vld [vmem:[#allocation7 + $0x18] sm:$0xff]
    %v3870 = vld [vmem:[%s13] sm:$0x1]
    %v3872 = vlaneseq
    %v3873 = vshrl.u32 %v3872, 7
    %v3874 = vsub.s32 0, %v3873
    %v3875 = vrot.slane %v3870, %v3874
    %v3878 = vsel %vm246, %v3864, 0
    %v3881 = vsel %vm246, %v3865, 0
    %3883 = vmatprep.subr.mxu0 0.0
    %3884 = vmatpush1.msra.mxu0 %v3866
    %3885 = vmatprep.subr.mxu0 0.0
    %3886 = vmatpush1.msra.mxu0 %v3867
    %3887 = vmatprep.subr.mxu0 0.0
    %3888 = vmatpush1.msra.mxu0 %v3868
    %3889 = vmatprep.subr.mxu0 0.0
    %3890 = vmatpush1.msra.mxu0 %v3869
    %3891 = vmatprep.subr.mxu0 0.0
    %3892 = vmatpush1.msra.mxu0 0.0
    %3893 = vmatprep.subr.mxu0 0.0
    %3894 = vmatpush1.msra.mxu0 0.0
    %3895 = vmatprep.subr.mxu0 0.0
    %3896 = vmatpush1.msra.mxu0 0.0
    %3897 = vmatprep.subr.mxu0 0.0
    %3898 = vmatpush1.msra.mxu0 0.0
    %3899 = vmatprep.subr.mxu0 0.0
    %3900 = vmatpush1.msra.mxu0 0.0
    %3901 = vmatprep.subr.mxu0 0.0
    %3902 = vmatpush1.msra.mxu0 0.0
    %3903 = vmatprep.subr.mxu0 0.0
    %3904 = vmatpush1.msra.mxu0 0.0
    %3905 = vmatprep.subr.mxu0 0.0
    %3906 = vmatpush1.msra.mxu0 0.0
    %3907 = vmatprep.subr.mxu0 0.0
    %3908 = vmatpush1.msra.mxu0 0.0
    %3909 = vmatprep.subr.mxu0 0.0
    %3910 = vmatpush1.msra.mxu0 0.0
    %3911 = vmatprep.subr.mxu0 0.0
    %3912 = vmatpush1.msra.mxu0 0.0
    %3913 = vmatprep.subr.mxu0 0.0
    %3914 = vmatpush1.msra.mxu0 0.0
    %3915 = vmatprep.subr.mxu0 0.0
    %3916 = vmatpush1.msra.mxu0 0.0
    %3917 = vmatprep.subr.mxu0 0.0
    %3918 = vmatpush1.msra.mxu0 0.0
    %3919 = vmatprep.subr.mxu0 0.0
    %3920 = vmatpush1.msra.mxu0 0.0
    %3921 = vmatprep.subr.mxu0 0.0
    %3922 = vmatpush1.msra.mxu0 0.0
    %3923 = vmatprep.subr.mxu0 0.0
    %3924 = vmatpush1.msra.mxu0 0.0
    %3925 = vmatprep.subr.mxu0 0.0
    %3926 = vmatpush1.msra.mxu0 0.0
    %3927 = vmatprep.subr.mxu0 0.0
    %3928 = vmatpush1.msra.mxu0 0.0
    %3929 = vmatprep.subr.mxu0 0.0
    %3930 = vmatpush1.msra.mxu0 0.0
    %3931 = vmatprep.subr.mxu0 0.0
    %3932 = vmatpush1.msra.mxu0 0.0
    %3933 = vmatprep.subr.mxu0 0.0
    %3934 = vmatpush1.msra.mxu0 0.0
    %3935 = vmatprep.subr.mxu0 0.0
    %3936 = vmatpush1.msra.mxu0 0.0
    %3937 = vmatprep.subr.mxu0 0.0
    %3938 = vmatpush1.msra.mxu0 0.0
    %3939 = vmatprep.subr.mxu0 0.0
    %3940 = vmatpush1.msra.mxu0 0.0
    %3941 = vmatprep.subr.mxu0 0.0
    %3942 = vmatpush1.msra.mxu0 0.0
    %3943 = vmatprep.subr.mxu0 0.0
    %3944 = vmatpush1.msra.mxu0 0.0
    %3945 = vmatprep.subr.mxu0 0.0
    %3946 = vmatpush1.msra.mxu0 0.0
    %3947 = vmatprep.mubr.f32.mxu0 0.0
    %3948 = vmatmul.mubr.f32.gmra.mrb[0].mxu0 %v3878
    %v3949 = vpop.f32.mrb[0].mxu0
    %v3950 = vadd.f32 %v3875, %v3949
    %v3951 = vpop.f32.mrb[0].mxu0
    %3952 = vmatprep.mubr.f32.mxu0 0.0
    %3953 = vmatmul.mubr.f32.gmra.mrb[0].mxu0 %v3881
    %v3954 = vpop.f32.mrb[0].mxu0
    %v3955 = vadd.f32 %v3875, %v3954
    %v3956 = vpop.f32.mrb[0].mxu0
    %3957 = vdwg.mxu0
    %3958 = vst [vmem:[#allocation8] sm:$0xff] %v3950
    %3959 = vst [vmem:[#allocation8 + $0x8] sm:$0xff] %v3955
    // Predicated region
    $region70: #{transformer_forward.1} parent=1 // pred_check
      _
    $region71: #{transformer_forward.1} parent=1 // pred_check_branch
      %3961 = sbr.rel (0) target = $region73
    $region72: #{transformer_forward.1} parent=1 // pred_region
      %s3963 = ssub.s32 256, 256
      %3964 = vsyncadd [#allocation4], %s3963
      %s3965 = sshll.u32 [#allocation8], 4
      %s3966 = int_to_ptr.vmem [resolvable:$true] %s3965
      %3971 = dma.vmem_to_hbm [thread:$0]  %s3966, 256, %s14, [#allocation4], 128, 128, 8
    $region73: #{transformer_forward.1} parent=1 // pred_fallthru
      _
    // Predicated region
    $region74: #{transformer_forward.1} parent=1 // pred_check
      _
    $region75: #{transformer_forward.1} parent=1 // pred_check_branch
      %3973 = sbr.rel (0) target = $region77
    $region76: #{transformer_forward.1} parent=1 // pred_region
      %3974 = dma.done [#allocation4], 256
    $region77: #{transformer_forward.1} parent=1 // pred_fallthru
      _
    %3975 = vsyncpa [#allocation3], 1
    %3976 = vsyncpa [#allocation6], 1
    %3977 = vsyncpa [#allocation4], 1

</llo_original>
